<compile_context>
chip_gen: v7x
topology: tpu7x:2x2x1
jax: 0.10.0
libtpu: 0.0.40
codegen_flags: <defaults>
</compile_context>

<pallas_src>
import functools

import jax
import jax.numpy as jnp
from jax.experimental import pallas as pl
from jax.experimental.pallas import tpu as pltpu

LANE = 128

# Mirror of the PyTorch `function_set` (elementwise "safe" unaries); indices in
# `unary_fn_ids` select from this set, like `unary_funcs` in the module.
FUNCTION_SET = (
    ("sin", jnp.sin),
    ("cos", jnp.cos),
    ("tanh", jnp.tanh),
    ("square", lambda z: z * z),
    ("identity", lambda z: z),
)


def _round_up(n, m):
    return ((n + m - 1) // m) * m


def _srnet_kernel(x_ref, w_ref, out_ref, *, opad, unary_fn_ids):
    """Fused linear + unary/binary nonlinearity tile.

    x_ref  : (tb, D)       bf16 activations tile
    w_ref  : (D, 2*opad)   bf16 packed [Wa | Wb] weight slab (batch-resident)
    out_ref: (tb, opad)    f32 output tile (lane-dense)
    """
    # Single MXU matmul, f32 accumulation.
    lin = jnp.dot(x_ref[...], w_ref[...], preferred_element_type=jnp.float32)
    # Split at a 128-lane tile boundary (opad is a multiple of 128) -> cheap.
    lin_a = lin[:, :opad]
    lin_b = lin[:, opad:]

    # Binary nodes (and zero padding lanes): pairwise product.  Unary columns of
    # Wb are zero so their product is 0 before being overwritten below.
    out = lin_a * lin_b

    # Unary nodes: overwrite columns [0, u).  Group columns by function so each
    # transcendental is evaluated once per distinct function over the tile
    # (EUP/VPU work) and selected per-lane.
    if unary_fn_ids:
        lane_id = jax.lax.broadcasted_iota(jnp.int32, lin_a.shape, dimension=1)
        by_fn = {}
        for col, fn_id in enumerate(unary_fn_ids):
            by_fn.setdefault(fn_id, []).append(col)
        for fn_id, cols in by_fn.items():
            vals = FUNCTION_SET[fn_id][1](lin_a)
            sel = lane_id == cols[0]
            for c in cols[1:]:
                sel = sel | (lane_id == c)
            out = jnp.where(sel, vals, out)

    out_ref[...] = out.astype(out_ref.dtype)


def masked_srnet_forward(x, W, W_mask, connectivity_mask, *, node_info,
                         unary_fn_ids, block_b=128,
                         matmul_dtype=jnp.bfloat16):
    """MaskedSRNetLayer.forward.

    x                 : (B, D) float32
    W                 : (u + 2v, D) float32
    W_mask            : (u + 2v, D) float32
    connectivity_mask : (u + 2v, D) float32
    node_info         : (u, v) static
    unary_fn_ids      : tuple of u indices into FUNCTION_SET (static)
    """
    u, v = node_info
    n_lin = u + 2 * v
    n_out = u + v
    B, D = x.shape
    assert W.shape == (n_lin, D)
    assert len(unary_fn_ids) == u

    # ---- parameter glue (fused by XLA under jit; never re-done in the kernel) ----
    W_eff = W * W_mask * connectivity_mask                       # (n_lin, D)

    opad = max(LANE, _round_up(n_out, LANE))                     # lane-dense width
    a_rows = jnp.asarray(list(range(u)) + [u + 2 * j for j in range(v)],
                         dtype=jnp.int32)
    Wa = jnp.zeros((D, opad), jnp.float32).at[:, :n_out].set(W_eff[a_rows, :].T)
    Wb = jnp.zeros((D, opad), jnp.float32)
    if v > 0:
        b_rows = jnp.asarray([u + 2 * j + 1 for j in range(v)], dtype=jnp.int32)
        Wb = Wb.at[:, u:n_out].set(W_eff[b_rows, :].T)
    w_packed = jnp.concatenate([Wa, Wb], axis=1).astype(matmul_dtype)  # (D, 2*opad)

    # Pad the batch to a tile multiple (zero rows -> zero outputs, sliced off).
    grid_b = pl.cdiv(B, block_b)
    b_pad = grid_b * block_b
    if b_pad != B:
        x = jnp.pad(x, ((0, b_pad - B), (0, 0)))
    x_mm = x.astype(matmul_dtype)

    kernel = functools.partial(_srnet_kernel, opad=opad,
                               unary_fn_ids=tuple(unary_fn_ids))

    out_padded = pl.pallas_call(
        kernel,
        out_shape=jax.ShapeDtypeStruct((b_pad, opad), jnp.float32),
        grid_spec=pltpu.PrefetchScalarGridSpec(
            num_scalar_prefetch=0,
            grid=(grid_b,),
            in_specs=[
                # Activations: tiled along batch, double-buffered by Pallas.
                pl.BlockSpec((block_b, D), lambda i: (i, 0)),
                # Packed weight slab: index_map independent of batch -> resident.
                pl.BlockSpec((D, 2 * opad), lambda i: (0, 0)),
            ],
            out_specs=pl.BlockSpec((block_b, opad), lambda i: (i, 0)),
        ),
        compiler_params=pltpu.CompilerParams(
            # Batch tiles are independent -> megacore-shardable (2 TCs on v7x).
            dimension_semantics=("parallel",),
        ),
    )(x_mm, w_packed)

    return out_padded[:B, :n_out]


def masked_srnet_reference(x, W, W_mask, connectivity_mask, *, node_info,
                           unary_fn_ids, matmul_dtype=jnp.float32):
    """Pure-JAX mirror of the PyTorch forward (general unary branch)."""
    u, v = node_info
    W_eff = W * W_mask * connectivity_mask
    lin = jnp.dot(x.astype(matmul_dtype), W_eff.T.astype(matmul_dtype),
                  preferred_element_type=jnp.float32)            # (B, u+2v)
    outs = []
    for i in range(u):
        outs.append(FUNCTION_SET[unary_fn_ids[i]][1](lin[:, i:i + 1]))
    for j in range(v):
        outs.append(lin[:, u + 2 * j:u + 2 * j + 1]
                    * lin[:, u + 2 * j + 1:u + 2 * j + 2])
    return jnp.concatenate(outs, axis=1)


if __name__ == "__main__":
    key = jax.random.PRNGKey(0)
    kx, kw, km = jax.random.split(key, 3)

    # Small, deterministic configuration consistent with the module.
    batch = 256                     # 2 batch tiles of 128 -> grid=(2,), both v7x cores busy
    input_size = 32
    u, v = 3, 2                     # 3 unary nodes + 2 binary (product) nodes
    node_info = (u, v)
    n_lin = u + 2 * v               # rows of the underlying Connected layer (7)
    unary_fn_ids = (0, 1, 3)        # sin, cos, square

    x = jax.random.normal(kx, (batch, input_size), dtype=jnp.float32)
    # Kaiming-normal for 'linear' nonlinearity: std = 1/sqrt(fan_in).
    W = jax.random.normal(kw, (n_lin, input_size), dtype=jnp.float32) \
        * (1.0 / jnp.sqrt(jnp.float32(input_size)))
    W_mask = jnp.ones((n_lin, input_size), jnp.float32)
    # Random sparse connectivity mask to exercise the masked path.
    connectivity_mask = (jax.random.uniform(km, (n_lin, input_size)) > 0.25
                         ).astype(jnp.float32)

    fwd = jax.jit(functools.partial(
        masked_srnet_forward, node_info=node_info, unary_fn_ids=unary_fn_ids,
        block_b=128, matmul_dtype=jnp.bfloat16))

    out = fwd(x, W, W_mask, connectivity_mask)
    out = jax.block_until_ready(out)

    # Reference with the same bf16 matmul inputs (tight check) ...
    ref_bf16 = masked_srnet_reference(x, W, W_mask, connectivity_mask,
                                      node_info=node_info,
                                      unary_fn_ids=unary_fn_ids,
                                      matmul_dtype=jnp.bfloat16)
    # ... and the full-f32 reference (loose check; bf16 matmul changes low bits).
    ref_f32 = masked_srnet_reference(x, W, W_mask, connectivity_mask,
                                     node_info=node_info,
                                     unary_fn_ids=unary_fn_ids,
                                     matmul_dtype=jnp.float32)

    assert out.shape == (batch, u + v), out.shape
    assert jnp.allclose(out, ref_bf16, atol=1e-3, rtol=1e-3), \
        "Pallas output mismatch vs bf16-matched reference"
    assert jnp.allclose(out, ref_f32, atol=5e-2, rtol=5e-2), \
        "Pallas output mismatch vs f32 reference"
    print("KERNEL_OK")
</pallas_src>

<mosaic_0001>
module attributes {stable_mosaic.version = 11 : i64} {
  func.func @_srnet_kernel(%arg0: i32, %arg1: memref<128x32xbf16, #tpu.memory_space<vmem>>, %arg2: memref<32x256xbf16, #tpu.memory_space<vmem>>, %arg3: memref<128x128xf32, #tpu.memory_space<vmem>>) attributes {dimension_semantics = [#tpu.dimension_semantics<parallel>], iteration_bounds = array<i64: 2>, scalar_prefetch = 0 : i64, scratch_operands = 0 : i64, tpu.core_type = #tpu.core_type<tc>, window_params = [{transform_indices = @transform_0, window_bounds = array<i64: 128, 32>}, {pipeline_mode = #tpu.pipeline_mode<synchronous>, transform_indices = @transform_1, window_bounds = array<i64: 32, 256>}, {transform_indices = @transform_2, window_bounds = array<i64: 128, 128>}]} {
    %c0 = arith.constant 0 : index
    %c0_0 = arith.constant 0 : index
    %0 = vector.load %arg1[%c0, %c0_0] : memref<128x32xbf16, #tpu.memory_space<vmem>>, vector<128x32xbf16>
    %c0_1 = arith.constant 0 : index
    %c0_2 = arith.constant 0 : index
    %1 = vector.load %arg2[%c0_1, %c0_2] : memref<32x256xbf16, #tpu.memory_space<vmem>>, vector<32x256xbf16>
    %cst = arith.constant dense<0.000000e+00> : vector<128x256xf32>
    %2 = tpu.matmul %0, %1, %cst {dimension_numbers = #tpu.dot_dimension_numbers<[1], [0], [0], [1], [0, 0, 1, 1], [], []>} : vector<128x32xbf16>, vector<32x256xbf16>, vector<128x256xf32> -> vector<128x256xf32>
    %3 = vector.extract_strided_slice %2 {offsets = [0, 0], sizes = [128, 128], strides = [1, 1]} : vector<128x256xf32> to vector<128x128xf32>
    %4 = vector.extract_strided_slice %2 {offsets = [0, 128], sizes = [128, 128], strides = [1, 1]} : vector<128x256xf32> to vector<128x128xf32>
    %5 = arith.mulf %3, %4 : vector<128x128xf32>
    %6 = tpu.iota {dimensions = array<i32: 1>} : vector<128x128xi32>
    %7 = math.sin %3 : vector<128x128xf32>
    %c0_i32 = arith.constant 0 : i32
    %8 = vector.broadcast %c0_i32 : i32 to vector<128x128xi32>
    %9 = arith.cmpi eq, %6, %8 : vector<128x128xi32>
    %10 = arith.select %9, %7, %5 : vector<128x128xi1>, vector<128x128xf32>
    %11 = math.cos %3 : vector<128x128xf32>
    %c1_i32 = arith.constant 1 : i32
    %12 = vector.broadcast %c1_i32 : i32 to vector<128x128xi32>
    %13 = arith.cmpi eq, %6, %12 : vector<128x128xi32>
    %14 = arith.select %13, %11, %10 : vector<128x128xi1>, vector<128x128xf32>
    %15 = arith.mulf %3, %3 : vector<128x128xf32>
    %c2_i32 = arith.constant 2 : i32
    %16 = vector.broadcast %c2_i32 : i32 to vector<128x128xi32>
    %17 = arith.cmpi eq, %6, %16 : vector<128x128xi32>
    %18 = arith.select %17, %15, %14 : vector<128x128xi1>, vector<128x128xf32>
    %c0_3 = arith.constant 0 : index
    %c0_4 = arith.constant 0 : index
    %19 = vector.load %arg3[%c0_3, %c0_4] : memref<128x128xf32, #tpu.memory_space<vmem>>, vector<128x128xf32>
    tpu.vector_store %arg3[%c0_3, %c0_4], %18 {strides = array<i32>} : memref<128x128xf32, #tpu.memory_space<vmem>>, vector<128x128xf32>,
    return
  }
  func.func @transform_0(%arg0: i32) -> (i32, i32) {
    %c0_i32 = arith.constant 0 : i32
    %c0_i32_0 = arith.constant 0 : i32
    return %arg0, %c0_i32 : i32, i32
  }
  func.func @transform_1(%arg0: i32) -> (i32, i32) {
    %c0_i32 = arith.constant 0 : i32
    %c0_i32_0 = arith.constant 0 : i32
    %c0_i32_1 = arith.constant 0 : i32
    return %c0_i32, %c0_i32_0 : i32, i32
  }
  func.func @transform_2(%arg0: i32) -> (i32, i32) {
    %c0_i32 = arith.constant 0 : i32
    %c0_i32_0 = arith.constant 0 : i32
    return %arg0, %c0_i32 : i32, i32
  }
}

</mosaic_0001>

<llo_original>
// kernel: masked_srnet_forward.1
$region0: #{masked_srnet_forward.1}
  #allocation0 [shape = 'u32[]', space=smem, size = 0x4, offset = 0x4, fixed_abs, tag = 'smem constant byte address 0x4 - core index']
  #allocation1 [shape = 'u32[144,128]{1,0:T(1,128)}', space=vmem, size = 0x12000, scoped, tag = 'internal scratch']
  %s0 = inlined_call_operand.vmem [shape: bf16[256,32], index: 0, kind: input, shape index: {}]
  %s1 = inlined_call_operand.vmem [shape: bf16[32,256], index: 1, kind: input, shape index: {}]
  %s2 = inlined_call_operand.vmem [shape: f32[256,128], index: 2, kind: output, shape index: {}]
  %s3 = sld [smem:[#allocation0]]
  $region41: #{masked_srnet_forward.1} parent=0
    _
  %s5 = ssub.s32 1, %s3
  %s6 = scalar_select 0, %s5, %s3
  loop: start=0, step=1, limit=4
  $region2: #{masked_srnet_forward.1} parent=0 // loop_pre_header
    _
  $region3: #{masked_srnet_forward.1} parent=0 // loop_header
    %s8 = sphi 0, %s12
    %p9 = scmp.ge.s32.totalorder %s8, 4
    %s18 = sphi 0, %s20
    %s21 = sphi 0, %s18
    %s22 = sphi 0, %s21
    %s38 = sphi 0, %s22
    %s42 = sphi 0, %s42
    %s44 = sphi 0, %s42
    %s45 = sphi 0, %s44
    %s59 = sphi 0, %s45
    %s65 = sphi 0, %s67
    %s68 = sphi 0, %s65
    %s69 = sphi 0, %s68
    %s85 = sphi 0, %s69
  $region4: #{masked_srnet_forward.1} parent=0 // loop_header_branch
    %11 = sbr.rel (%p9) target = $region8
  $region5: #{masked_srnet_forward.1} parent=0 // loop_body
    %s13 = ssub.s32 %s8, 1
    %s14 = ssub.s32 %s8, 2
    %s15 = sadd.s32 %s8, 1
    %s16 = ssub.s32 %s8, %s15
    %p17 = scmp.eq.s32.totalorder %s16, 0
    %s19 = sadd.s32 %s18, 1
    %s20 = scalar_select %p17, %s18, %s19
    %p23 = pneg %p17
    %p24 = scmp.eq.s32.totalorder %s8, 1
    %p25 = por %p23, %p24
    %p26 = scmp.ne.s32.totalorder %s18, %s21
    %p27 = scmp.eq.s32.totalorder %s8, 0
    %p28 = por %p26, %p27
    %p29 = scmp.ne.s32.totalorder %s18, %s21
    %p30 = scmp.eq.s32.totalorder %s13, 1
    %p31 = por %p29, %p30
    %p32 = scmp.ne.s32.totalorder %s21, %s22
    %p33 = scmp.eq.s32.totalorder %s13, 0
    %p34 = por %p32, %p33
    %p35 = scmp.ne.s32.totalorder %s21, %s22
    %p36 = scmp.eq.s32.totalorder %s14, 1
    %p37 = por %p35, %p36
    %p39 = scmp.ne.s32.totalorder %s22, %s38
    %p40 = scmp.eq.s32.totalorder %s14, 0
    %p41 = por %p39, %p40
    %s43 = sadd.s32 %s42, 1
    %p46 = scmp.eq.s32.totalorder %s8, 1
    %p47 = scmp.ne.s32.totalorder %s42, %s44
    %p48 = scmp.eq.s32.totalorder %s8, 0
    %p49 = por %p47, %p48
    %p50 = scmp.ne.s32.totalorder %s42, %s44
    %p51 = scmp.eq.s32.totalorder %s13, 1
    %p52 = por %p50, %p51
    %p53 = scmp.ne.s32.totalorder %s44, %s45
    %p54 = scmp.eq.s32.totalorder %s13, 0
    %p55 = por %p53, %p54
    %p56 = scmp.ne.s32.totalorder %s44, %s45
    %p57 = scmp.eq.s32.totalorder %s14, 1
    %p58 = por %p56, %p57
    %p60 = scmp.ne.s32.totalorder %s45, %s59
    %p61 = scmp.eq.s32.totalorder %s14, 0
    %p62 = por %p60, %p61
    %s63 = ssub.s32 %s8, %s15
    %p64 = scmp.eq.s32.totalorder %s63, 0
    %s66 = sadd.s32 %s65, 1
    %s67 = scalar_select %p64, %s65, %s66
    %p70 = pneg %p64
    %p71 = scmp.eq.s32.totalorder %s8, 1
    %p72 = por %p70, %p71
    %p73 = scmp.ne.s32.totalorder %s65, %s68
    %p74 = scmp.eq.s32.totalorder %s8, 0
    %p75 = por %p73, %p74
    %p76 = scmp.ne.s32.totalorder %s65, %s68
    %p77 = scmp.eq.s32.totalorder %s13, 1
    %p78 = por %p76, %p77
    %p79 = scmp.ne.s32.totalorder %s68, %s69
    %p80 = scmp.eq.s32.totalorder %s13, 0
    %p81 = por %p79, %p80
    %p82 = scmp.ne.s32.totalorder %s68, %s69
    %p83 = scmp.eq.s32.totalorder %s14, 1
    %p84 = por %p82, %p83
    %p86 = scmp.ne.s32.totalorder %s69, %s85
    %p87 = scmp.eq.s32.totalorder %s14, 0
    %p88 = por %p86, %p87
    %p89 = scmp.le.s32.totalorder 1, %s8
    %p90 = scmp.lt.s32.totalorder %s8, 3
    %p91 = pnand %p89, %p90
    %p92 = pneg %p91
    // Predicated region
    $region9: #{masked_srnet_forward.1} parent=5 // pred_check
      _
    $region10: #{masked_srnet_forward.1} parent=5 // pred_check_branch
      %94 = sbr.rel (%p91) target = $region12
    $region11: #{masked_srnet_forward.1} parent=5 // pred_region
      %s95 = ssub.s32 %s8, 1
      // Predicated region
      $region13: #{masked_srnet_forward.1} parent=11 // pred_check
        %p96 = pneg %p55
      $region14: #{masked_srnet_forward.1} parent=11 // pred_check_branch
        %98 = sbr.rel (%p96) target = $region16
      $region15: #{masked_srnet_forward.1} parent=11 // pred_region
        _
      $region16: #{masked_srnet_forward.1} parent=11 // pred_fallthru
        _
    $region12: #{masked_srnet_forward.1} parent=5 // pred_fallthru
      _
    %p99 = scmp.lt.s32.totalorder %s8, 2
    // Predicated region
    $region17: #{masked_srnet_forward.1} parent=5 // pred_check
      %p100 = pneg %p99
    $region18: #{masked_srnet_forward.1} parent=5 // pred_check_branch
      %102 = sbr.rel (%p100) target = $region20
    $region19: #{masked_srnet_forward.1} parent=5 // pred_region
      // Predicated region
      $region21: #{masked_srnet_forward.1} parent=19 // pred_check
        %p103 = pneg %p28
      $region22: #{masked_srnet_forward.1} parent=19 // pred_check_branch
        %105 = sbr.rel (%p103) target = $region24
      $region23: #{masked_srnet_forward.1} parent=19 // pred_region
        %s106 = smul.u32 16, %s8
        %p107 = scmp.lt.s32.totalorder %s106, 31
        %s108 = scalar_select %p107, %s106, 31
        %s109 = smul.addr %s108, 4
        %s110 = scalar_lea.vmem %s0, %s109
        %s111 = smul.u32 16, %s8
      $region24: #{masked_srnet_forward.1} parent=19 // pred_fallthru
        _
    $region20: #{masked_srnet_forward.1} parent=5 // pred_fallthru
      _
    %p112 = scmp.le.s32.totalorder 1, %s8
    %p113 = scmp.lt.s32.totalorder %s8, 3
    %p114 = pnand %p112, %p113
    %p115 = pneg %p114
    // Predicated region
    $region25: #{masked_srnet_forward.1} parent=5 // pred_check
      _
    $region26: #{masked_srnet_forward.1} parent=5 // pred_check_branch
      %117 = sbr.rel (%p114) target = $region28
    $region27: #{masked_srnet_forward.1} parent=5 // pred_region
      %s118 = ssub.s32 %s8, 1
      %s119 = smul.u32 16, %s13
      %p120 = scmp.lt.s32.totalorder %s119, 31
      %s121 = scalar_select %p120, %s119, 31
      %s122 = smul.addr %s121, 4
      %s123 = scalar_lea.vmem %s0, %s122
      %p124 = pneg %p34
      %p125 = pneg %p31
      %p126 = pneg %p55
      %p127 = pneg %p52
      %p128 = pneg %p81
      %p129 = pneg %p78
      %s130 = smul.u32 16, %s13
      %p131 = scmp.lt.s32.totalorder %s130, 31
      %s132 = scalar_select %p131, %s130, 31
      %s133 = smul.addr %s132, 8
      %s134 = scalar_lea.vmem %s2, %s133
      %s135 = smul.u32 16, %s13
      %p136 = scmp.lt.s32.totalorder %s135, 31
      %s137 = scalar_select %p136, %s135, 31
      %s138 = smul.addr %s137, 4
      %s139 = scalar_lea.vmem %s0, %s138
      %s140 = smul.u32 16, %s13
      %s141 = smul.u32 16, %s13
      %p142 = scmp.lt.s32.totalorder %s141, 31
      %s143 = scalar_select %p142, %s141, 31
      %s144 = smul.addr %s143, 8
      %s145 = scalar_lea.vmem %s2, %s144
      %s146 = smul.u32 16, %s13
      %v148 = vld [vmem:[%s139] sm:$0xf]
      %v149 = vld [vmem:[%s139 + $0x4] sm:$0xf]
      %v150 = vld [vmem:[%s139 + $0x8] sm:$0xf]
      %v151 = vld [vmem:[%s139 + $0xc] sm:$0xf]
      %v152 = vld [vmem:[%s139 + $0x10] sm:$0xf]
      %v153 = vld [vmem:[%s139 + $0x14] sm:$0xf]
      %v154 = vld [vmem:[%s139 + $0x18] sm:$0xf]
      %v155 = vld [vmem:[%s139 + $0x1c] sm:$0xf]
      %v156 = vld [vmem:[%s139 + $0x20] sm:$0xf]
      %v157 = vld [vmem:[%s139 + $0x24] sm:$0xf]
      %v158 = vld [vmem:[%s139 + $0x28] sm:$0xf]
      %v159 = vld [vmem:[%s139 + $0x2c] sm:$0xf]
      %v160 = vld [vmem:[%s139 + $0x30] sm:$0xf]
      %v161 = vld [vmem:[%s139 + $0x34] sm:$0xf]
      %v162 = vld [vmem:[%s139 + $0x38] sm:$0xf]
      %v163 = vld [vmem:[%s139 + $0x3c] sm:$0xf]
      %v164 = vld [vmem:[%s1] sm:$0xff]
      %v165 = vld [vmem:[%s1 + $0x8] sm:$0xff]
      %v166 = vld [vmem:[%s1 + $0x10] sm:$0xff]
      %v167 = vld [vmem:[%s1 + $0x18] sm:$0xff]
      %v184 = vunpack.c.l.b16 %v148
      %v185 = vunpack.c.l.b16 %v149
      %v186 = vunpack.c.l.b16 %v150
      %v187 = vunpack.c.l.b16 %v151
      %v188 = vunpack.c.l.b16 %v152
      %v189 = vunpack.c.l.b16 %v153
      %v190 = vunpack.c.l.b16 %v154
      %v191 = vunpack.c.l.b16 %v155
      %v192 = vunpack.c.l.b16 %v156
      %v193 = vunpack.c.l.b16 %v157
      %v194 = vunpack.c.l.b16 %v158
      %v195 = vunpack.c.l.b16 %v159
      %v196 = vunpack.c.l.b16 %v160
      %v197 = vunpack.c.l.b16 %v161
      %v198 = vunpack.c.l.b16 %v162
      %v199 = vunpack.c.l.b16 %v163
      %v200 = vpack.c.b16 %v185, %v184
      %v201 = vpack.c.b16 %v187, %v186
      %v202 = vpack.c.b16 %v189, %v188
      %v203 = vpack.c.b16 %v191, %v190
      %v204 = vpack.c.b16 %v193, %v192
      %v205 = vpack.c.b16 %v195, %v194
      %v206 = vpack.c.b16 %v197, %v196
      %v207 = vpack.c.b16 %v199, %v198
      %v212 = vunpack.c.l.b16 %v164
      %v213 = vunpack.c.h.b16 %v164
      %v214 = vunpack.c.l.b16 %v165
      %v215 = vunpack.c.h.b16 %v165
      %v216 = vunpack.c.l.b16 %v166
      %v217 = vunpack.c.h.b16 %v166
      %v218 = vunpack.c.l.b16 %v167
      %v219 = vunpack.c.h.b16 %v167
      %v220 = vpack.c.b16 %v214, %v212
      %v221 = vpack.c.b16 %v215, %v213
      %v222 = vpack.c.b16 %v218, %v216
      %v223 = vpack.c.b16 %v219, %v217
      %vm228 = vcmask 261120
      %v230 = vsel %vm228, %v200, 0
      %v233 = vsel %vm228, %v201, 0
      %v236 = vsel %vm228, %v202, 0
      %v239 = vsel %vm228, %v203, 0
      %v242 = vsel %vm228, %v204, 0
      %v245 = vsel %vm228, %v205, 0
      %v248 = vsel %vm228, %v206, 0
      %v251 = vsel %vm228, %v207, 0
      %253 = vmatprep.subr.bf16.mxu0 %v221
      %254 = vmatpush1.bf16.msra.mxu0 %v220
      %255 = vmatprep.subr.bf16.mxu0 %v223
      %256 = vmatpush1.bf16.msra.mxu0 %v222
      %257 = vmatprep.subr.bf16.mxu0 0
      %258 = vmatpush1.bf16.msra.mxu0 0
      %259 = vmatprep.subr.bf16.mxu0 0
      %260 = vmatpush1.bf16.msra.mxu0 0
      %261 = vmatprep.subr.bf16.mxu0 0
      %262 = vmatpush1.bf16.msra.mxu0 0
      %263 = vmatprep.subr.bf16.mxu0 0
      %264 = vmatpush1.bf16.msra.mxu0 0
      %265 = vmatprep.subr.bf16.mxu0 0
      %266 = vmatpush1.bf16.msra.mxu0 0
      %267 = vmatprep.subr.bf16.mxu0 0
      %268 = vmatpush1.bf16.msra.mxu0 0
      %269 = vmatprep.subr.bf16.mxu0 0
      %270 = vmatpush1.bf16.msra.mxu0 0
      %271 = vmatprep.subr.bf16.mxu0 0
      %272 = vmatpush1.bf16.msra.mxu0 0
      %273 = vmatprep.subr.bf16.mxu0 0
      %274 = vmatpush1.bf16.msra.mxu0 0
      %275 = vmatprep.subr.bf16.mxu0 0
      %276 = vmatpush1.bf16.msra.mxu0 0
      %277 = vmatprep.subr.bf16.mxu0 0
      %278 = vmatpush1.bf16.msra.mxu0 0
      %279 = vmatprep.subr.bf16.mxu0 0
      %280 = vmatpush1.bf16.msra.mxu0 0
      %281 = vmatprep.subr.bf16.mxu0 0
      %282 = vmatpush1.bf16.msra.mxu0 0
      %283 = vmatprep.subr.bf16.mxu0 0
      %284 = vmatpush1.bf16.msra.mxu0 0
      %285 = vmatprep.mubr.bf16.mxu0 0
      %286 = vmatmul.mubr.bf16.gmra.mrb[0].mxu0 %v230
      %v287 = vpop.f32.mrb[0].mxu0
      %v288 = vadd.f32 0.0, %v287
      %v289 = vpop.f32.mrb[0].mxu0
      %v290 = vadd.f32 0.0, %v289
      %v291 = vpop.f32.mrb[0].mxu0
      %v292 = vadd.f32 0.0, %v291
      %v293 = vpop.f32.mrb[0].mxu0
      %v294 = vadd.f32 0.0, %v293
      %295 = vmatprep.mubr.bf16.mxu0 0
      %296 = vmatmul.mubr.bf16.gmra.mrb[0].mxu0 %v233
      %v297 = vpop.f32.mrb[0].mxu0
      %v298 = vadd.f32 0.0, %v297
      %v299 = vpop.f32.mrb[0].mxu0
      %v300 = vadd.f32 0.0, %v299
      %v301 = vpop.f32.mrb[0].mxu0
      %v302 = vadd.f32 0.0, %v301
      %v303 = vpop.f32.mrb[0].mxu0
      %v304 = vadd.f32 0.0, %v303
      %305 = vmatprep.mubr.bf16.mxu0 0
      %306 = vmatmul.mubr.bf16.gmra.mrb[0].mxu0 %v236
      %v307 = vpop.f32.mrb[0].mxu0
      %v308 = vadd.f32 0.0, %v307
      %v309 = vpop.f32.mrb[0].mxu0
      %v310 = vadd.f32 0.0, %v309
      %v311 = vpop.f32.mrb[0].mxu0
      %v312 = vadd.f32 0.0, %v311
      %v313 = vpop.f32.mrb[0].mxu0
      %v314 = vadd.f32 0.0, %v313
      %315 = vmatprep.mubr.bf16.mxu0 0
      %316 = vmatmul.mubr.bf16.gmra.mrb[0].mxu0 %v239
      %v317 = vpop.f32.mrb[0].mxu0
      %v318 = vadd.f32 0.0, %v317
      %v319 = vpop.f32.mrb[0].mxu0
      %v320 = vadd.f32 0.0, %v319
      %v321 = vpop.f32.mrb[0].mxu0
      %v322 = vadd.f32 0.0, %v321
      %v323 = vpop.f32.mrb[0].mxu0
      %v324 = vadd.f32 0.0, %v323
      %325 = vmatprep.mubr.bf16.mxu0 0
      %326 = vmatmul.mubr.bf16.gmra.mrb[0].mxu0 %v242
      %v327 = vpop.f32.mrb[0].mxu0
      %v328 = vadd.f32 0.0, %v327
      %v329 = vpop.f32.mrb[0].mxu0
      %v330 = vadd.f32 0.0, %v329
      %v331 = vpop.f32.mrb[0].mxu0
      %v332 = vadd.f32 0.0, %v331
      %v333 = vpop.f32.mrb[0].mxu0
      %v334 = vadd.f32 0.0, %v333
      %335 = vmatprep.mubr.bf16.mxu0 0
      %336 = vmatmul.mubr.bf16.gmra.mrb[0].mxu0 %v245
      %v337 = vpop.f32.mrb[0].mxu0
      %v338 = vadd.f32 0.0, %v337
      %v339 = vpop.f32.mrb[0].mxu0
      %v340 = vadd.f32 0.0, %v339
      %v341 = vpop.f32.mrb[0].mxu0
      %v342 = vadd.f32 0.0, %v341
      %v343 = vpop.f32.mrb[0].mxu0
      %v344 = vadd.f32 0.0, %v343
      %345 = vmatprep.mubr.bf16.mxu0 0
      %346 = vmatmul.mubr.bf16.gmra.mrb[0].mxu0 %v248
      %v347 = vpop.f32.mrb[0].mxu0
      %v348 = vadd.f32 0.0, %v347
      %v349 = vpop.f32.mrb[0].mxu0
      %v350 = vadd.f32 0.0, %v349
      %v351 = vpop.f32.mrb[0].mxu0
      %v352 = vadd.f32 0.0, %v351
      %v353 = vpop.f32.mrb[0].mxu0
      %v354 = vadd.f32 0.0, %v353
      %355 = vmatprep.mubr.bf16.mxu0 0
      %356 = vmatmul.mubr.bf16.gmra.mrb[0].mxu0 %v251
      %v357 = vpop.f32.mrb[0].mxu0
      %v358 = vadd.f32 0.0, %v357
      %v359 = vpop.f32.mrb[0].mxu0
      %v360 = vadd.f32 0.0, %v359
      %v361 = vpop.f32.mrb[0].mxu0
      %v362 = vadd.f32 0.0, %v361
      %v363 = vpop.f32.mrb[0].mxu0
      %v364 = vadd.f32 0.0, %v363
      %365 = vdwg.mxu0
      %v366 = vmul.f32 %v288, %v290
      %v367 = vmul.f32 %v292, %v294
      %v368 = vmul.f32 %v298, %v300
      %v369 = vmul.f32 %v302, %v304
      %v370 = vmul.f32 %v308, %v310
      %v371 = vmul.f32 %v312, %v314
      %v372 = vmul.f32 %v318, %v320
      %v373 = vmul.f32 %v322, %v324
      %v374 = vmul.f32 %v328, %v330
      %v375 = vmul.f32 %v332, %v334
      %v376 = vmul.f32 %v338, %v340
      %v377 = vmul.f32 %v342, %v344
      %v378 = vmul.f32 %v348, %v350
      %v379 = vmul.f32 %v352, %v354
      %v380 = vmul.f32 %v358, %v360
      %v381 = vmul.f32 %v362, %v364
      %v382 = vlaneseq
      %v383 = vand.u32 %v382, 127
      %v384 = vand.u32 2147483647, %v288
      %vm385 = vcmp.le.f32.partialorder %v384, 0.7853982
      %vm386 = vcmp.lt.s32.totalorder %v288, 0
      %v387 = vand.u32 %v288, 2139095040
      %v388 = vshrl.u32 %v387, 23
      %v389 = vsub.s32 %v388, 127
      %v390 = vand.u32 2147483647, %v288
      %v391 = vand.u32 %v390, 8388607
      %v392 = vor.u32 %v391, 8388608
      %v393 = vsub.s32 0, %v392
      %v394 = vadd.s32 %v389, 1
      %vm395 = vcmp.gt.s32.totalorder %v394, 0
      %v396 = vsel %vm395, %v394, 0
      %v397 = vshrl.u32 %v396, 5
      %v398 = vand.u32 %v396, 31
      %v399 = vsub.s32 32, %v398
      %v400 = vshrl.u32 683565275, %v399
      %v401 = vshll.u32 683565275, %v398
      %v402 = vshrl.u32 2475754826, %v399
      %v403 = vor.u32 %v401, %v402
      %v404 = vshll.u32 2475754826, %v398
      %v405 = vshrl.u32 2131351028, %v399
      %v406 = vor.u32 %v404, %v405
      %v407 = vshll.u32 2131351028, %v398
      %v408 = vshrl.u32 2102212464, %v399
      %v409 = vor.u32 %v407, %v408
      %v410 = vshll.u32 2102212464, %v398
      %v411 = vshrl.u32 920167782, %v399
      %v412 = vor.u32 %v410, %v411
      %v413 = vshll.u32 920167782, %v398
      %v414 = vshrl.u32 1326507024, %v399
      %v415 = vor.u32 %v413, %v414
      %vm416 = vcmp.lt.s32.totalorder %v397, 1
      %vm417 = vcmp.lt.s32.totalorder %v397, 2
      %vm418 = vcmp.lt.s32.totalorder %v397, 3
      %vm419 = vcmp.lt.s32.totalorder %v397, 4
      %v420 = vsel %vm416, %v400, %v403
      %v421 = vsel %vm419, %v409, 2102212464
      %v422 = vsel %vm418, %v406, %v421
      %v423 = vsel %vm417, %v420, %v422
      %v424 = vsel %vm416, %v403, %v406
      %v425 = vsel %vm419, %v412, 920167782
      %v426 = vsel %vm418, %v409, %v425
      %v427 = vsel %vm417, %v424, %v426
      %v428 = vsel %vm416, %v406, %v409
      %v429 = vsel %vm419, %v415, 1326507024
      %v430 = vsel %vm418, %v412, %v429
      %v431 = vsel %vm417, %v428, %v430
      %v432 = vshll.u32 %v392, 8
      %v433 = vmul.u32.u64.compose %v432, %v431
      %v434 = vextract.low.u32 %v433
      %v435 = vextract.high.u32 %v433
      %v436 = vmul.u32.u64.compose %v432, %v427
      %v437 = vextract.low.u32 %v436
      %v438 = vextract.high.u32 %v436
      %v439 = vmul.u32 %v432, %v423
      %v440 = vadd.s32 %v435, %v437
      %vm441 = vc.u32 %v435, %v437
      %v442 = vadd.s32 %v438, 1
      %v443 = vsel %vm441, %v442, %v438
      %v444 = vadd.s32 %v439, %v443
      %v445 = vadd.s32 %v444, 536870912
      %v446 = vshrl.u32 %v445, 30
      %v447 = vshll.u32 %v446, 30
      %v448 = vsub.s32 %v444, %v447
      %vm449 = vcmp.lt.s32.totalorder %v448, 0
      %v450 = vsub.s32 0, %v448
      %v451 = vsel %vm449, %v450, %v448
      %v452 = vclz %v451
      %v453 = vsub.s32 %v452, 2
      %vm454 = vcmp.gt.s32.totalorder 0, %v453
      %v455 = vsel %vm454, 0, %v453
      %v456 = vsub.s32 32, %v455
      %v457 = vshll.u32 %v448, %v455
      %v458 = vshrl.u32 %v440, %v456
      %v459 = vor.u32 %v457, %v458
      %v460 = vsub.s32 4294967266, %v455
      %v461 = vadd.s32 %v460, 127
      %v462 = vshll.u32 %v461, 23
      %v463 = vor.u32 4788187, %v462
      %v464 = vand.u32 2147483647, %v463
      %v466 = vcvt.s32.f32 %v459
      %v467 = vmul.f32 %v466, %v464
      %v468 = vxor.u32 %v467, 2147483648
      %v469 = vsel %vm386, %v468, %v467
      %v470 = vsub.s32 4, %v446
      %v471 = vsel %vm386, %v470, %v446
      %v472 = vsel %vm385, %v288, %v469
      %v473 = vsel %vm385, 0, %v471
      %v474 = vcosq.f32.pop %v472
      %v475 = vsinq.f32.pop %v472
      %vm476 = vweird.f32 %v288
      %v477 = vadd.s32 %v473, 3
      %v478 = vand.u32 %v477, 3
      %vm479 = vcmp.lt.s32.totalorder %v478, 2
      %vm480 = vcmp.eq.s32.totalorder %v478, 0
      %v481 = vxor.u32 %v475, 2147483648
      %v482 = vsel %vm480, %v474, %v481
      %vm483 = vcmp.eq.s32.totalorder %v478, 2
      %v484 = vxor.u32 %v474, 2147483648
      %v485 = vsel %vm483, %v484, %v475
      %v486 = vsel %vm479, %v482, %v485
      %v487 = vsel %vm476, nan, %v486
      %v488 = vand.u32 2147483647, %v292
      %vm489 = vcmp.le.f32.partialorder %v488, 0.7853982
      %vm490 = vcmp.lt.s32.totalorder %v292, 0
      %v491 = vand.u32 %v292, 2139095040
      %v492 = vshrl.u32 %v491, 23
      %v493 = vsub.s32 %v492, 127
      %v494 = vand.u32 2147483647, %v292
      %v495 = vand.u32 %v494, 8388607
      %v496 = vor.u32 %v495, 8388608
      %v497 = vsub.s32 0, %v496
      %v498 = vadd.s32 %v493, 1
      %vm499 = vcmp.gt.s32.totalorder %v498, 0
      %v500 = vsel %vm499, %v498, 0
      %v501 = vshrl.u32 %v500, 5
      %v502 = vand.u32 %v500, 31
      %v503 = vsub.s32 32, %v502
      %v504 = vshrl.u32 683565275, %v503
      %v505 = vshll.u32 683565275, %v502
      %v506 = vshrl.u32 2475754826, %v503
      %v507 = vor.u32 %v505, %v506
      %v508 = vshll.u32 2475754826, %v502
      %v509 = vshrl.u32 2131351028, %v503
      %v510 = vor.u32 %v508, %v509
      %v511 = vshll.u32 2131351028, %v502
      %v512 = vshrl.u32 2102212464, %v503
      %v513 = vor.u32 %v511, %v512
      %v514 = vshll.u32 2102212464, %v502
      %v515 = vshrl.u32 920167782, %v503
      %v516 = vor.u32 %v514, %v515
      %v517 = vshll.u32 920167782, %v502
      %v518 = vshrl.u32 1326507024, %v503
      %v519 = vor.u32 %v517, %v518
      %vm520 = vcmp.lt.s32.totalorder %v501, 1
      %vm521 = vcmp.lt.s32.totalorder %v501, 2
      %vm522 = vcmp.lt.s32.totalorder %v501, 3
      %vm523 = vcmp.lt.s32.totalorder %v501, 4
      %v524 = vsel %vm520, %v504, %v507
      %v525 = vsel %vm523, %v513, 2102212464
      %v526 = vsel %vm522, %v510, %v525
      %v527 = vsel %vm521, %v524, %v526
      %v528 = vsel %vm520, %v507, %v510
      %v529 = vsel %vm523, %v516, 920167782
      %v530 = vsel %vm522, %v513, %v529
      %v531 = vsel %vm521, %v528, %v530
      %v532 = vsel %vm520, %v510, %v513
      %v533 = vsel %vm523, %v519, 1326507024
      %v534 = vsel %vm522, %v516, %v533
      %v535 = vsel %vm521, %v532, %v534
      %v536 = vshll.u32 %v496, 8
      %v537 = vmul.u32.u64.compose %v536, %v535
      %v538 = vextract.low.u32 %v537
      %v539 = vextract.high.u32 %v537
      %v540 = vmul.u32.u64.compose %v536, %v531
      %v541 = vextract.low.u32 %v540
      %v542 = vextract.high.u32 %v540
      %v543 = vmul.u32 %v536, %v527
      %v544 = vadd.s32 %v539, %v541
      %vm545 = vc.u32 %v539, %v541
      %v546 = vadd.s32 %v542, 1
      %v547 = vsel %vm545, %v546, %v542
      %v548 = vadd.s32 %v543, %v547
      %v549 = vadd.s32 %v548, 536870912
      %v550 = vshrl.u32 %v549, 30
      %v551 = vshll.u32 %v550, 30
      %v552 = vsub.s32 %v548, %v551
      %vm553 = vcmp.lt.s32.totalorder %v552, 0
      %v554 = vsub.s32 0, %v552
      %v555 = vsel %vm553, %v554, %v552
      %v556 = vclz %v555
      %v557 = vsub.s32 %v556, 2
      %vm558 = vcmp.gt.s32.totalorder 0, %v557
      %v559 = vsel %vm558, 0, %v557
      %v560 = vsub.s32 32, %v559
      %v561 = vshll.u32 %v552, %v559
      %v562 = vshrl.u32 %v544, %v560
      %v563 = vor.u32 %v561, %v562
      %v564 = vsub.s32 4294967266, %v559
      %v565 = vadd.s32 %v564, 127
      %v566 = vshll.u32 %v565, 23
      %v567 = vor.u32 4788187, %v566
      %v568 = vand.u32 2147483647, %v567
      %v570 = vcvt.s32.f32 %v563
      %v571 = vmul.f32 %v570, %v568
      %v572 = vxor.u32 %v571, 2147483648
      %v573 = vsel %vm490, %v572, %v571
      %v574 = vsub.s32 4, %v550
      %v575 = vsel %vm490, %v574, %v550
      %v576 = vsel %vm489, %v292, %v573
      %v577 = vsel %vm489, 0, %v575
      %v578 = vcosq.f32.pop %v576
      %v579 = vsinq.f32.pop %v576
      %vm580 = vweird.f32 %v292
      %v581 = vadd.s32 %v577, 3
      %v582 = vand.u32 %v581, 3
      %vm583 = vcmp.lt.s32.totalorder %v582, 2
      %vm584 = vcmp.eq.s32.totalorder %v582, 0
      %v585 = vxor.u32 %v579, 2147483648
      %v586 = vsel %vm584, %v578, %v585
      %vm587 = vcmp.eq.s32.totalorder %v582, 2
      %v588 = vxor.u32 %v578, 2147483648
      %v589 = vsel %vm587, %v588, %v579
      %v590 = vsel %vm583, %v586, %v589
      %v591 = vsel %vm580, nan, %v590
      %v592 = vand.u32 2147483647, %v298
      %vm593 = vcmp.le.f32.partialorder %v592, 0.7853982
      %vm594 = vcmp.lt.s32.totalorder %v298, 0
      %v595 = vand.u32 %v298, 2139095040
      %v596 = vshrl.u32 %v595, 23
      %v597 = vsub.s32 %v596, 127
      %v598 = vand.u32 2147483647, %v298
      %v599 = vand.u32 %v598, 8388607
      %v600 = vor.u32 %v599, 8388608
      %v601 = vsub.s32 0, %v600
      %v602 = vadd.s32 %v597, 1
      %vm603 = vcmp.gt.s32.totalorder %v602, 0
      %v604 = vsel %vm603, %v602, 0
      %v605 = vshrl.u32 %v604, 5
      %v606 = vand.u32 %v604, 31
      %v607 = vsub.s32 32, %v606
      %v608 = vshrl.u32 683565275, %v607
      %v609 = vshll.u32 683565275, %v606
      %v610 = vshrl.u32 2475754826, %v607
      %v611 = vor.u32 %v609, %v610
      %v612 = vshll.u32 2475754826, %v606
      %v613 = vshrl.u32 2131351028, %v607
      %v614 = vor.u32 %v612, %v613
      %v615 = vshll.u32 2131351028, %v606
      %v616 = vshrl.u32 2102212464, %v607
      %v617 = vor.u32 %v615, %v616
      %v618 = vshll.u32 2102212464, %v606
      %v619 = vshrl.u32 920167782, %v607
      %v620 = vor.u32 %v618, %v619
      %v621 = vshll.u32 920167782, %v606
      %v622 = vshrl.u32 1326507024, %v607
      %v623 = vor.u32 %v621, %v622
      %vm624 = vcmp.lt.s32.totalorder %v605, 1
      %vm625 = vcmp.lt.s32.totalorder %v605, 2
      %vm626 = vcmp.lt.s32.totalorder %v605, 3
      %vm627 = vcmp.lt.s32.totalorder %v605, 4
      %v628 = vsel %vm624, %v608, %v611
      %v629 = vsel %vm627, %v617, 2102212464
      %v630 = vsel %vm626, %v614, %v629
      %v631 = vsel %vm625, %v628, %v630
      %v632 = vsel %vm624, %v611, %v614
      %v633 = vsel %vm627, %v620, 920167782
      %v634 = vsel %vm626, %v617, %v633
      %v635 = vsel %vm625, %v632, %v634
      %v636 = vsel %vm624, %v614, %v617
      %v637 = vsel %vm627, %v623, 1326507024
      %v638 = vsel %vm626, %v620, %v637
      %v639 = vsel %vm625, %v636, %v638
      %v640 = vshll.u32 %v600, 8
      %v641 = vmul.u32.u64.compose %v640, %v639
      %v642 = vextract.low.u32 %v641
      %v643 = vextract.high.u32 %v641
      %v644 = vmul.u32.u64.compose %v640, %v635
      %v645 = vextract.low.u32 %v644
      %v646 = vextract.high.u32 %v644
      %v647 = vmul.u32 %v640, %v631
      %v648 = vadd.s32 %v643, %v645
      %vm649 = vc.u32 %v643, %v645
      %v650 = vadd.s32 %v646, 1
      %v651 = vsel %vm649, %v650, %v646
      %v652 = vadd.s32 %v647, %v651
      %v653 = vadd.s32 %v652, 536870912
      %v654 = vshrl.u32 %v653, 30
      %v655 = vshll.u32 %v654, 30
      %v656 = vsub.s32 %v652, %v655
      %vm657 = vcmp.lt.s32.totalorder %v656, 0
      %v658 = vsub.s32 0, %v656
      %v659 = vsel %vm657, %v658, %v656
      %v660 = vclz %v659
      %v661 = vsub.s32 %v660, 2
      %vm662 = vcmp.gt.s32.totalorder 0, %v661
      %v663 = vsel %vm662, 0, %v661
      %v664 = vsub.s32 32, %v663
      %v665 = vshll.u32 %v656, %v663
      %v666 = vshrl.u32 %v648, %v664
      %v667 = vor.u32 %v665, %v666
      %v668 = vsub.s32 4294967266, %v663
      %v669 = vadd.s32 %v668, 127
      %v670 = vshll.u32 %v669, 23
      %v671 = vor.u32 4788187, %v670
      %v672 = vand.u32 2147483647, %v671
      %v674 = vcvt.s32.f32 %v667
      %v675 = vmul.f32 %v674, %v672
      %v676 = vxor.u32 %v675, 2147483648
      %v677 = vsel %vm594, %v676, %v675
      %v678 = vsub.s32 4, %v654
      %v679 = vsel %vm594, %v678, %v654
      %v680 = vsel %vm593, %v298, %v677
      %v681 = vsel %vm593, 0, %v679
      %v682 = vcosq.f32.pop %v680
      %v683 = vsinq.f32.pop %v680
      %vm684 = vweird.f32 %v298
      %v685 = vadd.s32 %v681, 3
      %v686 = vand.u32 %v685, 3
      %vm687 = vcmp.lt.s32.totalorder %v686, 2
      %vm688 = vcmp.eq.s32.totalorder %v686, 0
      %v689 = vxor.u32 %v683, 2147483648
      %v690 = vsel %vm688, %v682, %v689
      %vm691 = vcmp.eq.s32.totalorder %v686, 2
      %v692 = vxor.u32 %v682, 2147483648
      %v693 = vsel %vm691, %v692, %v683
      %v694 = vsel %vm687, %v690, %v693
      %v695 = vsel %vm684, nan, %v694
      %v696 = vand.u32 2147483647, %v302
      %vm697 = vcmp.le.f32.partialorder %v696, 0.7853982
      %vm698 = vcmp.lt.s32.totalorder %v302, 0
      %v699 = vand.u32 %v302, 2139095040
      %v700 = vshrl.u32 %v699, 23
      %v701 = vsub.s32 %v700, 127
      %v702 = vand.u32 2147483647, %v302
      %v703 = vand.u32 %v702, 8388607
      %v704 = vor.u32 %v703, 8388608
      %v705 = vsub.s32 0, %v704
      %v706 = vadd.s32 %v701, 1
      %vm707 = vcmp.gt.s32.totalorder %v706, 0
      %v708 = vsel %vm707, %v706, 0
      %v709 = vshrl.u32 %v708, 5
      %v710 = vand.u32 %v708, 31
      %v711 = vsub.s32 32, %v710
      %v712 = vshrl.u32 683565275, %v711
      %v713 = vshll.u32 683565275, %v710
      %v714 = vshrl.u32 2475754826, %v711
      %v715 = vor.u32 %v713, %v714
      %v716 = vshll.u32 2475754826, %v710
      %v717 = vshrl.u32 2131351028, %v711
      %v718 = vor.u32 %v716, %v717
      %v719 = vshll.u32 2131351028, %v710
      %v720 = vshrl.u32 2102212464, %v711
      %v721 = vor.u32 %v719, %v720
      %v722 = vshll.u32 2102212464, %v710
      %v723 = vshrl.u32 920167782, %v711
      %v724 = vor.u32 %v722, %v723
      %v725 = vshll.u32 920167782, %v710
      %v726 = vshrl.u32 1326507024, %v711
      %v727 = vor.u32 %v725, %v726
      %vm728 = vcmp.lt.s32.totalorder %v709, 1
      %vm729 = vcmp.lt.s32.totalorder %v709, 2
      %vm730 = vcmp.lt.s32.totalorder %v709, 3
      %vm731 = vcmp.lt.s32.totalorder %v709, 4
      %v732 = vsel %vm728, %v712, %v715
      %v733 = vsel %vm731, %v721, 2102212464
      %v734 = vsel %vm730, %v718, %v733
      %v735 = vsel %vm729, %v732, %v734
      %v736 = vsel %vm728, %v715, %v718
      %v737 = vsel %vm731, %v724, 920167782
      %v738 = vsel %vm730, %v721, %v737
      %v739 = vsel %vm729, %v736, %v738
      %v740 = vsel %vm728, %v718, %v721
      %v741 = vsel %vm731, %v727, 1326507024
      %v742 = vsel %vm730, %v724, %v741
      %v743 = vsel %vm729, %v740, %v742
      %v744 = vshll.u32 %v704, 8
      %v745 = vmul.u32.u64.compose %v744, %v743
      %v746 = vextract.low.u32 %v745
      %v747 = vextract.high.u32 %v745
      %v748 = vmul.u32.u64.compose %v744, %v739
      %v749 = vextract.low.u32 %v748
      %v750 = vextract.high.u32 %v748
      %v751 = vmul.u32 %v744, %v735
      %v752 = vadd.s32 %v747, %v749
      %vm753 = vc.u32 %v747, %v749
      %v754 = vadd.s32 %v750, 1
      %v755 = vsel %vm753, %v754, %v750
      %v756 = vadd.s32 %v751, %v755
      %v757 = vadd.s32 %v756, 536870912
      %v758 = vshrl.u32 %v757, 30
      %v759 = vshll.u32 %v758, 30
      %v760 = vsub.s32 %v756, %v759
      %vm761 = vcmp.lt.s32.totalorder %v760, 0
      %v762 = vsub.s32 0, %v760
      %v763 = vsel %vm761, %v762, %v760
      %v764 = vclz %v763
      %v765 = vsub.s32 %v764, 2
      %vm766 = vcmp.gt.s32.totalorder 0, %v765
      %v767 = vsel %vm766, 0, %v765
      %v768 = vsub.s32 32, %v767
      %v769 = vshll.u32 %v760, %v767
      %v770 = vshrl.u32 %v752, %v768
      %v771 = vor.u32 %v769, %v770
      %v772 = vsub.s32 4294967266, %v767
      %v773 = vadd.s32 %v772, 127
      %v774 = vshll.u32 %v773, 23
      %v775 = vor.u32 4788187, %v774
      %v776 = vand.u32 2147483647, %v775
      %v778 = vcvt.s32.f32 %v771
      %v779 = vmul.f32 %v778, %v776
      %v780 = vxor.u32 %v779, 2147483648
      %v781 = vsel %vm698, %v780, %v779
      %v782 = vsub.s32 4, %v758
      %v783 = vsel %vm698, %v782, %v758
      %v784 = vsel %vm697, %v302, %v781
      %v785 = vsel %vm697, 0, %v783
      %v786 = vcosq.f32.pop %v784
      %v787 = vsinq.f32.pop %v784
      %vm788 = vweird.f32 %v302
      %v789 = vadd.s32 %v785, 3
      %v790 = vand.u32 %v789, 3
      %vm791 = vcmp.lt.s32.totalorder %v790, 2
      %vm792 = vcmp.eq.s32.totalorder %v790, 0
      %v793 = vxor.u32 %v787, 2147483648
      %v794 = vsel %vm792, %v786, %v793
      %vm795 = vcmp.eq.s32.totalorder %v790, 2
      %v796 = vxor.u32 %v786, 2147483648
      %v797 = vsel %vm795, %v796, %v787
      %v798 = vsel %vm791, %v794, %v797
      %v799 = vsel %vm788, nan, %v798
      %v800 = vand.u32 2147483647, %v308
      %vm801 = vcmp.le.f32.partialorder %v800, 0.7853982
      %vm802 = vcmp.lt.s32.totalorder %v308, 0
      %v803 = vand.u32 %v308, 2139095040
      %v804 = vshrl.u32 %v803, 23
      %v805 = vsub.s32 %v804, 127
      %v806 = vand.u32 2147483647, %v308
      %v807 = vand.u32 %v806, 8388607
      %v808 = vor.u32 %v807, 8388608
      %v809 = vsub.s32 0, %v808
      %v810 = vadd.s32 %v805, 1
      %vm811 = vcmp.gt.s32.totalorder %v810, 0
      %v812 = vsel %vm811, %v810, 0
      %v813 = vshrl.u32 %v812, 5
      %v814 = vand.u32 %v812, 31
      %v815 = vsub.s32 32, %v814
      %v816 = vshrl.u32 683565275, %v815
      %v817 = vshll.u32 683565275, %v814
      %v818 = vshrl.u32 2475754826, %v815
      %v819 = vor.u32 %v817, %v818
      %v820 = vshll.u32 2475754826, %v814
      %v821 = vshrl.u32 2131351028, %v815
      %v822 = vor.u32 %v820, %v821
      %v823 = vshll.u32 2131351028, %v814
      %v824 = vshrl.u32 2102212464, %v815
      %v825 = vor.u32 %v823, %v824
      %v826 = vshll.u32 2102212464, %v814
      %v827 = vshrl.u32 920167782, %v815
      %v828 = vor.u32 %v826, %v827
      %v829 = vshll.u32 920167782, %v814
      %v830 = vshrl.u32 1326507024, %v815
      %v831 = vor.u32 %v829, %v830
      %vm832 = vcmp.lt.s32.totalorder %v813, 1
      %vm833 = vcmp.lt.s32.totalorder %v813, 2
      %vm834 = vcmp.lt.s32.totalorder %v813, 3
      %vm835 = vcmp.lt.s32.totalorder %v813, 4
      %v836 = vsel %vm832, %v816, %v819
      %v837 = vsel %vm835, %v825, 2102212464
      %v838 = vsel %vm834, %v822, %v837
      %v839 = vsel %vm833, %v836, %v838
      %v840 = vsel %vm832, %v819, %v822
      %v841 = vsel %vm835, %v828, 920167782
      %v842 = vsel %vm834, %v825, %v841
      %v843 = vsel %vm833, %v840, %v842
      %v844 = vsel %vm832, %v822, %v825
      %v845 = vsel %vm835, %v831, 1326507024
      %v846 = vsel %vm834, %v828, %v845
      %v847 = vsel %vm833, %v844, %v846
      %v848 = vshll.u32 %v808, 8
      %v849 = vmul.u32.u64.compose %v848, %v847
      %v850 = vextract.low.u32 %v849
      %v851 = vextract.high.u32 %v849
      %v852 = vmul.u32.u64.compose %v848, %v843
      %v853 = vextract.low.u32 %v852
      %v854 = vextract.high.u32 %v852
      %v855 = vmul.u32 %v848, %v839
      %v856 = vadd.s32 %v851, %v853
      %vm857 = vc.u32 %v851, %v853
      %v858 = vadd.s32 %v854, 1
      %v859 = vsel %vm857, %v858, %v854
      %v860 = vadd.s32 %v855, %v859
      %v861 = vadd.s32 %v860, 536870912
      %v862 = vshrl.u32 %v861, 30
      %v863 = vshll.u32 %v862, 30
      %v864 = vsub.s32 %v860, %v863
      %vm865 = vcmp.lt.s32.totalorder %v864, 0
      %v866 = vsub.s32 0, %v864
      %v867 = vsel %vm865, %v866, %v864
      %v868 = vclz %v867
      %v869 = vsub.s32 %v868, 2
      %vm870 = vcmp.gt.s32.totalorder 0, %v869
      %v871 = vsel %vm870, 0, %v869
      %v872 = vsub.s32 32, %v871
      %v873 = vshll.u32 %v864, %v871
      %v874 = vshrl.u32 %v856, %v872
      %v875 = vor.u32 %v873, %v874
      %v876 = vsub.s32 4294967266, %v871
      %v877 = vadd.s32 %v876, 127
      %v878 = vshll.u32 %v877, 23
      %v879 = vor.u32 4788187, %v878
      %v880 = vand.u32 2147483647, %v879
      %v882 = vcvt.s32.f32 %v875
      %v883 = vmul.f32 %v882, %v880
      %v884 = vxor.u32 %v883, 2147483648
      %v885 = vsel %vm802, %v884, %v883
      %v886 = vsub.s32 4, %v862
      %v887 = vsel %vm802, %v886, %v862
      %v888 = vsel %vm801, %v308, %v885
      %v889 = vsel %vm801, 0, %v887
      %v890 = vcosq.f32.pop %v888
      %v891 = vsinq.f32.pop %v888
      %vm892 = vweird.f32 %v308
      %v893 = vadd.s32 %v889, 3
      %v894 = vand.u32 %v893, 3
      %vm895 = vcmp.lt.s32.totalorder %v894, 2
      %vm896 = vcmp.eq.s32.totalorder %v894, 0
      %v897 = vxor.u32 %v891, 2147483648
      %v898 = vsel %vm896, %v890, %v897
      %vm899 = vcmp.eq.s32.totalorder %v894, 2
      %v900 = vxor.u32 %v890, 2147483648
      %v901 = vsel %vm899, %v900, %v891
      %v902 = vsel %vm895, %v898, %v901
      %v903 = vsel %vm892, nan, %v902
      %v904 = vand.u32 2147483647, %v312
      %vm905 = vcmp.le.f32.partialorder %v904, 0.7853982
      %vm906 = vcmp.lt.s32.totalorder %v312, 0
      %v907 = vand.u32 %v312, 2139095040
      %v908 = vshrl.u32 %v907, 23
      %v909 = vsub.s32 %v908, 127
      %v910 = vand.u32 2147483647, %v312
      %v911 = vand.u32 %v910, 8388607
      %v912 = vor.u32 %v911, 8388608
      %v913 = vsub.s32 0, %v912
      %v914 = vadd.s32 %v909, 1
      %vm915 = vcmp.gt.s32.totalorder %v914, 0
      %v916 = vsel %vm915, %v914, 0
      %v917 = vshrl.u32 %v916, 5
      %v918 = vand.u32 %v916, 31
      %v919 = vsub.s32 32, %v918
      %v920 = vshrl.u32 683565275, %v919
      %v921 = vshll.u32 683565275, %v918
      %v922 = vshrl.u32 2475754826, %v919
      %v923 = vor.u32 %v921, %v922
      %v924 = vshll.u32 2475754826, %v918
      %v925 = vshrl.u32 2131351028, %v919
      %v926 = vor.u32 %v924, %v925
      %v927 = vshll.u32 2131351028, %v918
      %v928 = vshrl.u32 2102212464, %v919
      %v929 = vor.u32 %v927, %v928
      %v930 = vshll.u32 2102212464, %v918
      %v931 = vshrl.u32 920167782, %v919
      %v932 = vor.u32 %v930, %v931
      %v933 = vshll.u32 920167782, %v918
      %v934 = vshrl.u32 1326507024, %v919
      %v935 = vor.u32 %v933, %v934
      %vm936 = vcmp.lt.s32.totalorder %v917, 1
      %vm937 = vcmp.lt.s32.totalorder %v917, 2
      %vm938 = vcmp.lt.s32.totalorder %v917, 3
      %vm939 = vcmp.lt.s32.totalorder %v917, 4
      %v940 = vsel %vm936, %v920, %v923
      %v941 = vsel %vm939, %v929, 2102212464
      %v942 = vsel %vm938, %v926, %v941
      %v943 = vsel %vm937, %v940, %v942
      %v944 = vsel %vm936, %v923, %v926
      %v945 = vsel %vm939, %v932, 920167782
      %v946 = vsel %vm938, %v929, %v945
      %v947 = vsel %vm937, %v944, %v946
      %v948 = vsel %vm936, %v926, %v929
      %v949 = vsel %vm939, %v935, 1326507024
      %v950 = vsel %vm938, %v932, %v949
      %v951 = vsel %vm937, %v948, %v950
      %v952 = vshll.u32 %v912, 8
      %v953 = vmul.u32.u64.compose %v952, %v951
      %v954 = vextract.low.u32 %v953
      %v955 = vextract.high.u32 %v953
      %v956 = vmul.u32.u64.compose %v952, %v947
      %v957 = vextract.low.u32 %v956
      %v958 = vextract.high.u32 %v956
      %v959 = vmul.u32 %v952, %v943
      %v960 = vadd.s32 %v955, %v957
      %vm961 = vc.u32 %v955, %v957
      %v962 = vadd.s32 %v958, 1
      %v963 = vsel %vm961, %v962, %v958
      %v964 = vadd.s32 %v959, %v963
      %v965 = vadd.s32 %v964, 536870912
      %v966 = vshrl.u32 %v965, 30
      %v967 = vshll.u32 %v966, 30
      %v968 = vsub.s32 %v964, %v967
      %vm969 = vcmp.lt.s32.totalorder %v968, 0
      %v970 = vsub.s32 0, %v968
      %v971 = vsel %vm969, %v970, %v968
      %v972 = vclz %v971
      %v973 = vsub.s32 %v972, 2
      %vm974 = vcmp.gt.s32.totalorder 0, %v973
      %v975 = vsel %vm974, 0, %v973
      %v976 = vsub.s32 32, %v975
      %v977 = vshll.u32 %v968, %v975
      %v978 = vshrl.u32 %v960, %v976
      %v979 = vor.u32 %v977, %v978
      %v980 = vsub.s32 4294967266, %v975
      %v981 = vadd.s32 %v980, 127
      %v982 = vshll.u32 %v981, 23
      %v983 = vor.u32 4788187, %v982
      %v984 = vand.u32 2147483647, %v983
      %v986 = vcvt.s32.f32 %v979
      %v987 = vmul.f32 %v986, %v984
      %v988 = vxor.u32 %v987, 2147483648
      %v989 = vsel %vm906, %v988, %v987
      %v990 = vsub.s32 4, %v966
      %v991 = vsel %vm906, %v990, %v966
      %v992 = vsel %vm905, %v312, %v989
      %v993 = vsel %vm905, 0, %v991
      %v994 = vcosq.f32.pop %v992
      %v995 = vsinq.f32.pop %v992
      %vm996 = vweird.f32 %v312
      %v997 = vadd.s32 %v993, 3
      %v998 = vand.u32 %v997, 3
      %vm999 = vcmp.lt.s32.totalorder %v998, 2
      %vm1000 = vcmp.eq.s32.totalorder %v998, 0
      %v1001 = vxor.u32 %v995, 2147483648
      %v1002 = vsel %vm1000, %v994, %v1001
      %vm1003 = vcmp.eq.s32.totalorder %v998, 2
      %v1004 = vxor.u32 %v994, 2147483648
      %v1005 = vsel %vm1003, %v1004, %v995
      %v1006 = vsel %vm999, %v1002, %v1005
      %v1007 = vsel %vm996, nan, %v1006
      %v1008 = vand.u32 2147483647, %v318
      %vm1009 = vcmp.le.f32.partialorder %v1008, 0.7853982
      %vm1010 = vcmp.lt.s32.totalorder %v318, 0
      %v1011 = vand.u32 %v318, 2139095040
      %v1012 = vshrl.u32 %v1011, 23
      %v1013 = vsub.s32 %v1012, 127
      %v1014 = vand.u32 2147483647, %v318
      %v1015 = vand.u32 %v1014, 8388607
      %v1016 = vor.u32 %v1015, 8388608
      %v1017 = vsub.s32 0, %v1016
      %v1018 = vadd.s32 %v1013, 1
      %vm1019 = vcmp.gt.s32.totalorder %v1018, 0
      %v1020 = vsel %vm1019, %v1018, 0
      %v1021 = vshrl.u32 %v1020, 5
      %v1022 = vand.u32 %v1020, 31
      %v1023 = vsub.s32 32, %v1022
      %v1024 = vshrl.u32 683565275, %v1023
      %v1025 = vshll.u32 683565275, %v1022
      %v1026 = vshrl.u32 2475754826, %v1023
      %v1027 = vor.u32 %v1025, %v1026
      %v1028 = vshll.u32 2475754826, %v1022
      %v1029 = vshrl.u32 2131351028, %v1023
      %v1030 = vor.u32 %v1028, %v1029
      %v1031 = vshll.u32 2131351028, %v1022
      %v1032 = vshrl.u32 2102212464, %v1023
      %v1033 = vor.u32 %v1031, %v1032
      %v1034 = vshll.u32 2102212464, %v1022
      %v1035 = vshrl.u32 920167782, %v1023
      %v1036 = vor.u32 %v1034, %v1035
      %v1037 = vshll.u32 920167782, %v1022
      %v1038 = vshrl.u32 1326507024, %v1023
      %v1039 = vor.u32 %v1037, %v1038
      %vm1040 = vcmp.lt.s32.totalorder %v1021, 1
      %vm1041 = vcmp.lt.s32.totalorder %v1021, 2
      %vm1042 = vcmp.lt.s32.totalorder %v1021, 3
      %vm1043 = vcmp.lt.s32.totalorder %v1021, 4
      %v1044 = vsel %vm1040, %v1024, %v1027
      %v1045 = vsel %vm1043, %v1033, 2102212464
      %v1046 = vsel %vm1042, %v1030, %v1045
      %v1047 = vsel %vm1041, %v1044, %v1046
      %v1048 = vsel %vm1040, %v1027, %v1030
      %v1049 = vsel %vm1043, %v1036, 920167782
      %v1050 = vsel %vm1042, %v1033, %v1049
      %v1051 = vsel %vm1041, %v1048, %v1050
      %v1052 = vsel %vm1040, %v1030, %v1033
      %v1053 = vsel %vm1043, %v1039, 1326507024
      %v1054 = vsel %vm1042, %v1036, %v1053
      %v1055 = vsel %vm1041, %v1052, %v1054
      %v1056 = vshll.u32 %v1016, 8
      %v1057 = vmul.u32.u64.compose %v1056, %v1055
      %v1058 = vextract.low.u32 %v1057
      %v1059 = vextract.high.u32 %v1057
      %v1060 = vmul.u32.u64.compose %v1056, %v1051
      %v1061 = vextract.low.u32 %v1060
      %v1062 = vextract.high.u32 %v1060
      %v1063 = vmul.u32 %v1056, %v1047
      %v1064 = vadd.s32 %v1059, %v1061
      %vm1065 = vc.u32 %v1059, %v1061
      %v1066 = vadd.s32 %v1062, 1
      %v1067 = vsel %vm1065, %v1066, %v1062
      %v1068 = vadd.s32 %v1063, %v1067
      %v1069 = vadd.s32 %v1068, 536870912
      %v1070 = vshrl.u32 %v1069, 30
      %v1071 = vshll.u32 %v1070, 30
      %v1072 = vsub.s32 %v1068, %v1071
      %vm1073 = vcmp.lt.s32.totalorder %v1072, 0
      %v1074 = vsub.s32 0, %v1072
      %v1075 = vsel %vm1073, %v1074, %v1072
      %v1076 = vclz %v1075
      %v1077 = vsub.s32 %v1076, 2
      %vm1078 = vcmp.gt.s32.totalorder 0, %v1077
      %v1079 = vsel %vm1078, 0, %v1077
      %v1080 = vsub.s32 32, %v1079
      %v1081 = vshll.u32 %v1072, %v1079
      %v1082 = vshrl.u32 %v1064, %v1080
      %v1083 = vor.u32 %v1081, %v1082
      %v1084 = vsub.s32 4294967266, %v1079
      %v1085 = vadd.s32 %v1084, 127
      %v1086 = vshll.u32 %v1085, 23
      %v1087 = vor.u32 4788187, %v1086
      %v1088 = vand.u32 2147483647, %v1087
      %v1090 = vcvt.s32.f32 %v1083
      %v1091 = vmul.f32 %v1090, %v1088
      %v1092 = vxor.u32 %v1091, 2147483648
      %v1093 = vsel %vm1010, %v1092, %v1091
      %v1094 = vsub.s32 4, %v1070
      %v1095 = vsel %vm1010, %v1094, %v1070
      %v1096 = vsel %vm1009, %v318, %v1093
      %v1097 = vsel %vm1009, 0, %v1095
      %v1098 = vcosq.f32.pop %v1096
      %v1099 = vsinq.f32.pop %v1096
      %vm1100 = vweird.f32 %v318
      %v1101 = vadd.s32 %v1097, 3
      %v1102 = vand.u32 %v1101, 3
      %vm1103 = vcmp.lt.s32.totalorder %v1102, 2
      %vm1104 = vcmp.eq.s32.totalorder %v1102, 0
      %v1105 = vxor.u32 %v1099, 2147483648
      %v1106 = vsel %vm1104, %v1098, %v1105
      %vm1107 = vcmp.eq.s32.totalorder %v1102, 2
      %v1108 = vxor.u32 %v1098, 2147483648
      %v1109 = vsel %vm1107, %v1108, %v1099
      %v1110 = vsel %vm1103, %v1106, %v1109
      %v1111 = vsel %vm1100, nan, %v1110
      %v1112 = vand.u32 2147483647, %v322
      %vm1113 = vcmp.le.f32.partialorder %v1112, 0.7853982
      %vm1114 = vcmp.lt.s32.totalorder %v322, 0
      %v1115 = vand.u32 %v322, 2139095040
      %v1116 = vshrl.u32 %v1115, 23
      %v1117 = vsub.s32 %v1116, 127
      %v1118 = vand.u32 2147483647, %v322
      %v1119 = vand.u32 %v1118, 8388607
      %v1120 = vor.u32 %v1119, 8388608
      %v1121 = vsub.s32 0, %v1120
      %v1122 = vadd.s32 %v1117, 1
      %vm1123 = vcmp.gt.s32.totalorder %v1122, 0
      %v1124 = vsel %vm1123, %v1122, 0
      %v1125 = vshrl.u32 %v1124, 5
      %v1126 = vand.u32 %v1124, 31
      %v1127 = vsub.s32 32, %v1126
      %v1128 = vshrl.u32 683565275, %v1127
      %v1129 = vshll.u32 683565275, %v1126
      %v1130 = vshrl.u32 2475754826, %v1127
      %v1131 = vor.u32 %v1129, %v1130
      %v1132 = vshll.u32 2475754826, %v1126
      %v1133 = vshrl.u32 2131351028, %v1127
      %v1134 = vor.u32 %v1132, %v1133
      %v1135 = vshll.u32 2131351028, %v1126
      %v1136 = vshrl.u32 2102212464, %v1127
      %v1137 = vor.u32 %v1135, %v1136
      %v1138 = vshll.u32 2102212464, %v1126
      %v1139 = vshrl.u32 920167782, %v1127
      %v1140 = vor.u32 %v1138, %v1139
      %v1141 = vshll.u32 920167782, %v1126
      %v1142 = vshrl.u32 1326507024, %v1127
      %v1143 = vor.u32 %v1141, %v1142
      %vm1144 = vcmp.lt.s32.totalorder %v1125, 1
      %vm1145 = vcmp.lt.s32.totalorder %v1125, 2
      %vm1146 = vcmp.lt.s32.totalorder %v1125, 3
      %vm1147 = vcmp.lt.s32.totalorder %v1125, 4
      %v1148 = vsel %vm1144, %v1128, %v1131
      %v1149 = vsel %vm1147, %v1137, 2102212464
      %v1150 = vsel %vm1146, %v1134, %v1149
      %v1151 = vsel %vm1145, %v1148, %v1150
      %v1152 = vsel %vm1144, %v1131, %v1134
      %v1153 = vsel %vm1147, %v1140, 920167782
      %v1154 = vsel %vm1146, %v1137, %v1153
      %v1155 = vsel %vm1145, %v1152, %v1154
      %v1156 = vsel %vm1144, %v1134, %v1137
      %v1157 = vsel %vm1147, %v1143, 1326507024
      %v1158 = vsel %vm1146, %v1140, %v1157
      %v1159 = vsel %vm1145, %v1156, %v1158
      %v1160 = vshll.u32 %v1120, 8
      %v1161 = vmul.u32.u64.compose %v1160, %v1159
      %v1162 = vextract.low.u32 %v1161
      %v1163 = vextract.high.u32 %v1161
      %v1164 = vmul.u32.u64.compose %v1160, %v1155
      %v1165 = vextract.low.u32 %v1164
      %v1166 = vextract.high.u32 %v1164
      %v1167 = vmul.u32 %v1160, %v1151
      %v1168 = vadd.s32 %v1163, %v1165
      %vm1169 = vc.u32 %v1163, %v1165
      %v1170 = vadd.s32 %v1166, 1
      %v1171 = vsel %vm1169, %v1170, %v1166
      %v1172 = vadd.s32 %v1167, %v1171
      %v1173 = vadd.s32 %v1172, 536870912
      %v1174 = vshrl.u32 %v1173, 30
      %v1175 = vshll.u32 %v1174, 30
      %v1176 = vsub.s32 %v1172, %v1175
      %vm1177 = vcmp.lt.s32.totalorder %v1176, 0
      %v1178 = vsub.s32 0, %v1176
      %v1179 = vsel %vm1177, %v1178, %v1176
      %v1180 = vclz %v1179
      %v1181 = vsub.s32 %v1180, 2
      %vm1182 = vcmp.gt.s32.totalorder 0, %v1181
      %v1183 = vsel %vm1182, 0, %v1181
      %v1184 = vsub.s32 32, %v1183
      %v1185 = vshll.u32 %v1176, %v1183
      %v1186 = vshrl.u32 %v1168, %v1184
      %v1187 = vor.u32 %v1185, %v1186
      %v1188 = vsub.s32 4294967266, %v1183
      %v1189 = vadd.s32 %v1188, 127
      %v1190 = vshll.u32 %v1189, 23
      %v1191 = vor.u32 4788187, %v1190
      %v1192 = vand.u32 2147483647, %v1191
      %v1194 = vcvt.s32.f32 %v1187
      %v1195 = vmul.f32 %v1194, %v1192
      %v1196 = vxor.u32 %v1195, 2147483648
      %v1197 = vsel %vm1114, %v1196, %v1195
      %v1198 = vsub.s32 4, %v1174
      %v1199 = vsel %vm1114, %v1198, %v1174
      %v1200 = vsel %vm1113, %v322, %v1197
      %v1201 = vsel %vm1113, 0, %v1199
      %v1202 = vcosq.f32.pop %v1200
      %v1203 = vsinq.f32.pop %v1200
      %vm1204 = vweird.f32 %v322
      %v1205 = vadd.s32 %v1201, 3
      %v1206 = vand.u32 %v1205, 3
      %vm1207 = vcmp.lt.s32.totalorder %v1206, 2
      %vm1208 = vcmp.eq.s32.totalorder %v1206, 0
      %v1209 = vxor.u32 %v1203, 2147483648
      %v1210 = vsel %vm1208, %v1202, %v1209
      %vm1211 = vcmp.eq.s32.totalorder %v1206, 2
      %v1212 = vxor.u32 %v1202, 2147483648
      %v1213 = vsel %vm1211, %v1212, %v1203
      %v1214 = vsel %vm1207, %v1210, %v1213
      %v1215 = vsel %vm1204, nan, %v1214
      %v1216 = vand.u32 2147483647, %v328
      %vm1217 = vcmp.le.f32.partialorder %v1216, 0.7853982
      %vm1218 = vcmp.lt.s32.totalorder %v328, 0
      %v1219 = vand.u32 %v328, 2139095040
      %v1220 = vshrl.u32 %v1219, 23
      %v1221 = vsub.s32 %v1220, 127
      %v1222 = vand.u32 2147483647, %v328
      %v1223 = vand.u32 %v1222, 8388607
      %v1224 = vor.u32 %v1223, 8388608
      %v1225 = vsub.s32 0, %v1224
      %v1226 = vadd.s32 %v1221, 1
      %vm1227 = vcmp.gt.s32.totalorder %v1226, 0
      %v1228 = vsel %vm1227, %v1226, 0
      %v1229 = vshrl.u32 %v1228, 5
      %v1230 = vand.u32 %v1228, 31
      %v1231 = vsub.s32 32, %v1230
      %v1232 = vshrl.u32 683565275, %v1231
      %v1233 = vshll.u32 683565275, %v1230
      %v1234 = vshrl.u32 2475754826, %v1231
      %v1235 = vor.u32 %v1233, %v1234
      %v1236 = vshll.u32 2475754826, %v1230
      %v1237 = vshrl.u32 2131351028, %v1231
      %v1238 = vor.u32 %v1236, %v1237
      %v1239 = vshll.u32 2131351028, %v1230
      %v1240 = vshrl.u32 2102212464, %v1231
      %v1241 = vor.u32 %v1239, %v1240
      %v1242 = vshll.u32 2102212464, %v1230
      %v1243 = vshrl.u32 920167782, %v1231
      %v1244 = vor.u32 %v1242, %v1243
      %v1245 = vshll.u32 920167782, %v1230
      %v1246 = vshrl.u32 1326507024, %v1231
      %v1247 = vor.u32 %v1245, %v1246
      %vm1248 = vcmp.lt.s32.totalorder %v1229, 1
      %vm1249 = vcmp.lt.s32.totalorder %v1229, 2
      %vm1250 = vcmp.lt.s32.totalorder %v1229, 3
      %vm1251 = vcmp.lt.s32.totalorder %v1229, 4
      %v1252 = vsel %vm1248, %v1232, %v1235
      %v1253 = vsel %vm1251, %v1241, 2102212464
      %v1254 = vsel %vm1250, %v1238, %v1253
      %v1255 = vsel %vm1249, %v1252, %v1254
      %v1256 = vsel %vm1248, %v1235, %v1238
      %v1257 = vsel %vm1251, %v1244, 920167782
      %v1258 = vsel %vm1250, %v1241, %v1257
      %v1259 = vsel %vm1249, %v1256, %v1258
      %v1260 = vsel %vm1248, %v1238, %v1241
      %v1261 = vsel %vm1251, %v1247, 1326507024
      %v1262 = vsel %vm1250, %v1244, %v1261
      %v1263 = vsel %vm1249, %v1260, %v1262
      %v1264 = vshll.u32 %v1224, 8
      %v1265 = vmul.u32.u64.compose %v1264, %v1263
      %v1266 = vextract.low.u32 %v1265
      %v1267 = vextract.high.u32 %v1265
      %v1268 = vmul.u32.u64.compose %v1264, %v1259
      %v1269 = vextract.low.u32 %v1268
      %v1270 = vextract.high.u32 %v1268
      %v1271 = vmul.u32 %v1264, %v1255
      %v1272 = vadd.s32 %v1267, %v1269
      %vm1273 = vc.u32 %v1267, %v1269
      %v1274 = vadd.s32 %v1270, 1
      %v1275 = vsel %vm1273, %v1274, %v1270
      %v1276 = vadd.s32 %v1271, %v1275
      %v1277 = vadd.s32 %v1276, 536870912
      %v1278 = vshrl.u32 %v1277, 30
      %v1279 = vshll.u32 %v1278, 30
      %v1280 = vsub.s32 %v1276, %v1279
      %vm1281 = vcmp.lt.s32.totalorder %v1280, 0
      %v1282 = vsub.s32 0, %v1280
      %v1283 = vsel %vm1281, %v1282, %v1280
      %v1284 = vclz %v1283
      %v1285 = vsub.s32 %v1284, 2
      %vm1286 = vcmp.gt.s32.totalorder 0, %v1285
      %v1287 = vsel %vm1286, 0, %v1285
      %v1288 = vsub.s32 32, %v1287
      %v1289 = vshll.u32 %v1280, %v1287
      %v1290 = vshrl.u32 %v1272, %v1288
      %v1291 = vor.u32 %v1289, %v1290
      %v1292 = vsub.s32 4294967266, %v1287
      %v1293 = vadd.s32 %v1292, 127
      %v1294 = vshll.u32 %v1293, 23
      %v1295 = vor.u32 4788187, %v1294
      %v1296 = vand.u32 2147483647, %v1295
      %v1298 = vcvt.s32.f32 %v1291
      %v1299 = vmul.f32 %v1298, %v1296
      %v1300 = vxor.u32 %v1299, 2147483648
      %v1301 = vsel %vm1218, %v1300, %v1299
      %v1302 = vsub.s32 4, %v1278
      %v1303 = vsel %vm1218, %v1302, %v1278
      %v1304 = vsel %vm1217, %v328, %v1301
      %v1305 = vsel %vm1217, 0, %v1303
      %v1306 = vcosq.f32.pop %v1304
      %v1307 = vsinq.f32.pop %v1304
      %vm1308 = vweird.f32 %v328
      %v1309 = vadd.s32 %v1305, 3
      %v1310 = vand.u32 %v1309, 3
      %vm1311 = vcmp.lt.s32.totalorder %v1310, 2
      %vm1312 = vcmp.eq.s32.totalorder %v1310, 0
      %v1313 = vxor.u32 %v1307, 2147483648
      %v1314 = vsel %vm1312, %v1306, %v1313
      %vm1315 = vcmp.eq.s32.totalorder %v1310, 2
      %v1316 = vxor.u32 %v1306, 2147483648
      %v1317 = vsel %vm1315, %v1316, %v1307
      %v1318 = vsel %vm1311, %v1314, %v1317
      %v1319 = vsel %vm1308, nan, %v1318
      %v1320 = vand.u32 2147483647, %v332
      %vm1321 = vcmp.le.f32.partialorder %v1320, 0.7853982
      %vm1322 = vcmp.lt.s32.totalorder %v332, 0
      %v1323 = vand.u32 %v332, 2139095040
      %v1324 = vshrl.u32 %v1323, 23
      %v1325 = vsub.s32 %v1324, 127
      %v1326 = vand.u32 2147483647, %v332
      %v1327 = vand.u32 %v1326, 8388607
      %v1328 = vor.u32 %v1327, 8388608
      %v1329 = vsub.s32 0, %v1328
      %v1330 = vadd.s32 %v1325, 1
      %vm1331 = vcmp.gt.s32.totalorder %v1330, 0
      %v1332 = vsel %vm1331, %v1330, 0
      %v1333 = vshrl.u32 %v1332, 5
      %v1334 = vand.u32 %v1332, 31
      %v1335 = vsub.s32 32, %v1334
      %v1336 = vshrl.u32 683565275, %v1335
      %v1337 = vshll.u32 683565275, %v1334
      %v1338 = vshrl.u32 2475754826, %v1335
      %v1339 = vor.u32 %v1337, %v1338
      %v1340 = vshll.u32 2475754826, %v1334
      %v1341 = vshrl.u32 2131351028, %v1335
      %v1342 = vor.u32 %v1340, %v1341
      %v1343 = vshll.u32 2131351028, %v1334
      %v1344 = vshrl.u32 2102212464, %v1335
      %v1345 = vor.u32 %v1343, %v1344
      %v1346 = vshll.u32 2102212464, %v1334
      %v1347 = vshrl.u32 920167782, %v1335
      %v1348 = vor.u32 %v1346, %v1347
      %v1349 = vshll.u32 920167782, %v1334
      %v1350 = vshrl.u32 1326507024, %v1335
      %v1351 = vor.u32 %v1349, %v1350
      %vm1352 = vcmp.lt.s32.totalorder %v1333, 1
      %vm1353 = vcmp.lt.s32.totalorder %v1333, 2
      %vm1354 = vcmp.lt.s32.totalorder %v1333, 3
      %vm1355 = vcmp.lt.s32.totalorder %v1333, 4
      %v1356 = vsel %vm1352, %v1336, %v1339
      %v1357 = vsel %vm1355, %v1345, 2102212464
      %v1358 = vsel %vm1354, %v1342, %v1357
      %v1359 = vsel %vm1353, %v1356, %v1358
      %v1360 = vsel %vm1352, %v1339, %v1342
      %v1361 = vsel %vm1355, %v1348, 920167782
      %v1362 = vsel %vm1354, %v1345, %v1361
      %v1363 = vsel %vm1353, %v1360, %v1362
      %v1364 = vsel %vm1352, %v1342, %v1345
      %v1365 = vsel %vm1355, %v1351, 1326507024
      %v1366 = vsel %vm1354, %v1348, %v1365
      %v1367 = vsel %vm1353, %v1364, %v1366
      %v1368 = vshll.u32 %v1328, 8
      %v1369 = vmul.u32.u64.compose %v1368, %v1367
      %v1370 = vextract.low.u32 %v1369
      %v1371 = vextract.high.u32 %v1369
      %v1372 = vmul.u32.u64.compose %v1368, %v1363
      %v1373 = vextract.low.u32 %v1372
      %v1374 = vextract.high.u32 %v1372
      %v1375 = vmul.u32 %v1368, %v1359
      %v1376 = vadd.s32 %v1371, %v1373
      %vm1377 = vc.u32 %v1371, %v1373
      %v1378 = vadd.s32 %v1374, 1
      %v1379 = vsel %vm1377, %v1378, %v1374
      %v1380 = vadd.s32 %v1375, %v1379
      %v1381 = vadd.s32 %v1380, 536870912
      %v1382 = vshrl.u32 %v1381, 30
      %v1383 = vshll.u32 %v1382, 30
      %v1384 = vsub.s32 %v1380, %v1383
      %vm1385 = vcmp.lt.s32.totalorder %v1384, 0
      %v1386 = vsub.s32 0, %v1384
      %v1387 = vsel %vm1385, %v1386, %v1384
      %v1388 = vclz %v1387
      %v1389 = vsub.s32 %v1388, 2
      %vm1390 = vcmp.gt.s32.totalorder 0, %v1389
      %v1391 = vsel %vm1390, 0, %v1389
      %v1392 = vsub.s32 32, %v1391
      %v1393 = vshll.u32 %v1384, %v1391
      %v1394 = vshrl.u32 %v1376, %v1392
      %v1395 = vor.u32 %v1393, %v1394
      %v1396 = vsub.s32 4294967266, %v1391
      %v1397 = vadd.s32 %v1396, 127
      %v1398 = vshll.u32 %v1397, 23
      %v1399 = vor.u32 4788187, %v1398
      %v1400 = vand.u32 2147483647, %v1399
      %v1402 = vcvt.s32.f32 %v1395
      %v1403 = vmul.f32 %v1402, %v1400
      %v1404 = vxor.u32 %v1403, 2147483648
      %v1405 = vsel %vm1322, %v1404, %v1403
      %v1406 = vsub.s32 4, %v1382
      %v1407 = vsel %vm1322, %v1406, %v1382
      %v1408 = vsel %vm1321, %v332, %v1405
      %v1409 = vsel %vm1321, 0, %v1407
      %v1410 = vcosq.f32.pop %v1408
      %v1411 = vsinq.f32.pop %v1408
      %vm1412 = vweird.f32 %v332
      %v1413 = vadd.s32 %v1409, 3
      %v1414 = vand.u32 %v1413, 3
      %vm1415 = vcmp.lt.s32.totalorder %v1414, 2
      %vm1416 = vcmp.eq.s32.totalorder %v1414, 0
      %v1417 = vxor.u32 %v1411, 2147483648
      %v1418 = vsel %vm1416, %v1410, %v1417
      %vm1419 = vcmp.eq.s32.totalorder %v1414, 2
      %v1420 = vxor.u32 %v1410, 2147483648
      %v1421 = vsel %vm1419, %v1420, %v1411
      %v1422 = vsel %vm1415, %v1418, %v1421
      %v1423 = vsel %vm1412, nan, %v1422
      %v1424 = vand.u32 2147483647, %v338
      %vm1425 = vcmp.le.f32.partialorder %v1424, 0.7853982
      %vm1426 = vcmp.lt.s32.totalorder %v338, 0
      %v1427 = vand.u32 %v338, 2139095040
      %v1428 = vshrl.u32 %v1427, 23
      %v1429 = vsub.s32 %v1428, 127
      %v1430 = vand.u32 2147483647, %v338
      %v1431 = vand.u32 %v1430, 8388607
      %v1432 = vor.u32 %v1431, 8388608
      %v1433 = vsub.s32 0, %v1432
      %v1434 = vadd.s32 %v1429, 1
      %vm1435 = vcmp.gt.s32.totalorder %v1434, 0
      %v1436 = vsel %vm1435, %v1434, 0
      %v1437 = vshrl.u32 %v1436, 5
      %v1438 = vand.u32 %v1436, 31
      %v1439 = vsub.s32 32, %v1438
      %v1440 = vshrl.u32 683565275, %v1439
      %v1441 = vshll.u32 683565275, %v1438
      %v1442 = vshrl.u32 2475754826, %v1439
      %v1443 = vor.u32 %v1441, %v1442
      %v1444 = vshll.u32 2475754826, %v1438
      %v1445 = vshrl.u32 2131351028, %v1439
      %v1446 = vor.u32 %v1444, %v1445
      %v1447 = vshll.u32 2131351028, %v1438
      %v1448 = vshrl.u32 2102212464, %v1439
      %v1449 = vor.u32 %v1447, %v1448
      %v1450 = vshll.u32 2102212464, %v1438
      %v1451 = vshrl.u32 920167782, %v1439
      %v1452 = vor.u32 %v1450, %v1451
      %v1453 = vshll.u32 920167782, %v1438
      %v1454 = vshrl.u32 1326507024, %v1439
      %v1455 = vor.u32 %v1453, %v1454
      %vm1456 = vcmp.lt.s32.totalorder %v1437, 1
      %vm1457 = vcmp.lt.s32.totalorder %v1437, 2
      %vm1458 = vcmp.lt.s32.totalorder %v1437, 3
      %vm1459 = vcmp.lt.s32.totalorder %v1437, 4
      %v1460 = vsel %vm1456, %v1440, %v1443
      %v1461 = vsel %vm1459, %v1449, 2102212464
      %v1462 = vsel %vm1458, %v1446, %v1461
      %v1463 = vsel %vm1457, %v1460, %v1462
      %v1464 = vsel %vm1456, %v1443, %v1446
      %v1465 = vsel %vm1459, %v1452, 920167782
      %v1466 = vsel %vm1458, %v1449, %v1465
      %v1467 = vsel %vm1457, %v1464, %v1466
      %v1468 = vsel %vm1456, %v1446, %v1449
      %v1469 = vsel %vm1459, %v1455, 1326507024
      %v1470 = vsel %vm1458, %v1452, %v1469
      %v1471 = vsel %vm1457, %v1468, %v1470
      %v1472 = vshll.u32 %v1432, 8
      %v1473 = vmul.u32.u64.compose %v1472, %v1471
      %v1474 = vextract.low.u32 %v1473
      %v1475 = vextract.high.u32 %v1473
      %v1476 = vmul.u32.u64.compose %v1472, %v1467
      %v1477 = vextract.low.u32 %v1476
      %v1478 = vextract.high.u32 %v1476
      %v1479 = vmul.u32 %v1472, %v1463
      %v1480 = vadd.s32 %v1475, %v1477
      %vm1481 = vc.u32 %v1475, %v1477
      %v1482 = vadd.s32 %v1478, 1
      %v1483 = vsel %vm1481, %v1482, %v1478
      %v1484 = vadd.s32 %v1479, %v1483
      %v1485 = vadd.s32 %v1484, 536870912
      %v1486 = vshrl.u32 %v1485, 30
      %v1487 = vshll.u32 %v1486, 30
      %v1488 = vsub.s32 %v1484, %v1487
      %vm1489 = vcmp.lt.s32.totalorder %v1488, 0
      %v1490 = vsub.s32 0, %v1488
      %v1491 = vsel %vm1489, %v1490, %v1488
      %v1492 = vclz %v1491
      %v1493 = vsub.s32 %v1492, 2
      %vm1494 = vcmp.gt.s32.totalorder 0, %v1493
      %v1495 = vsel %vm1494, 0, %v1493
      %v1496 = vsub.s32 32, %v1495
      %v1497 = vshll.u32 %v1488, %v1495
      %v1498 = vshrl.u32 %v1480, %v1496
      %v1499 = vor.u32 %v1497, %v1498
      %v1500 = vsub.s32 4294967266, %v1495
      %v1501 = vadd.s32 %v1500, 127
      %v1502 = vshll.u32 %v1501, 23
      %v1503 = vor.u32 4788187, %v1502
      %v1504 = vand.u32 2147483647, %v1503
      %v1506 = vcvt.s32.f32 %v1499
      %v1507 = vmul.f32 %v1506, %v1504
      %v1508 = vxor.u32 %v1507, 2147483648
      %v1509 = vsel %vm1426, %v1508, %v1507
      %v1510 = vsub.s32 4, %v1486
      %v1511 = vsel %vm1426, %v1510, %v1486
      %v1512 = vsel %vm1425, %v338, %v1509
      %v1513 = vsel %vm1425, 0, %v1511
      %v1514 = vcosq.f32.pop %v1512
      %v1515 = vsinq.f32.pop %v1512
      %vm1516 = vweird.f32 %v338
      %v1517 = vadd.s32 %v1513, 3
      %v1518 = vand.u32 %v1517, 3
      %vm1519 = vcmp.lt.s32.totalorder %v1518, 2
      %vm1520 = vcmp.eq.s32.totalorder %v1518, 0
      %v1521 = vxor.u32 %v1515, 2147483648
      %v1522 = vsel %vm1520, %v1514, %v1521
      %vm1523 = vcmp.eq.s32.totalorder %v1518, 2
      %v1524 = vxor.u32 %v1514, 2147483648
      %v1525 = vsel %vm1523, %v1524, %v1515
      %v1526 = vsel %vm1519, %v1522, %v1525
      %v1527 = vsel %vm1516, nan, %v1526
      %v1528 = vand.u32 2147483647, %v342
      %vm1529 = vcmp.le.f32.partialorder %v1528, 0.7853982
      %vm1530 = vcmp.lt.s32.totalorder %v342, 0
      %v1531 = vand.u32 %v342, 2139095040
      %v1532 = vshrl.u32 %v1531, 23
      %v1533 = vsub.s32 %v1532, 127
      %v1534 = vand.u32 2147483647, %v342
      %v1535 = vand.u32 %v1534, 8388607
      %v1536 = vor.u32 %v1535, 8388608
      %v1537 = vsub.s32 0, %v1536
      %v1538 = vadd.s32 %v1533, 1
      %vm1539 = vcmp.gt.s32.totalorder %v1538, 0
      %v1540 = vsel %vm1539, %v1538, 0
      %v1541 = vshrl.u32 %v1540, 5
      %v1542 = vand.u32 %v1540, 31
      %v1543 = vsub.s32 32, %v1542
      %v1544 = vshrl.u32 683565275, %v1543
      %v1545 = vshll.u32 683565275, %v1542
      %v1546 = vshrl.u32 2475754826, %v1543
      %v1547 = vor.u32 %v1545, %v1546
      %v1548 = vshll.u32 2475754826, %v1542
      %v1549 = vshrl.u32 2131351028, %v1543
      %v1550 = vor.u32 %v1548, %v1549
      %v1551 = vshll.u32 2131351028, %v1542
      %v1552 = vshrl.u32 2102212464, %v1543
      %v1553 = vor.u32 %v1551, %v1552
      %v1554 = vshll.u32 2102212464, %v1542
      %v1555 = vshrl.u32 920167782, %v1543
      %v1556 = vor.u32 %v1554, %v1555
      %v1557 = vshll.u32 920167782, %v1542
      %v1558 = vshrl.u32 1326507024, %v1543
      %v1559 = vor.u32 %v1557, %v1558
      %vm1560 = vcmp.lt.s32.totalorder %v1541, 1
      %vm1561 = vcmp.lt.s32.totalorder %v1541, 2
      %vm1562 = vcmp.lt.s32.totalorder %v1541, 3
      %vm1563 = vcmp.lt.s32.totalorder %v1541, 4
      %v1564 = vsel %vm1560, %v1544, %v1547
      %v1565 = vsel %vm1563, %v1553, 2102212464
      %v1566 = vsel %vm1562, %v1550, %v1565
      %v1567 = vsel %vm1561, %v1564, %v1566
      %v1568 = vsel %vm1560, %v1547, %v1550
      %v1569 = vsel %vm1563, %v1556, 920167782
      %v1570 = vsel %vm1562, %v1553, %v1569
      %v1571 = vsel %vm1561, %v1568, %v1570
      %v1572 = vsel %vm1560, %v1550, %v1553
      %v1573 = vsel %vm1563, %v1559, 1326507024
      %v1574 = vsel %vm1562, %v1556, %v1573
      %v1575 = vsel %vm1561, %v1572, %v1574
      %v1576 = vshll.u32 %v1536, 8
      %v1577 = vmul.u32.u64.compose %v1576, %v1575
      %v1578 = vextract.low.u32 %v1577
      %v1579 = vextract.high.u32 %v1577
      %v1580 = vmul.u32.u64.compose %v1576, %v1571
      %v1581 = vextract.low.u32 %v1580
      %v1582 = vextract.high.u32 %v1580
      %v1583 = vmul.u32 %v1576, %v1567
      %v1584 = vadd.s32 %v1579, %v1581
      %vm1585 = vc.u32 %v1579, %v1581
      %v1586 = vadd.s32 %v1582, 1
      %v1587 = vsel %vm1585, %v1586, %v1582
      %v1588 = vadd.s32 %v1583, %v1587
      %v1589 = vadd.s32 %v1588, 536870912
      %v1590 = vshrl.u32 %v1589, 30
      %v1591 = vshll.u32 %v1590, 30
      %v1592 = vsub.s32 %v1588, %v1591
      %vm1593 = vcmp.lt.s32.totalorder %v1592, 0
      %v1594 = vsub.s32 0, %v1592
      %v1595 = vsel %vm1593, %v1594, %v1592
      %v1596 = vclz %v1595
      %v1597 = vsub.s32 %v1596, 2
      %vm1598 = vcmp.gt.s32.totalorder 0, %v1597
      %v1599 = vsel %vm1598, 0, %v1597
      %v1600 = vsub.s32 32, %v1599
      %v1601 = vshll.u32 %v1592, %v1599
      %v1602 = vshrl.u32 %v1584, %v1600
      %v1603 = vor.u32 %v1601, %v1602
      %v1604 = vsub.s32 4294967266, %v1599
      %v1605 = vadd.s32 %v1604, 127
      %v1606 = vshll.u32 %v1605, 23
      %v1607 = vor.u32 4788187, %v1606
      %v1608 = vand.u32 2147483647, %v1607
      %v1610 = vcvt.s32.f32 %v1603
      %v1611 = vmul.f32 %v1610, %v1608
      %v1612 = vxor.u32 %v1611, 2147483648
      %v1613 = vsel %vm1530, %v1612, %v1611
      %v1614 = vsub.s32 4, %v1590
      %v1615 = vsel %vm1530, %v1614, %v1590
      %v1616 = vsel %vm1529, %v342, %v1613
      %v1617 = vsel %vm1529, 0, %v1615
      %v1618 = vcosq.f32.pop %v1616
      %v1619 = vsinq.f32.pop %v1616
      %vm1620 = vweird.f32 %v342
      %v1621 = vadd.s32 %v1617, 3
      %v1622 = vand.u32 %v1621, 3
      %vm1623 = vcmp.lt.s32.totalorder %v1622, 2
      %vm1624 = vcmp.eq.s32.totalorder %v1622, 0
      %v1625 = vxor.u32 %v1619, 2147483648
      %v1626 = vsel %vm1624, %v1618, %v1625
      %vm1627 = vcmp.eq.s32.totalorder %v1622, 2
      %v1628 = vxor.u32 %v1618, 2147483648
      %v1629 = vsel %vm1627, %v1628, %v1619
      %v1630 = vsel %vm1623, %v1626, %v1629
      %v1631 = vsel %vm1620, nan, %v1630
      %v1632 = vand.u32 2147483647, %v348
      %vm1633 = vcmp.le.f32.partialorder %v1632, 0.7853982
      %vm1634 = vcmp.lt.s32.totalorder %v348, 0
      %v1635 = vand.u32 %v348, 2139095040
      %v1636 = vshrl.u32 %v1635, 23
      %v1637 = vsub.s32 %v1636, 127
      %v1638 = vand.u32 2147483647, %v348
      %v1639 = vand.u32 %v1638, 8388607
      %v1640 = vor.u32 %v1639, 8388608
      %v1641 = vsub.s32 0, %v1640
      %v1642 = vadd.s32 %v1637, 1
      %vm1643 = vcmp.gt.s32.totalorder %v1642, 0
      %v1644 = vsel %vm1643, %v1642, 0
      %v1645 = vshrl.u32 %v1644, 5
      %v1646 = vand.u32 %v1644, 31
      %v1647 = vsub.s32 32, %v1646
      %v1648 = vshrl.u32 683565275, %v1647
      %v1649 = vshll.u32 683565275, %v1646
      %v1650 = vshrl.u32 2475754826, %v1647
      %v1651 = vor.u32 %v1649, %v1650
      %v1652 = vshll.u32 2475754826, %v1646
      %v1653 = vshrl.u32 2131351028, %v1647
      %v1654 = vor.u32 %v1652, %v1653
      %v1655 = vshll.u32 2131351028, %v1646
      %v1656 = vshrl.u32 2102212464, %v1647
      %v1657 = vor.u32 %v1655, %v1656
      %v1658 = vshll.u32 2102212464, %v1646
      %v1659 = vshrl.u32 920167782, %v1647
      %v1660 = vor.u32 %v1658, %v1659
      %v1661 = vshll.u32 920167782, %v1646
      %v1662 = vshrl.u32 1326507024, %v1647
      %v1663 = vor.u32 %v1661, %v1662
      %vm1664 = vcmp.lt.s32.totalorder %v1645, 1
      %vm1665 = vcmp.lt.s32.totalorder %v1645, 2
      %vm1666 = vcmp.lt.s32.totalorder %v1645, 3
      %vm1667 = vcmp.lt.s32.totalorder %v1645, 4
      %v1668 = vsel %vm1664, %v1648, %v1651
      %v1669 = vsel %vm1667, %v1657, 2102212464
      %v1670 = vsel %vm1666, %v1654, %v1669
      %v1671 = vsel %vm1665, %v1668, %v1670
      %v1672 = vsel %vm1664, %v1651, %v1654
      %v1673 = vsel %vm1667, %v1660, 920167782
      %v1674 = vsel %vm1666, %v1657, %v1673
      %v1675 = vsel %vm1665, %v1672, %v1674
      %v1676 = vsel %vm1664, %v1654, %v1657
      %v1677 = vsel %vm1667, %v1663, 1326507024
      %v1678 = vsel %vm1666, %v1660, %v1677
      %v1679 = vsel %vm1665, %v1676, %v1678
      %v1680 = vshll.u32 %v1640, 8
      %v1681 = vmul.u32.u64.compose %v1680, %v1679
      %v1682 = vextract.low.u32 %v1681
      %v1683 = vextract.high.u32 %v1681
      %v1684 = vmul.u32.u64.compose %v1680, %v1675
      %v1685 = vextract.low.u32 %v1684
      %v1686 = vextract.high.u32 %v1684
      %v1687 = vmul.u32 %v1680, %v1671
      %v1688 = vadd.s32 %v1683, %v1685
      %vm1689 = vc.u32 %v1683, %v1685
      %v1690 = vadd.s32 %v1686, 1
      %v1691 = vsel %vm1689, %v1690, %v1686
      %v1692 = vadd.s32 %v1687, %v1691
      %v1693 = vadd.s32 %v1692, 536870912
      %v1694 = vshrl.u32 %v1693, 30
      %v1695 = vshll.u32 %v1694, 30
      %v1696 = vsub.s32 %v1692, %v1695
      %vm1697 = vcmp.lt.s32.totalorder %v1696, 0
      %v1698 = vsub.s32 0, %v1696
      %v1699 = vsel %vm1697, %v1698, %v1696
      %v1700 = vclz %v1699
      %v1701 = vsub.s32 %v1700, 2
      %vm1702 = vcmp.gt.s32.totalorder 0, %v1701
      %v1703 = vsel %vm1702, 0, %v1701
      %v1704 = vsub.s32 32, %v1703
      %v1705 = vshll.u32 %v1696, %v1703
      %v1706 = vshrl.u32 %v1688, %v1704
      %v1707 = vor.u32 %v1705, %v1706
      %v1708 = vsub.s32 4294967266, %v1703
      %v1709 = vadd.s32 %v1708, 127
      %v1710 = vshll.u32 %v1709, 23
      %v1711 = vor.u32 4788187, %v1710
      %v1712 = vand.u32 2147483647, %v1711
      %v1714 = vcvt.s32.f32 %v1707
      %v1715 = vmul.f32 %v1714, %v1712
      %v1716 = vxor.u32 %v1715, 2147483648
      %v1717 = vsel %vm1634, %v1716, %v1715
      %v1718 = vsub.s32 4, %v1694
      %v1719 = vsel %vm1634, %v1718, %v1694
      %v1720 = vsel %vm1633, %v348, %v1717
      %v1721 = vsel %vm1633, 0, %v1719
      %v1722 = vcosq.f32.pop %v1720
      %v1723 = vsinq.f32.pop %v1720
      %vm1724 = vweird.f32 %v348
      %v1725 = vadd.s32 %v1721, 3
      %v1726 = vand.u32 %v1725, 3
      %vm1727 = vcmp.lt.s32.totalorder %v1726, 2
      %vm1728 = vcmp.eq.s32.totalorder %v1726, 0
      %v1729 = vxor.u32 %v1723, 2147483648
      %v1730 = vsel %vm1728, %v1722, %v1729
      %vm1731 = vcmp.eq.s32.totalorder %v1726, 2
      %v1732 = vxor.u32 %v1722, 2147483648
      %v1733 = vsel %vm1731, %v1732, %v1723
      %v1734 = vsel %vm1727, %v1730, %v1733
      %v1735 = vsel %vm1724, nan, %v1734
      %v1736 = vand.u32 2147483647, %v352
      %vm1737 = vcmp.le.f32.partialorder %v1736, 0.7853982
      %vm1738 = vcmp.lt.s32.totalorder %v352, 0
      %v1739 = vand.u32 %v352, 2139095040
      %v1740 = vshrl.u32 %v1739, 23
      %v1741 = vsub.s32 %v1740, 127
      %v1742 = vand.u32 2147483647, %v352
      %v1743 = vand.u32 %v1742, 8388607
      %v1744 = vor.u32 %v1743, 8388608
      %v1745 = vsub.s32 0, %v1744
      %v1746 = vadd.s32 %v1741, 1
      %vm1747 = vcmp.gt.s32.totalorder %v1746, 0
      %v1748 = vsel %vm1747, %v1746, 0
      %v1749 = vshrl.u32 %v1748, 5
      %v1750 = vand.u32 %v1748, 31
      %v1751 = vsub.s32 32, %v1750
      %v1752 = vshrl.u32 683565275, %v1751
      %v1753 = vshll.u32 683565275, %v1750
      %v1754 = vshrl.u32 2475754826, %v1751
      %v1755 = vor.u32 %v1753, %v1754
      %v1756 = vshll.u32 2475754826, %v1750
      %v1757 = vshrl.u32 2131351028, %v1751
      %v1758 = vor.u32 %v1756, %v1757
      %v1759 = vshll.u32 2131351028, %v1750
      %v1760 = vshrl.u32 2102212464, %v1751
      %v1761 = vor.u32 %v1759, %v1760
      %v1762 = vshll.u32 2102212464, %v1750
      %v1763 = vshrl.u32 920167782, %v1751
      %v1764 = vor.u32 %v1762, %v1763
      %v1765 = vshll.u32 920167782, %v1750
      %v1766 = vshrl.u32 1326507024, %v1751
      %v1767 = vor.u32 %v1765, %v1766
      %vm1768 = vcmp.lt.s32.totalorder %v1749, 1
      %vm1769 = vcmp.lt.s32.totalorder %v1749, 2
      %vm1770 = vcmp.lt.s32.totalorder %v1749, 3
      %vm1771 = vcmp.lt.s32.totalorder %v1749, 4
      %v1772 = vsel %vm1768, %v1752, %v1755
      %v1773 = vsel %vm1771, %v1761, 2102212464
      %v1774 = vsel %vm1770, %v1758, %v1773
      %v1775 = vsel %vm1769, %v1772, %v1774
      %v1776 = vsel %vm1768, %v1755, %v1758
      %v1777 = vsel %vm1771, %v1764, 920167782
      %v1778 = vsel %vm1770, %v1761, %v1777
      %v1779 = vsel %vm1769, %v1776, %v1778
      %v1780 = vsel %vm1768, %v1758, %v1761
      %v1781 = vsel %vm1771, %v1767, 1326507024
      %v1782 = vsel %vm1770, %v1764, %v1781
      %v1783 = vsel %vm1769, %v1780, %v1782
      %v1784 = vshll.u32 %v1744, 8
      %v1785 = vmul.u32.u64.compose %v1784, %v1783
      %v1786 = vextract.low.u32 %v1785
      %v1787 = vextract.high.u32 %v1785
      %v1788 = vmul.u32.u64.compose %v1784, %v1779
      %v1789 = vextract.low.u32 %v1788
      %v1790 = vextract.high.u32 %v1788
      %v1791 = vmul.u32 %v1784, %v1775
      %v1792 = vadd.s32 %v1787, %v1789
      %vm1793 = vc.u32 %v1787, %v1789
      %v1794 = vadd.s32 %v1790, 1
      %v1795 = vsel %vm1793, %v1794, %v1790
      %v1796 = vadd.s32 %v1791, %v1795
      %v1797 = vadd.s32 %v1796, 536870912
      %v1798 = vshrl.u32 %v1797, 30
      %v1799 = vshll.u32 %v1798, 30
      %v1800 = vsub.s32 %v1796, %v1799
      %vm1801 = vcmp.lt.s32.totalorder %v1800, 0
      %v1802 = vsub.s32 0, %v1800
      %v1803 = vsel %vm1801, %v1802, %v1800
      %v1804 = vclz %v1803
      %v1805 = vsub.s32 %v1804, 2
      %vm1806 = vcmp.gt.s32.totalorder 0, %v1805
      %v1807 = vsel %vm1806, 0, %v1805
      %v1808 = vsub.s32 32, %v1807
      %v1809 = vshll.u32 %v1800, %v1807
      %v1810 = vshrl.u32 %v1792, %v1808
      %v1811 = vor.u32 %v1809, %v1810
      %v1812 = vsub.s32 4294967266, %v1807
      %v1813 = vadd.s32 %v1812, 127
      %v1814 = vshll.u32 %v1813, 23
      %v1815 = vor.u32 4788187, %v1814
      %v1816 = vand.u32 2147483647, %v1815
      %v1818 = vcvt.s32.f32 %v1811
      %v1819 = vmul.f32 %v1818, %v1816
      %v1820 = vxor.u32 %v1819, 2147483648
      %v1821 = vsel %vm1738, %v1820, %v1819
      %v1822 = vsub.s32 4, %v1798
      %v1823 = vsel %vm1738, %v1822, %v1798
      %v1824 = vsel %vm1737, %v352, %v1821
      %v1825 = vsel %vm1737, 0, %v1823
      %v1826 = vcosq.f32.pop %v1824
      %v1827 = vsinq.f32.pop %v1824
      %vm1828 = vweird.f32 %v352
      %v1829 = vadd.s32 %v1825, 3
      %v1830 = vand.u32 %v1829, 3
      %vm1831 = vcmp.lt.s32.totalorder %v1830, 2
      %vm1832 = vcmp.eq.s32.totalorder %v1830, 0
      %v1833 = vxor.u32 %v1827, 2147483648
      %v1834 = vsel %vm1832, %v1826, %v1833
      %vm1835 = vcmp.eq.s32.totalorder %v1830, 2
      %v1836 = vxor.u32 %v1826, 2147483648
      %v1837 = vsel %vm1835, %v1836, %v1827
      %v1838 = vsel %vm1831, %v1834, %v1837
      %v1839 = vsel %vm1828, nan, %v1838
      %v1840 = vand.u32 2147483647, %v358
      %vm1841 = vcmp.le.f32.partialorder %v1840, 0.7853982
      %vm1842 = vcmp.lt.s32.totalorder %v358, 0
      %v1843 = vand.u32 %v358, 2139095040
      %v1844 = vshrl.u32 %v1843, 23
      %v1845 = vsub.s32 %v1844, 127
      %v1846 = vand.u32 2147483647, %v358
      %v1847 = vand.u32 %v1846, 8388607
      %v1848 = vor.u32 %v1847, 8388608
      %v1849 = vsub.s32 0, %v1848
      %v1850 = vadd.s32 %v1845, 1
      %vm1851 = vcmp.gt.s32.totalorder %v1850, 0
      %v1852 = vsel %vm1851, %v1850, 0
      %v1853 = vshrl.u32 %v1852, 5
      %v1854 = vand.u32 %v1852, 31
      %v1855 = vsub.s32 32, %v1854
      %v1856 = vshrl.u32 683565275, %v1855
      %v1857 = vshll.u32 683565275, %v1854
      %v1858 = vshrl.u32 2475754826, %v1855
      %v1859 = vor.u32 %v1857, %v1858
      %v1860 = vshll.u32 2475754826, %v1854
      %v1861 = vshrl.u32 2131351028, %v1855
      %v1862 = vor.u32 %v1860, %v1861
      %v1863 = vshll.u32 2131351028, %v1854
      %v1864 = vshrl.u32 2102212464, %v1855
      %v1865 = vor.u32 %v1863, %v1864
      %v1866 = vshll.u32 2102212464, %v1854
      %v1867 = vshrl.u32 920167782, %v1855
      %v1868 = vor.u32 %v1866, %v1867
      %v1869 = vshll.u32 920167782, %v1854
      %v1870 = vshrl.u32 1326507024, %v1855
      %v1871 = vor.u32 %v1869, %v1870
      %vm1872 = vcmp.lt.s32.totalorder %v1853, 1
      %vm1873 = vcmp.lt.s32.totalorder %v1853, 2
      %vm1874 = vcmp.lt.s32.totalorder %v1853, 3
      %vm1875 = vcmp.lt.s32.totalorder %v1853, 4
      %v1876 = vsel %vm1872, %v1856, %v1859
      %v1877 = vsel %vm1875, %v1865, 2102212464
      %v1878 = vsel %vm1874, %v1862, %v1877
      %v1879 = vsel %vm1873, %v1876, %v1878
      %v1880 = vsel %vm1872, %v1859, %v1862
      %v1881 = vsel %vm1875, %v1868, 920167782
      %v1882 = vsel %vm1874, %v1865, %v1881
      %v1883 = vsel %vm1873, %v1880, %v1882
      %v1884 = vsel %vm1872, %v1862, %v1865
      %v1885 = vsel %vm1875, %v1871, 1326507024
      %v1886 = vsel %vm1874, %v1868, %v1885
      %v1887 = vsel %vm1873, %v1884, %v1886
      %v1888 = vshll.u32 %v1848, 8
      %v1889 = vmul.u32.u64.compose %v1888, %v1887
      %v1890 = vextract.low.u32 %v1889
      %v1891 = vextract.high.u32 %v1889
      %v1892 = vmul.u32.u64.compose %v1888, %v1883
      %v1893 = vextract.low.u32 %v1892
      %v1894 = vextract.high.u32 %v1892
      %v1895 = vmul.u32 %v1888, %v1879
      %v1896 = vadd.s32 %v1891, %v1893
      %vm1897 = vc.u32 %v1891, %v1893
      %v1898 = vadd.s32 %v1894, 1
      %v1899 = vsel %vm1897, %v1898, %v1894
      %v1900 = vadd.s32 %v1895, %v1899
      %v1901 = vadd.s32 %v1900, 536870912
      %v1902 = vshrl.u32 %v1901, 30
      %v1903 = vshll.u32 %v1902, 30
      %v1904 = vsub.s32 %v1900, %v1903
      %vm1905 = vcmp.lt.s32.totalorder %v1904, 0
      %v1906 = vsub.s32 0, %v1904
      %v1907 = vsel %vm1905, %v1906, %v1904
      %v1908 = vclz %v1907
      %v1909 = vsub.s32 %v1908, 2
      %vm1910 = vcmp.gt.s32.totalorder 0, %v1909
      %v1911 = vsel %vm1910, 0, %v1909
      %v1912 = vsub.s32 32, %v1911
      %v1913 = vshll.u32 %v1904, %v1911
      %v1914 = vshrl.u32 %v1896, %v1912
      %v1915 = vor.u32 %v1913, %v1914
      %v1916 = vsub.s32 4294967266, %v1911
      %v1917 = vadd.s32 %v1916, 127
      %v1918 = vshll.u32 %v1917, 23
      %v1919 = vor.u32 4788187, %v1918
      %v1920 = vand.u32 2147483647, %v1919
      %v1922 = vcvt.s32.f32 %v1915
      %v1923 = vmul.f32 %v1922, %v1920
      %v1924 = vxor.u32 %v1923, 2147483648
      %v1925 = vsel %vm1842, %v1924, %v1923
      %v1926 = vsub.s32 4, %v1902
      %v1927 = vsel %vm1842, %v1926, %v1902
      %v1928 = vsel %vm1841, %v358, %v1925
      %v1929 = vsel %vm1841, 0, %v1927
      %v1930 = vcosq.f32.pop %v1928
      %v1931 = vsinq.f32.pop %v1928
      %vm1932 = vweird.f32 %v358
      %v1933 = vadd.s32 %v1929, 3
      %v1934 = vand.u32 %v1933, 3
      %vm1935 = vcmp.lt.s32.totalorder %v1934, 2
      %vm1936 = vcmp.eq.s32.totalorder %v1934, 0
      %v1937 = vxor.u32 %v1931, 2147483648
      %v1938 = vsel %vm1936, %v1930, %v1937
      %vm1939 = vcmp.eq.s32.totalorder %v1934, 2
      %v1940 = vxor.u32 %v1930, 2147483648
      %v1941 = vsel %vm1939, %v1940, %v1931
      %v1942 = vsel %vm1935, %v1938, %v1941
      %v1943 = vsel %vm1932, nan, %v1942
      %v1944 = vand.u32 2147483647, %v362
      %vm1945 = vcmp.le.f32.partialorder %v1944, 0.7853982
      %vm1946 = vcmp.lt.s32.totalorder %v362, 0
      %v1947 = vand.u32 %v362, 2139095040
      %v1948 = vshrl.u32 %v1947, 23
      %v1949 = vsub.s32 %v1948, 127
      %v1950 = vand.u32 2147483647, %v362
      %v1951 = vand.u32 %v1950, 8388607
      %v1952 = vor.u32 %v1951, 8388608
      %v1953 = vsub.s32 0, %v1952
      %v1954 = vadd.s32 %v1949, 1
      %vm1955 = vcmp.gt.s32.totalorder %v1954, 0
      %v1956 = vsel %vm1955, %v1954, 0
      %v1957 = vshrl.u32 %v1956, 5
      %v1958 = vand.u32 %v1956, 31
      %v1959 = vsub.s32 32, %v1958
      %v1960 = vshrl.u32 683565275, %v1959
      %v1961 = vshll.u32 683565275, %v1958
      %v1962 = vshrl.u32 2475754826, %v1959
      %v1963 = vor.u32 %v1961, %v1962
      %v1964 = vshll.u32 2475754826, %v1958
      %v1965 = vshrl.u32 2131351028, %v1959
      %v1966 = vor.u32 %v1964, %v1965
      %v1967 = vshll.u32 2131351028, %v1958
      %v1968 = vshrl.u32 2102212464, %v1959
      %v1969 = vor.u32 %v1967, %v1968
      %v1970 = vshll.u32 2102212464, %v1958
      %v1971 = vshrl.u32 920167782, %v1959
      %v1972 = vor.u32 %v1970, %v1971
      %v1973 = vshll.u32 920167782, %v1958
      %v1974 = vshrl.u32 1326507024, %v1959
      %v1975 = vor.u32 %v1973, %v1974
      %vm1976 = vcmp.lt.s32.totalorder %v1957, 1
      %vm1977 = vcmp.lt.s32.totalorder %v1957, 2
      %vm1978 = vcmp.lt.s32.totalorder %v1957, 3
      %vm1979 = vcmp.lt.s32.totalorder %v1957, 4
      %v1980 = vsel %vm1976, %v1960, %v1963
      %v1981 = vsel %vm1979, %v1969, 2102212464
      %v1982 = vsel %vm1978, %v1966, %v1981
      %v1983 = vsel %vm1977, %v1980, %v1982
      %v1984 = vsel %vm1976, %v1963, %v1966
      %v1985 = vsel %vm1979, %v1972, 920167782
      %v1986 = vsel %vm1978, %v1969, %v1985
      %v1987 = vsel %vm1977, %v1984, %v1986
      %v1988 = vsel %vm1976, %v1966, %v1969
      %v1989 = vsel %vm1979, %v1975, 1326507024
      %v1990 = vsel %vm1978, %v1972, %v1989
      %v1991 = vsel %vm1977, %v1988, %v1990
      %v1992 = vshll.u32 %v1952, 8
      %v1993 = vmul.u32.u64.compose %v1992, %v1991
      %v1994 = vextract.low.u32 %v1993
      %v1995 = vextract.high.u32 %v1993
      %v1996 = vmul.u32.u64.compose %v1992, %v1987
      %v1997 = vextract.low.u32 %v1996
      %v1998 = vextract.high.u32 %v1996
      %v1999 = vmul.u32 %v1992, %v1983
      %v2000 = vadd.s32 %v1995, %v1997
      %vm2001 = vc.u32 %v1995, %v1997
      %v2002 = vadd.s32 %v1998, 1
      %v2003 = vsel %vm2001, %v2002, %v1998
      %v2004 = vadd.s32 %v1999, %v2003
      %v2005 = vadd.s32 %v2004, 536870912
      %v2006 = vshrl.u32 %v2005, 30
      %v2007 = vshll.u32 %v2006, 30
      %v2008 = vsub.s32 %v2004, %v2007
      %vm2009 = vcmp.lt.s32.totalorder %v2008, 0
      %v2010 = vsub.s32 0, %v2008
      %v2011 = vsel %vm2009, %v2010, %v2008
      %v2012 = vclz %v2011
      %v2013 = vsub.s32 %v2012, 2
      %vm2014 = vcmp.gt.s32.totalorder 0, %v2013
      %v2015 = vsel %vm2014, 0, %v2013
      %v2016 = vsub.s32 32, %v2015
      %v2017 = vshll.u32 %v2008, %v2015
      %v2018 = vshrl.u32 %v2000, %v2016
      %v2019 = vor.u32 %v2017, %v2018
      %v2020 = vsub.s32 4294967266, %v2015
      %v2021 = vadd.s32 %v2020, 127
      %v2022 = vshll.u32 %v2021, 23
      %v2023 = vor.u32 4788187, %v2022
      %v2024 = vand.u32 2147483647, %v2023
      %v2026 = vcvt.s32.f32 %v2019
      %v2027 = vmul.f32 %v2026, %v2024
      %v2028 = vxor.u32 %v2027, 2147483648
      %v2029 = vsel %vm1946, %v2028, %v2027
      %v2030 = vsub.s32 4, %v2006
      %v2031 = vsel %vm1946, %v2030, %v2006
      %v2032 = vsel %vm1945, %v362, %v2029
      %v2033 = vsel %vm1945, 0, %v2031
      %v2034 = vcosq.f32.pop %v2032
      %v2035 = vsinq.f32.pop %v2032
      %vm2036 = vweird.f32 %v362
      %v2037 = vadd.s32 %v2033, 3
      %v2038 = vand.u32 %v2037, 3
      %vm2039 = vcmp.lt.s32.totalorder %v2038, 2
      %vm2040 = vcmp.eq.s32.totalorder %v2038, 0
      %v2041 = vxor.u32 %v2035, 2147483648
      %v2042 = vsel %vm2040, %v2034, %v2041
      %vm2043 = vcmp.eq.s32.totalorder %v2038, 2
      %v2044 = vxor.u32 %v2034, 2147483648
      %v2045 = vsel %vm2043, %v2044, %v2035
      %v2046 = vsel %vm2039, %v2042, %v2045
      %v2047 = vsel %vm2036, nan, %v2046
      %vm2048 = vcmp.eq.s32.totalorder %v383, 0
      %v2049 = vsel %vm2048, %v487, %v366
      %v2050 = vsel %vm2048, %v591, %v367
      %v2051 = vsel %vm2048, %v695, %v368
      %v2052 = vsel %vm2048, %v799, %v369
      %v2053 = vsel %vm2048, %v903, %v370
      %v2054 = vsel %vm2048, %v1007, %v371
      %v2055 = vsel %vm2048, %v1111, %v372
      %v2056 = vsel %vm2048, %v1215, %v373
      %v2057 = vsel %vm2048, %v1319, %v374
      %v2058 = vsel %vm2048, %v1423, %v375
      %v2059 = vsel %vm2048, %v1527, %v376
      %v2060 = vsel %vm2048, %v1631, %v377
      %v2061 = vsel %vm2048, %v1735, %v378
      %v2062 = vsel %vm2048, %v1839, %v379
      %v2063 = vsel %vm2048, %v1943, %v380
      %v2064 = vsel %vm2048, %v2047, %v381
      %v2065 = vand.u32 2147483647, %v288
      %vm2066 = vcmp.le.f32.partialorder %v2065, 0.7853982
      %vm2067 = vcmp.lt.s32.totalorder %v288, 0
      %v2068 = vand.u32 %v288, 2139095040
      %v2069 = vshrl.u32 %v2068, 23
      %v2070 = vsub.s32 %v2069, 127
      %v2071 = vand.u32 2147483647, %v288
      %v2072 = vand.u32 %v2071, 8388607
      %v2073 = vor.u32 %v2072, 8388608
      %v2074 = vsub.s32 0, %v2073
      %v2075 = vadd.s32 %v2070, 1
      %vm2076 = vcmp.gt.s32.totalorder %v2075, 0
      %v2077 = vsel %vm2076, %v2075, 0
      %v2078 = vshrl.u32 %v2077, 5
      %v2079 = vand.u32 %v2077, 31
      %v2080 = vsub.s32 32, %v2079
      %v2081 = vshrl.u32 683565275, %v2080
      %v2082 = vshll.u32 683565275, %v2079
      %v2083 = vshrl.u32 2475754826, %v2080
      %v2084 = vor.u32 %v2082, %v2083
      %v2085 = vshll.u32 2475754826, %v2079
      %v2086 = vshrl.u32 2131351028, %v2080
      %v2087 = vor.u32 %v2085, %v2086
      %v2088 = vshll.u32 2131351028, %v2079
      %v2089 = vshrl.u32 2102212464, %v2080
      %v2090 = vor.u32 %v2088, %v2089
      %v2091 = vshll.u32 2102212464, %v2079
      %v2092 = vshrl.u32 920167782, %v2080
      %v2093 = vor.u32 %v2091, %v2092
      %v2094 = vshll.u32 920167782, %v2079
      %v2095 = vshrl.u32 1326507024, %v2080
      %v2096 = vor.u32 %v2094, %v2095
      %vm2097 = vcmp.lt.s32.totalorder %v2078, 1
      %vm2098 = vcmp.lt.s32.totalorder %v2078, 2
      %vm2099 = vcmp.lt.s32.totalorder %v2078, 3
      %vm2100 = vcmp.lt.s32.totalorder %v2078, 4
      %v2101 = vsel %vm2097, %v2081, %v2084
      %v2102 = vsel %vm2100, %v2090, 2102212464
      %v2103 = vsel %vm2099, %v2087, %v2102
      %v2104 = vsel %vm2098, %v2101, %v2103
      %v2105 = vsel %vm2097, %v2084, %v2087
      %v2106 = vsel %vm2100, %v2093, 920167782
      %v2107 = vsel %vm2099, %v2090, %v2106
      %v2108 = vsel %vm2098, %v2105, %v2107
      %v2109 = vsel %vm2097, %v2087, %v2090
      %v2110 = vsel %vm2100, %v2096, 1326507024
      %v2111 = vsel %vm2099, %v2093, %v2110
      %v2112 = vsel %vm2098, %v2109, %v2111
      %v2113 = vshll.u32 %v2073, 8
      %v2114 = vmul.u32.u64.compose %v2113, %v2112
      %v2115 = vextract.low.u32 %v2114
      %v2116 = vextract.high.u32 %v2114
      %v2117 = vmul.u32.u64.compose %v2113, %v2108
      %v2118 = vextract.low.u32 %v2117
      %v2119 = vextract.high.u32 %v2117
      %v2120 = vmul.u32 %v2113, %v2104
      %v2121 = vadd.s32 %v2116, %v2118
      %vm2122 = vc.u32 %v2116, %v2118
      %v2123 = vadd.s32 %v2119, 1
      %v2124 = vsel %vm2122, %v2123, %v2119
      %v2125 = vadd.s32 %v2120, %v2124
      %v2126 = vadd.s32 %v2125, 536870912
      %v2127 = vshrl.u32 %v2126, 30
      %v2128 = vshll.u32 %v2127, 30
      %v2129 = vsub.s32 %v2125, %v2128
      %vm2130 = vcmp.lt.s32.totalorder %v2129, 0
      %v2131 = vsub.s32 0, %v2129
      %v2132 = vsel %vm2130, %v2131, %v2129
      %v2133 = vclz %v2132
      %v2134 = vsub.s32 %v2133, 2
      %vm2135 = vcmp.gt.s32.totalorder 0, %v2134
      %v2136 = vsel %vm2135, 0, %v2134
      %v2137 = vsub.s32 32, %v2136
      %v2138 = vshll.u32 %v2129, %v2136
      %v2139 = vshrl.u32 %v2121, %v2137
      %v2140 = vor.u32 %v2138, %v2139
      %v2141 = vsub.s32 4294967266, %v2136
      %v2142 = vadd.s32 %v2141, 127
      %v2143 = vshll.u32 %v2142, 23
      %v2144 = vor.u32 4788187, %v2143
      %v2145 = vand.u32 2147483647, %v2144
      %v2147 = vcvt.s32.f32 %v2140
      %v2148 = vmul.f32 %v2147, %v2145
      %v2149 = vxor.u32 %v2148, 2147483648
      %v2150 = vsel %vm2067, %v2149, %v2148
      %v2151 = vsub.s32 4, %v2127
      %v2152 = vsel %vm2067, %v2151, %v2127
      %v2153 = vsel %vm2066, %v288, %v2150
      %v2154 = vsel %vm2066, 0, %v2152
      %v2155 = vcosq.f32.pop %v2153
      %v2156 = vsinq.f32.pop %v2153
      %vm2157 = vweird.f32 %v288
      %v2158 = vand.u32 %v2154, 3
      %vm2159 = vcmp.lt.s32.totalorder %v2158, 2
      %vm2160 = vcmp.eq.s32.totalorder %v2158, 0
      %v2161 = vxor.u32 %v2156, 2147483648
      %v2162 = vsel %vm2160, %v2155, %v2161
      %vm2163 = vcmp.eq.s32.totalorder %v2158, 2
      %v2164 = vxor.u32 %v2155, 2147483648
      %v2165 = vsel %vm2163, %v2164, %v2156
      %v2166 = vsel %vm2159, %v2162, %v2165
      %v2167 = vsel %vm2157, nan, %v2166
      %v2168 = vand.u32 2147483647, %v292
      %vm2169 = vcmp.le.f32.partialorder %v2168, 0.7853982
      %vm2170 = vcmp.lt.s32.totalorder %v292, 0
      %v2171 = vand.u32 %v292, 2139095040
      %v2172 = vshrl.u32 %v2171, 23
      %v2173 = vsub.s32 %v2172, 127
      %v2174 = vand.u32 2147483647, %v292
      %v2175 = vand.u32 %v2174, 8388607
      %v2176 = vor.u32 %v2175, 8388608
      %v2177 = vsub.s32 0, %v2176
      %v2178 = vadd.s32 %v2173, 1
      %vm2179 = vcmp.gt.s32.totalorder %v2178, 0
      %v2180 = vsel %vm2179, %v2178, 0
      %v2181 = vshrl.u32 %v2180, 5
      %v2182 = vand.u32 %v2180, 31
      %v2183 = vsub.s32 32, %v2182
      %v2184 = vshrl.u32 683565275, %v2183
      %v2185 = vshll.u32 683565275, %v2182
      %v2186 = vshrl.u32 2475754826, %v2183
      %v2187 = vor.u32 %v2185, %v2186
      %v2188 = vshll.u32 2475754826, %v2182
      %v2189 = vshrl.u32 2131351028, %v2183
      %v2190 = vor.u32 %v2188, %v2189
      %v2191 = vshll.u32 2131351028, %v2182
      %v2192 = vshrl.u32 2102212464, %v2183
      %v2193 = vor.u32 %v2191, %v2192
      %v2194 = vshll.u32 2102212464, %v2182
      %v2195 = vshrl.u32 920167782, %v2183
      %v2196 = vor.u32 %v2194, %v2195
      %v2197 = vshll.u32 920167782, %v2182
      %v2198 = vshrl.u32 1326507024, %v2183
      %v2199 = vor.u32 %v2197, %v2198
      %vm2200 = vcmp.lt.s32.totalorder %v2181, 1
      %vm2201 = vcmp.lt.s32.totalorder %v2181, 2
      %vm2202 = vcmp.lt.s32.totalorder %v2181, 3
      %vm2203 = vcmp.lt.s32.totalorder %v2181, 4
      %v2204 = vsel %vm2200, %v2184, %v2187
      %v2205 = vsel %vm2203, %v2193, 2102212464
      %v2206 = vsel %vm2202, %v2190, %v2205
      %v2207 = vsel %vm2201, %v2204, %v2206
      %v2208 = vsel %vm2200, %v2187, %v2190
      %v2209 = vsel %vm2203, %v2196, 920167782
      %v2210 = vsel %vm2202, %v2193, %v2209
      %v2211 = vsel %vm2201, %v2208, %v2210
      %v2212 = vsel %vm2200, %v2190, %v2193
      %v2213 = vsel %vm2203, %v2199, 1326507024
      %v2214 = vsel %vm2202, %v2196, %v2213
      %v2215 = vsel %vm2201, %v2212, %v2214
      %v2216 = vshll.u32 %v2176, 8
      %v2217 = vmul.u32.u64.compose %v2216, %v2215
      %v2218 = vextract.low.u32 %v2217
      %v2219 = vextract.high.u32 %v2217
      %v2220 = vmul.u32.u64.compose %v2216, %v2211
      %v2221 = vextract.low.u32 %v2220
      %v2222 = vextract.high.u32 %v2220
      %v2223 = vmul.u32 %v2216, %v2207
      %v2224 = vadd.s32 %v2219, %v2221
      %vm2225 = vc.u32 %v2219, %v2221
      %v2226 = vadd.s32 %v2222, 1
      %v2227 = vsel %vm2225, %v2226, %v2222
      %v2228 = vadd.s32 %v2223, %v2227
      %v2229 = vadd.s32 %v2228, 536870912
      %v2230 = vshrl.u32 %v2229, 30
      %v2231 = vshll.u32 %v2230, 30
      %v2232 = vsub.s32 %v2228, %v2231
      %vm2233 = vcmp.lt.s32.totalorder %v2232, 0
      %v2234 = vsub.s32 0, %v2232
      %v2235 = vsel %vm2233, %v2234, %v2232
      %v2236 = vclz %v2235
      %v2237 = vsub.s32 %v2236, 2
      %vm2238 = vcmp.gt.s32.totalorder 0, %v2237
      %v2239 = vsel %vm2238, 0, %v2237
      %v2240 = vsub.s32 32, %v2239
      %v2241 = vshll.u32 %v2232, %v2239
      %v2242 = vshrl.u32 %v2224, %v2240
      %v2243 = vor.u32 %v2241, %v2242
      %v2244 = vsub.s32 4294967266, %v2239
      %v2245 = vadd.s32 %v2244, 127
      %v2246 = vshll.u32 %v2245, 23
      %v2247 = vor.u32 4788187, %v2246
      %v2248 = vand.u32 2147483647, %v2247
      %v2250 = vcvt.s32.f32 %v2243
      %v2251 = vmul.f32 %v2250, %v2248
      %v2252 = vxor.u32 %v2251, 2147483648
      %v2253 = vsel %vm2170, %v2252, %v2251
      %v2254 = vsub.s32 4, %v2230
      %v2255 = vsel %vm2170, %v2254, %v2230
      %v2256 = vsel %vm2169, %v292, %v2253
      %v2257 = vsel %vm2169, 0, %v2255
      %v2258 = vcosq.f32.pop %v2256
      %v2259 = vsinq.f32.pop %v2256
      %vm2260 = vweird.f32 %v292
      %v2261 = vand.u32 %v2257, 3
      %vm2262 = vcmp.lt.s32.totalorder %v2261, 2
      %vm2263 = vcmp.eq.s32.totalorder %v2261, 0
      %v2264 = vxor.u32 %v2259, 2147483648
      %v2265 = vsel %vm2263, %v2258, %v2264
      %vm2266 = vcmp.eq.s32.totalorder %v2261, 2
      %v2267 = vxor.u32 %v2258, 2147483648
      %v2268 = vsel %vm2266, %v2267, %v2259
      %v2269 = vsel %vm2262, %v2265, %v2268
      %v2270 = vsel %vm2260, nan, %v2269
      %v2271 = vand.u32 2147483647, %v298
      %vm2272 = vcmp.le.f32.partialorder %v2271, 0.7853982
      %vm2273 = vcmp.lt.s32.totalorder %v298, 0
      %v2274 = vand.u32 %v298, 2139095040
      %v2275 = vshrl.u32 %v2274, 23
      %v2276 = vsub.s32 %v2275, 127
      %v2277 = vand.u32 2147483647, %v298
      %v2278 = vand.u32 %v2277, 8388607
      %v2279 = vor.u32 %v2278, 8388608
      %v2280 = vsub.s32 0, %v2279
      %v2281 = vadd.s32 %v2276, 1
      %vm2282 = vcmp.gt.s32.totalorder %v2281, 0
      %v2283 = vsel %vm2282, %v2281, 0
      %v2284 = vshrl.u32 %v2283, 5
      %v2285 = vand.u32 %v2283, 31
      %v2286 = vsub.s32 32, %v2285
      %v2287 = vshrl.u32 683565275, %v2286
      %v2288 = vshll.u32 683565275, %v2285
      %v2289 = vshrl.u32 2475754826, %v2286
      %v2290 = vor.u32 %v2288, %v2289
      %v2291 = vshll.u32 2475754826, %v2285
      %v2292 = vshrl.u32 2131351028, %v2286
      %v2293 = vor.u32 %v2291, %v2292
      %v2294 = vshll.u32 2131351028, %v2285
      %v2295 = vshrl.u32 2102212464, %v2286
      %v2296 = vor.u32 %v2294, %v2295
      %v2297 = vshll.u32 2102212464, %v2285
      %v2298 = vshrl.u32 920167782, %v2286
      %v2299 = vor.u32 %v2297, %v2298
      %v2300 = vshll.u32 920167782, %v2285
      %v2301 = vshrl.u32 1326507024, %v2286
      %v2302 = vor.u32 %v2300, %v2301
      %vm2303 = vcmp.lt.s32.totalorder %v2284, 1
      %vm2304 = vcmp.lt.s32.totalorder %v2284, 2
      %vm2305 = vcmp.lt.s32.totalorder %v2284, 3
      %vm2306 = vcmp.lt.s32.totalorder %v2284, 4
      %v2307 = vsel %vm2303, %v2287, %v2290
      %v2308 = vsel %vm2306, %v2296, 2102212464
      %v2309 = vsel %vm2305, %v2293, %v2308
      %v2310 = vsel %vm2304, %v2307, %v2309
      %v2311 = vsel %vm2303, %v2290, %v2293
      %v2312 = vsel %vm2306, %v2299, 920167782
      %v2313 = vsel %vm2305, %v2296, %v2312
      %v2314 = vsel %vm2304, %v2311, %v2313
      %v2315 = vsel %vm2303, %v2293, %v2296
      %v2316 = vsel %vm2306, %v2302, 1326507024
      %v2317 = vsel %vm2305, %v2299, %v2316
      %v2318 = vsel %vm2304, %v2315, %v2317
      %v2319 = vshll.u32 %v2279, 8
      %v2320 = vmul.u32.u64.compose %v2319, %v2318
      %v2321 = vextract.low.u32 %v2320
      %v2322 = vextract.high.u32 %v2320
      %v2323 = vmul.u32.u64.compose %v2319, %v2314
      %v2324 = vextract.low.u32 %v2323
      %v2325 = vextract.high.u32 %v2323
      %v2326 = vmul.u32 %v2319, %v2310
      %v2327 = vadd.s32 %v2322, %v2324
      %vm2328 = vc.u32 %v2322, %v2324
      %v2329 = vadd.s32 %v2325, 1
      %v2330 = vsel %vm2328, %v2329, %v2325
      %v2331 = vadd.s32 %v2326, %v2330
      %v2332 = vadd.s32 %v2331, 536870912
      %v2333 = vshrl.u32 %v2332, 30
      %v2334 = vshll.u32 %v2333, 30
      %v2335 = vsub.s32 %v2331, %v2334
      %vm2336 = vcmp.lt.s32.totalorder %v2335, 0
      %v2337 = vsub.s32 0, %v2335
      %v2338 = vsel %vm2336, %v2337, %v2335
      %v2339 = vclz %v2338
      %v2340 = vsub.s32 %v2339, 2
      %vm2341 = vcmp.gt.s32.totalorder 0, %v2340
      %v2342 = vsel %vm2341, 0, %v2340
      %v2343 = vsub.s32 32, %v2342
      %v2344 = vshll.u32 %v2335, %v2342
      %v2345 = vshrl.u32 %v2327, %v2343
      %v2346 = vor.u32 %v2344, %v2345
      %v2347 = vsub.s32 4294967266, %v2342
      %v2348 = vadd.s32 %v2347, 127
      %v2349 = vshll.u32 %v2348, 23
      %v2350 = vor.u32 4788187, %v2349
      %v2351 = vand.u32 2147483647, %v2350
      %v2353 = vcvt.s32.f32 %v2346
      %v2354 = vmul.f32 %v2353, %v2351
      %v2355 = vxor.u32 %v2354, 2147483648
      %v2356 = vsel %vm2273, %v2355, %v2354
      %v2357 = vsub.s32 4, %v2333
      %v2358 = vsel %vm2273, %v2357, %v2333
      %v2359 = vsel %vm2272, %v298, %v2356
      %v2360 = vsel %vm2272, 0, %v2358
      %v2361 = vcosq.f32.pop %v2359
      %v2362 = vsinq.f32.pop %v2359
      %vm2363 = vweird.f32 %v298
      %v2364 = vand.u32 %v2360, 3
      %vm2365 = vcmp.lt.s32.totalorder %v2364, 2
      %vm2366 = vcmp.eq.s32.totalorder %v2364, 0
      %v2367 = vxor.u32 %v2362, 2147483648
      %v2368 = vsel %vm2366, %v2361, %v2367
      %vm2369 = vcmp.eq.s32.totalorder %v2364, 2
      %v2370 = vxor.u32 %v2361, 2147483648
      %v2371 = vsel %vm2369, %v2370, %v2362
      %v2372 = vsel %vm2365, %v2368, %v2371
      %v2373 = vsel %vm2363, nan, %v2372
      %v2374 = vand.u32 2147483647, %v302
      %vm2375 = vcmp.le.f32.partialorder %v2374, 0.7853982
      %vm2376 = vcmp.lt.s32.totalorder %v302, 0
      %v2377 = vand.u32 %v302, 2139095040
      %v2378 = vshrl.u32 %v2377, 23
      %v2379 = vsub.s32 %v2378, 127
      %v2380 = vand.u32 2147483647, %v302
      %v2381 = vand.u32 %v2380, 8388607
      %v2382 = vor.u32 %v2381, 8388608
      %v2383 = vsub.s32 0, %v2382
      %v2384 = vadd.s32 %v2379, 1
      %vm2385 = vcmp.gt.s32.totalorder %v2384, 0
      %v2386 = vsel %vm2385, %v2384, 0
      %v2387 = vshrl.u32 %v2386, 5
      %v2388 = vand.u32 %v2386, 31
      %v2389 = vsub.s32 32, %v2388
      %v2390 = vshrl.u32 683565275, %v2389
      %v2391 = vshll.u32 683565275, %v2388
      %v2392 = vshrl.u32 2475754826, %v2389
      %v2393 = vor.u32 %v2391, %v2392
      %v2394 = vshll.u32 2475754826, %v2388
      %v2395 = vshrl.u32 2131351028, %v2389
      %v2396 = vor.u32 %v2394, %v2395
      %v2397 = vshll.u32 2131351028, %v2388
      %v2398 = vshrl.u32 2102212464, %v2389
      %v2399 = vor.u32 %v2397, %v2398
      %v2400 = vshll.u32 2102212464, %v2388
      %v2401 = vshrl.u32 920167782, %v2389
      %v2402 = vor.u32 %v2400, %v2401
      %v2403 = vshll.u32 920167782, %v2388
      %v2404 = vshrl.u32 1326507024, %v2389
      %v2405 = vor.u32 %v2403, %v2404
      %vm2406 = vcmp.lt.s32.totalorder %v2387, 1
      %vm2407 = vcmp.lt.s32.totalorder %v2387, 2
      %vm2408 = vcmp.lt.s32.totalorder %v2387, 3
      %vm2409 = vcmp.lt.s32.totalorder %v2387, 4
      %v2410 = vsel %vm2406, %v2390, %v2393
      %v2411 = vsel %vm2409, %v2399, 2102212464
      %v2412 = vsel %vm2408, %v2396, %v2411
      %v2413 = vsel %vm2407, %v2410, %v2412
      %v2414 = vsel %vm2406, %v2393, %v2396
      %v2415 = vsel %vm2409, %v2402, 920167782
      %v2416 = vsel %vm2408, %v2399, %v2415
      %v2417 = vsel %vm2407, %v2414, %v2416
      %v2418 = vsel %vm2406, %v2396, %v2399
      %v2419 = vsel %vm2409, %v2405, 1326507024
      %v2420 = vsel %vm2408, %v2402, %v2419
      %v2421 = vsel %vm2407, %v2418, %v2420
      %v2422 = vshll.u32 %v2382, 8
      %v2423 = vmul.u32.u64.compose %v2422, %v2421
      %v2424 = vextract.low.u32 %v2423
      %v2425 = vextract.high.u32 %v2423
      %v2426 = vmul.u32.u64.compose %v2422, %v2417
      %v2427 = vextract.low.u32 %v2426
      %v2428 = vextract.high.u32 %v2426
      %v2429 = vmul.u32 %v2422, %v2413
      %v2430 = vadd.s32 %v2425, %v2427
      %vm2431 = vc.u32 %v2425, %v2427
      %v2432 = vadd.s32 %v2428, 1
      %v2433 = vsel %vm2431, %v2432, %v2428
      %v2434 = vadd.s32 %v2429, %v2433
      %v2435 = vadd.s32 %v2434, 536870912
      %v2436 = vshrl.u32 %v2435, 30
      %v2437 = vshll.u32 %v2436, 30
      %v2438 = vsub.s32 %v2434, %v2437
      %vm2439 = vcmp.lt.s32.totalorder %v2438, 0
      %v2440 = vsub.s32 0, %v2438
      %v2441 = vsel %vm2439, %v2440, %v2438
      %v2442 = vclz %v2441
      %v2443 = vsub.s32 %v2442, 2
      %vm2444 = vcmp.gt.s32.totalorder 0, %v2443
      %v2445 = vsel %vm2444, 0, %v2443
      %v2446 = vsub.s32 32, %v2445
      %v2447 = vshll.u32 %v2438, %v2445
      %v2448 = vshrl.u32 %v2430, %v2446
      %v2449 = vor.u32 %v2447, %v2448
      %v2450 = vsub.s32 4294967266, %v2445
      %v2451 = vadd.s32 %v2450, 127
      %v2452 = vshll.u32 %v2451, 23
      %v2453 = vor.u32 4788187, %v2452
      %v2454 = vand.u32 2147483647, %v2453
      %v2456 = vcvt.s32.f32 %v2449
      %v2457 = vmul.f32 %v2456, %v2454
      %v2458 = vxor.u32 %v2457, 2147483648
      %v2459 = vsel %vm2376, %v2458, %v2457
      %v2460 = vsub.s32 4, %v2436
      %v2461 = vsel %vm2376, %v2460, %v2436
      %v2462 = vsel %vm2375, %v302, %v2459
      %v2463 = vsel %vm2375, 0, %v2461
      %v2464 = vcosq.f32.pop %v2462
      %v2465 = vsinq.f32.pop %v2462
      %vm2466 = vweird.f32 %v302
      %v2467 = vand.u32 %v2463, 3
      %vm2468 = vcmp.lt.s32.totalorder %v2467, 2
      %vm2469 = vcmp.eq.s32.totalorder %v2467, 0
      %v2470 = vxor.u32 %v2465, 2147483648
      %v2471 = vsel %vm2469, %v2464, %v2470
      %vm2472 = vcmp.eq.s32.totalorder %v2467, 2
      %v2473 = vxor.u32 %v2464, 2147483648
      %v2474 = vsel %vm2472, %v2473, %v2465
      %v2475 = vsel %vm2468, %v2471, %v2474
      %v2476 = vsel %vm2466, nan, %v2475
      %v2477 = vand.u32 2147483647, %v308
      %vm2478 = vcmp.le.f32.partialorder %v2477, 0.7853982
      %vm2479 = vcmp.lt.s32.totalorder %v308, 0
      %v2480 = vand.u32 %v308, 2139095040
      %v2481 = vshrl.u32 %v2480, 23
      %v2482 = vsub.s32 %v2481, 127
      %v2483 = vand.u32 2147483647, %v308
      %v2484 = vand.u32 %v2483, 8388607
      %v2485 = vor.u32 %v2484, 8388608
      %v2486 = vsub.s32 0, %v2485
      %v2487 = vadd.s32 %v2482, 1
      %vm2488 = vcmp.gt.s32.totalorder %v2487, 0
      %v2489 = vsel %vm2488, %v2487, 0
      %v2490 = vshrl.u32 %v2489, 5
      %v2491 = vand.u32 %v2489, 31
      %v2492 = vsub.s32 32, %v2491
      %v2493 = vshrl.u32 683565275, %v2492
      %v2494 = vshll.u32 683565275, %v2491
      %v2495 = vshrl.u32 2475754826, %v2492
      %v2496 = vor.u32 %v2494, %v2495
      %v2497 = vshll.u32 2475754826, %v2491
      %v2498 = vshrl.u32 2131351028, %v2492
      %v2499 = vor.u32 %v2497, %v2498
      %v2500 = vshll.u32 2131351028, %v2491
      %v2501 = vshrl.u32 2102212464, %v2492
      %v2502 = vor.u32 %v2500, %v2501
      %v2503 = vshll.u32 2102212464, %v2491
      %v2504 = vshrl.u32 920167782, %v2492
      %v2505 = vor.u32 %v2503, %v2504
      %v2506 = vshll.u32 920167782, %v2491
      %v2507 = vshrl.u32 1326507024, %v2492
      %v2508 = vor.u32 %v2506, %v2507
      %vm2509 = vcmp.lt.s32.totalorder %v2490, 1
      %vm2510 = vcmp.lt.s32.totalorder %v2490, 2
      %vm2511 = vcmp.lt.s32.totalorder %v2490, 3
      %vm2512 = vcmp.lt.s32.totalorder %v2490, 4
      %v2513 = vsel %vm2509, %v2493, %v2496
      %v2514 = vsel %vm2512, %v2502, 2102212464
      %v2515 = vsel %vm2511, %v2499, %v2514
      %v2516 = vsel %vm2510, %v2513, %v2515
      %v2517 = vsel %vm2509, %v2496, %v2499
      %v2518 = vsel %vm2512, %v2505, 920167782
      %v2519 = vsel %vm2511, %v2502, %v2518
      %v2520 = vsel %vm2510, %v2517, %v2519
      %v2521 = vsel %vm2509, %v2499, %v2502
      %v2522 = vsel %vm2512, %v2508, 1326507024
      %v2523 = vsel %vm2511, %v2505, %v2522
      %v2524 = vsel %vm2510, %v2521, %v2523
      %v2525 = vshll.u32 %v2485, 8
      %v2526 = vmul.u32.u64.compose %v2525, %v2524
      %v2527 = vextract.low.u32 %v2526
      %v2528 = vextract.high.u32 %v2526
      %v2529 = vmul.u32.u64.compose %v2525, %v2520
      %v2530 = vextract.low.u32 %v2529
      %v2531 = vextract.high.u32 %v2529
      %v2532 = vmul.u32 %v2525, %v2516
      %v2533 = vadd.s32 %v2528, %v2530
      %vm2534 = vc.u32 %v2528, %v2530
      %v2535 = vadd.s32 %v2531, 1
      %v2536 = vsel %vm2534, %v2535, %v2531
      %v2537 = vadd.s32 %v2532, %v2536
      %v2538 = vadd.s32 %v2537, 536870912
      %v2539 = vshrl.u32 %v2538, 30
      %v2540 = vshll.u32 %v2539, 30
      %v2541 = vsub.s32 %v2537, %v2540
      %vm2542 = vcmp.lt.s32.totalorder %v2541, 0
      %v2543 = vsub.s32 0, %v2541
      %v2544 = vsel %vm2542, %v2543, %v2541
      %v2545 = vclz %v2544
      %v2546 = vsub.s32 %v2545, 2
      %vm2547 = vcmp.gt.s32.totalorder 0, %v2546
      %v2548 = vsel %vm2547, 0, %v2546
      %v2549 = vsub.s32 32, %v2548
      %v2550 = vshll.u32 %v2541, %v2548
      %v2551 = vshrl.u32 %v2533, %v2549
      %v2552 = vor.u32 %v2550, %v2551
      %v2553 = vsub.s32 4294967266, %v2548
      %v2554 = vadd.s32 %v2553, 127
      %v2555 = vshll.u32 %v2554, 23
      %v2556 = vor.u32 4788187, %v2555
      %v2557 = vand.u32 2147483647, %v2556
      %v2559 = vcvt.s32.f32 %v2552
      %v2560 = vmul.f32 %v2559, %v2557
      %v2561 = vxor.u32 %v2560, 2147483648
      %v2562 = vsel %vm2479, %v2561, %v2560
      %v2563 = vsub.s32 4, %v2539
      %v2564 = vsel %vm2479, %v2563, %v2539
      %v2565 = vsel %vm2478, %v308, %v2562
      %v2566 = vsel %vm2478, 0, %v2564
      %v2567 = vcosq.f32.pop %v2565
      %v2568 = vsinq.f32.pop %v2565
      %vm2569 = vweird.f32 %v308
      %v2570 = vand.u32 %v2566, 3
      %vm2571 = vcmp.lt.s32.totalorder %v2570, 2
      %vm2572 = vcmp.eq.s32.totalorder %v2570, 0
      %v2573 = vxor.u32 %v2568, 2147483648
      %v2574 = vsel %vm2572, %v2567, %v2573
      %vm2575 = vcmp.eq.s32.totalorder %v2570, 2
      %v2576 = vxor.u32 %v2567, 2147483648
      %v2577 = vsel %vm2575, %v2576, %v2568
      %v2578 = vsel %vm2571, %v2574, %v2577
      %v2579 = vsel %vm2569, nan, %v2578
      %v2580 = vand.u32 2147483647, %v312
      %vm2581 = vcmp.le.f32.partialorder %v2580, 0.7853982
      %vm2582 = vcmp.lt.s32.totalorder %v312, 0
      %v2583 = vand.u32 %v312, 2139095040
      %v2584 = vshrl.u32 %v2583, 23
      %v2585 = vsub.s32 %v2584, 127
      %v2586 = vand.u32 2147483647, %v312
      %v2587 = vand.u32 %v2586, 8388607
      %v2588 = vor.u32 %v2587, 8388608
      %v2589 = vsub.s32 0, %v2588
      %v2590 = vadd.s32 %v2585, 1
      %vm2591 = vcmp.gt.s32.totalorder %v2590, 0
      %v2592 = vsel %vm2591, %v2590, 0
      %v2593 = vshrl.u32 %v2592, 5
      %v2594 = vand.u32 %v2592, 31
      %v2595 = vsub.s32 32, %v2594
      %v2596 = vshrl.u32 683565275, %v2595
      %v2597 = vshll.u32 683565275, %v2594
      %v2598 = vshrl.u32 2475754826, %v2595
      %v2599 = vor.u32 %v2597, %v2598
      %v2600 = vshll.u32 2475754826, %v2594
      %v2601 = vshrl.u32 2131351028, %v2595
      %v2602 = vor.u32 %v2600, %v2601
      %v2603 = vshll.u32 2131351028, %v2594
      %v2604 = vshrl.u32 2102212464, %v2595
      %v2605 = vor.u32 %v2603, %v2604
      %v2606 = vshll.u32 2102212464, %v2594
      %v2607 = vshrl.u32 920167782, %v2595
      %v2608 = vor.u32 %v2606, %v2607
      %v2609 = vshll.u32 920167782, %v2594
      %v2610 = vshrl.u32 1326507024, %v2595
      %v2611 = vor.u32 %v2609, %v2610
      %vm2612 = vcmp.lt.s32.totalorder %v2593, 1
      %vm2613 = vcmp.lt.s32.totalorder %v2593, 2
      %vm2614 = vcmp.lt.s32.totalorder %v2593, 3
      %vm2615 = vcmp.lt.s32.totalorder %v2593, 4
      %v2616 = vsel %vm2612, %v2596, %v2599
      %v2617 = vsel %vm2615, %v2605, 2102212464
      %v2618 = vsel %vm2614, %v2602, %v2617
      %v2619 = vsel %vm2613, %v2616, %v2618
      %v2620 = vsel %vm2612, %v2599, %v2602
      %v2621 = vsel %vm2615, %v2608, 920167782
      %v2622 = vsel %vm2614, %v2605, %v2621
      %v2623 = vsel %vm2613, %v2620, %v2622
      %v2624 = vsel %vm2612, %v2602, %v2605
      %v2625 = vsel %vm2615, %v2611, 1326507024
      %v2626 = vsel %vm2614, %v2608, %v2625
      %v2627 = vsel %vm2613, %v2624, %v2626
      %v2628 = vshll.u32 %v2588, 8
      %v2629 = vmul.u32.u64.compose %v2628, %v2627
      %v2630 = vextract.low.u32 %v2629
      %v2631 = vextract.high.u32 %v2629
      %v2632 = vmul.u32.u64.compose %v2628, %v2623
      %v2633 = vextract.low.u32 %v2632
      %v2634 = vextract.high.u32 %v2632
      %v2635 = vmul.u32 %v2628, %v2619
      %v2636 = vadd.s32 %v2631, %v2633
      %vm2637 = vc.u32 %v2631, %v2633
      %v2638 = vadd.s32 %v2634, 1
      %v2639 = vsel %vm2637, %v2638, %v2634
      %v2640 = vadd.s32 %v2635, %v2639
      %v2641 = vadd.s32 %v2640, 536870912
      %v2642 = vshrl.u32 %v2641, 30
      %v2643 = vshll.u32 %v2642, 30
      %v2644 = vsub.s32 %v2640, %v2643
      %vm2645 = vcmp.lt.s32.totalorder %v2644, 0
      %v2646 = vsub.s32 0, %v2644
      %v2647 = vsel %vm2645, %v2646, %v2644
      %v2648 = vclz %v2647
      %v2649 = vsub.s32 %v2648, 2
      %vm2650 = vcmp.gt.s32.totalorder 0, %v2649
      %v2651 = vsel %vm2650, 0, %v2649
      %v2652 = vsub.s32 32, %v2651
      %v2653 = vshll.u32 %v2644, %v2651
      %v2654 = vshrl.u32 %v2636, %v2652
      %v2655 = vor.u32 %v2653, %v2654
      %v2656 = vsub.s32 4294967266, %v2651
      %v2657 = vadd.s32 %v2656, 127
      %v2658 = vshll.u32 %v2657, 23
      %v2659 = vor.u32 4788187, %v2658
      %v2660 = vand.u32 2147483647, %v2659
      %v2662 = vcvt.s32.f32 %v2655
      %v2663 = vmul.f32 %v2662, %v2660
      %v2664 = vxor.u32 %v2663, 2147483648
      %v2665 = vsel %vm2582, %v2664, %v2663
      %v2666 = vsub.s32 4, %v2642
      %v2667 = vsel %vm2582, %v2666, %v2642
      %v2668 = vsel %vm2581, %v312, %v2665
      %v2669 = vsel %vm2581, 0, %v2667
      %v2670 = vcosq.f32.pop %v2668
      %v2671 = vsinq.f32.pop %v2668
      %vm2672 = vweird.f32 %v312
      %v2673 = vand.u32 %v2669, 3
      %vm2674 = vcmp.lt.s32.totalorder %v2673, 2
      %vm2675 = vcmp.eq.s32.totalorder %v2673, 0
      %v2676 = vxor.u32 %v2671, 2147483648
      %v2677 = vsel %vm2675, %v2670, %v2676
      %vm2678 = vcmp.eq.s32.totalorder %v2673, 2
      %v2679 = vxor.u32 %v2670, 2147483648
      %v2680 = vsel %vm2678, %v2679, %v2671
      %v2681 = vsel %vm2674, %v2677, %v2680
      %v2682 = vsel %vm2672, nan, %v2681
      %v2683 = vand.u32 2147483647, %v318
      %vm2684 = vcmp.le.f32.partialorder %v2683, 0.7853982
      %vm2685 = vcmp.lt.s32.totalorder %v318, 0
      %v2686 = vand.u32 %v318, 2139095040
      %v2687 = vshrl.u32 %v2686, 23
      %v2688 = vsub.s32 %v2687, 127
      %v2689 = vand.u32 2147483647, %v318
      %v2690 = vand.u32 %v2689, 8388607
      %v2691 = vor.u32 %v2690, 8388608
      %v2692 = vsub.s32 0, %v2691
      %v2693 = vadd.s32 %v2688, 1
      %vm2694 = vcmp.gt.s32.totalorder %v2693, 0
      %v2695 = vsel %vm2694, %v2693, 0
      %v2696 = vshrl.u32 %v2695, 5
      %v2697 = vand.u32 %v2695, 31
      %v2698 = vsub.s32 32, %v2697
      %v2699 = vshrl.u32 683565275, %v2698
      %v2700 = vshll.u32 683565275, %v2697
      %v2701 = vshrl.u32 2475754826, %v2698
      %v2702 = vor.u32 %v2700, %v2701
      %v2703 = vshll.u32 2475754826, %v2697
      %v2704 = vshrl.u32 2131351028, %v2698
      %v2705 = vor.u32 %v2703, %v2704
      %v2706 = vshll.u32 2131351028, %v2697
      %v2707 = vshrl.u32 2102212464, %v2698
      %v2708 = vor.u32 %v2706, %v2707
      %v2709 = vshll.u32 2102212464, %v2697
      %v2710 = vshrl.u32 920167782, %v2698
      %v2711 = vor.u32 %v2709, %v2710
      %v2712 = vshll.u32 920167782, %v2697
      %v2713 = vshrl.u32 1326507024, %v2698
      %v2714 = vor.u32 %v2712, %v2713
      %vm2715 = vcmp.lt.s32.totalorder %v2696, 1
      %vm2716 = vcmp.lt.s32.totalorder %v2696, 2
      %vm2717 = vcmp.lt.s32.totalorder %v2696, 3
      %vm2718 = vcmp.lt.s32.totalorder %v2696, 4
      %v2719 = vsel %vm2715, %v2699, %v2702
      %v2720 = vsel %vm2718, %v2708, 2102212464
      %v2721 = vsel %vm2717, %v2705, %v2720
      %v2722 = vsel %vm2716, %v2719, %v2721
      %v2723 = vsel %vm2715, %v2702, %v2705
      %v2724 = vsel %vm2718, %v2711, 920167782
      %v2725 = vsel %vm2717, %v2708, %v2724
      %v2726 = vsel %vm2716, %v2723, %v2725
      %v2727 = vsel %vm2715, %v2705, %v2708
      %v2728 = vsel %vm2718, %v2714, 1326507024
      %v2729 = vsel %vm2717, %v2711, %v2728
      %v2730 = vsel %vm2716, %v2727, %v2729
      %v2731 = vshll.u32 %v2691, 8
      %v2732 = vmul.u32.u64.compose %v2731, %v2730
      %v2733 = vextract.low.u32 %v2732
      %v2734 = vextract.high.u32 %v2732
      %v2735 = vmul.u32.u64.compose %v2731, %v2726
      %v2736 = vextract.low.u32 %v2735
      %v2737 = vextract.high.u32 %v2735
      %v2738 = vmul.u32 %v2731, %v2722
      %v2739 = vadd.s32 %v2734, %v2736
      %vm2740 = vc.u32 %v2734, %v2736
      %v2741 = vadd.s32 %v2737, 1
      %v2742 = vsel %vm2740, %v2741, %v2737
      %v2743 = vadd.s32 %v2738, %v2742
      %v2744 = vadd.s32 %v2743, 536870912
      %v2745 = vshrl.u32 %v2744, 30
      %v2746 = vshll.u32 %v2745, 30
      %v2747 = vsub.s32 %v2743, %v2746
      %vm2748 = vcmp.lt.s32.totalorder %v2747, 0
      %v2749 = vsub.s32 0, %v2747
      %v2750 = vsel %vm2748, %v2749, %v2747
      %v2751 = vclz %v2750
      %v2752 = vsub.s32 %v2751, 2
      %vm2753 = vcmp.gt.s32.totalorder 0, %v2752
      %v2754 = vsel %vm2753, 0, %v2752
      %v2755 = vsub.s32 32, %v2754
      %v2756 = vshll.u32 %v2747, %v2754
      %v2757 = vshrl.u32 %v2739, %v2755
      %v2758 = vor.u32 %v2756, %v2757
      %v2759 = vsub.s32 4294967266, %v2754
      %v2760 = vadd.s32 %v2759, 127
      %v2761 = vshll.u32 %v2760, 23
      %v2762 = vor.u32 4788187, %v2761
      %v2763 = vand.u32 2147483647, %v2762
      %v2765 = vcvt.s32.f32 %v2758
      %v2766 = vmul.f32 %v2765, %v2763
      %v2767 = vxor.u32 %v2766, 2147483648
      %v2768 = vsel %vm2685, %v2767, %v2766
      %v2769 = vsub.s32 4, %v2745
      %v2770 = vsel %vm2685, %v2769, %v2745
      %v2771 = vsel %vm2684, %v318, %v2768
      %v2772 = vsel %vm2684, 0, %v2770
      %v2773 = vcosq.f32.pop %v2771
      %v2774 = vsinq.f32.pop %v2771
      %vm2775 = vweird.f32 %v318
      %v2776 = vand.u32 %v2772, 3
      %vm2777 = vcmp.lt.s32.totalorder %v2776, 2
      %vm2778 = vcmp.eq.s32.totalorder %v2776, 0
      %v2779 = vxor.u32 %v2774, 2147483648
      %v2780 = vsel %vm2778, %v2773, %v2779
      %vm2781 = vcmp.eq.s32.totalorder %v2776, 2
      %v2782 = vxor.u32 %v2773, 2147483648
      %v2783 = vsel %vm2781, %v2782, %v2774
      %v2784 = vsel %vm2777, %v2780, %v2783
      %v2785 = vsel %vm2775, nan, %v2784
      %v2786 = vand.u32 2147483647, %v322
      %vm2787 = vcmp.le.f32.partialorder %v2786, 0.7853982
      %vm2788 = vcmp.lt.s32.totalorder %v322, 0
      %v2789 = vand.u32 %v322, 2139095040
      %v2790 = vshrl.u32 %v2789, 23
      %v2791 = vsub.s32 %v2790, 127
      %v2792 = vand.u32 2147483647, %v322
      %v2793 = vand.u32 %v2792, 8388607
      %v2794 = vor.u32 %v2793, 8388608
      %v2795 = vsub.s32 0, %v2794
      %v2796 = vadd.s32 %v2791, 1
      %vm2797 = vcmp.gt.s32.totalorder %v2796, 0
      %v2798 = vsel %vm2797, %v2796, 0
      %v2799 = vshrl.u32 %v2798, 5
      %v2800 = vand.u32 %v2798, 31
      %v2801 = vsub.s32 32, %v2800
      %v2802 = vshrl.u32 683565275, %v2801
      %v2803 = vshll.u32 683565275, %v2800
      %v2804 = vshrl.u32 2475754826, %v2801
      %v2805 = vor.u32 %v2803, %v2804
      %v2806 = vshll.u32 2475754826, %v2800
      %v2807 = vshrl.u32 2131351028, %v2801
      %v2808 = vor.u32 %v2806, %v2807
      %v2809 = vshll.u32 2131351028, %v2800
      %v2810 = vshrl.u32 2102212464, %v2801
      %v2811 = vor.u32 %v2809, %v2810
      %v2812 = vshll.u32 2102212464, %v2800
      %v2813 = vshrl.u32 920167782, %v2801
      %v2814 = vor.u32 %v2812, %v2813
      %v2815 = vshll.u32 920167782, %v2800
      %v2816 = vshrl.u32 1326507024, %v2801
      %v2817 = vor.u32 %v2815, %v2816
      %vm2818 = vcmp.lt.s32.totalorder %v2799, 1
      %vm2819 = vcmp.lt.s32.totalorder %v2799, 2
      %vm2820 = vcmp.lt.s32.totalorder %v2799, 3
      %vm2821 = vcmp.lt.s32.totalorder %v2799, 4
      %v2822 = vsel %vm2818, %v2802, %v2805
      %v2823 = vsel %vm2821, %v2811, 2102212464
      %v2824 = vsel %vm2820, %v2808, %v2823
      %v2825 = vsel %vm2819, %v2822, %v2824
      %v2826 = vsel %vm2818, %v2805, %v2808
      %v2827 = vsel %vm2821, %v2814, 920167782
      %v2828 = vsel %vm2820, %v2811, %v2827
      %v2829 = vsel %vm2819, %v2826, %v2828
      %v2830 = vsel %vm2818, %v2808, %v2811
      %v2831 = vsel %vm2821, %v2817, 1326507024
      %v2832 = vsel %vm2820, %v2814, %v2831
      %v2833 = vsel %vm2819, %v2830, %v2832
      %v2834 = vshll.u32 %v2794, 8
      %v2835 = vmul.u32.u64.compose %v2834, %v2833
      %v2836 = vextract.low.u32 %v2835
      %v2837 = vextract.high.u32 %v2835
      %v2838 = vmul.u32.u64.compose %v2834, %v2829
      %v2839 = vextract.low.u32 %v2838
      %v2840 = vextract.high.u32 %v2838
      %v2841 = vmul.u32 %v2834, %v2825
      %v2842 = vadd.s32 %v2837, %v2839
      %vm2843 = vc.u32 %v2837, %v2839
      %v2844 = vadd.s32 %v2840, 1
      %v2845 = vsel %vm2843, %v2844, %v2840
      %v2846 = vadd.s32 %v2841, %v2845
      %v2847 = vadd.s32 %v2846, 536870912
      %v2848 = vshrl.u32 %v2847, 30
      %v2849 = vshll.u32 %v2848, 30
      %v2850 = vsub.s32 %v2846, %v2849
      %vm2851 = vcmp.lt.s32.totalorder %v2850, 0
      %v2852 = vsub.s32 0, %v2850
      %v2853 = vsel %vm2851, %v2852, %v2850
      %v2854 = vclz %v2853
      %v2855 = vsub.s32 %v2854, 2
      %vm2856 = vcmp.gt.s32.totalorder 0, %v2855
      %v2857 = vsel %vm2856, 0, %v2855
      %v2858 = vsub.s32 32, %v2857
      %v2859 = vshll.u32 %v2850, %v2857
      %v2860 = vshrl.u32 %v2842, %v2858
      %v2861 = vor.u32 %v2859, %v2860
      %v2862 = vsub.s32 4294967266, %v2857
      %v2863 = vadd.s32 %v2862, 127
      %v2864 = vshll.u32 %v2863, 23
      %v2865 = vor.u32 4788187, %v2864
      %v2866 = vand.u32 2147483647, %v2865
      %v2868 = vcvt.s32.f32 %v2861
      %v2869 = vmul.f32 %v2868, %v2866
      %v2870 = vxor.u32 %v2869, 2147483648
      %v2871 = vsel %vm2788, %v2870, %v2869
      %v2872 = vsub.s32 4, %v2848
      %v2873 = vsel %vm2788, %v2872, %v2848
      %v2874 = vsel %vm2787, %v322, %v2871
      %v2875 = vsel %vm2787, 0, %v2873
      %v2876 = vcosq.f32.pop %v2874
      %v2877 = vsinq.f32.pop %v2874
      %vm2878 = vweird.f32 %v322
      %v2879 = vand.u32 %v2875, 3
      %vm2880 = vcmp.lt.s32.totalorder %v2879, 2
      %vm2881 = vcmp.eq.s32.totalorder %v2879, 0
      %v2882 = vxor.u32 %v2877, 2147483648
      %v2883 = vsel %vm2881, %v2876, %v2882
      %vm2884 = vcmp.eq.s32.totalorder %v2879, 2
      %v2885 = vxor.u32 %v2876, 2147483648
      %v2886 = vsel %vm2884, %v2885, %v2877
      %v2887 = vsel %vm2880, %v2883, %v2886
      %v2888 = vsel %vm2878, nan, %v2887
      %v2889 = vand.u32 2147483647, %v328
      %vm2890 = vcmp.le.f32.partialorder %v2889, 0.7853982
      %vm2891 = vcmp.lt.s32.totalorder %v328, 0
      %v2892 = vand.u32 %v328, 2139095040
      %v2893 = vshrl.u32 %v2892, 23
      %v2894 = vsub.s32 %v2893, 127
      %v2895 = vand.u32 2147483647, %v328
      %v2896 = vand.u32 %v2895, 8388607
      %v2897 = vor.u32 %v2896, 8388608
      %v2898 = vsub.s32 0, %v2897
      %v2899 = vadd.s32 %v2894, 1
      %vm2900 = vcmp.gt.s32.totalorder %v2899, 0
      %v2901 = vsel %vm2900, %v2899, 0
      %v2902 = vshrl.u32 %v2901, 5
      %v2903 = vand.u32 %v2901, 31
      %v2904 = vsub.s32 32, %v2903
      %v2905 = vshrl.u32 683565275, %v2904
      %v2906 = vshll.u32 683565275, %v2903
      %v2907 = vshrl.u32 2475754826, %v2904
      %v2908 = vor.u32 %v2906, %v2907
      %v2909 = vshll.u32 2475754826, %v2903
      %v2910 = vshrl.u32 2131351028, %v2904
      %v2911 = vor.u32 %v2909, %v2910
      %v2912 = vshll.u32 2131351028, %v2903
      %v2913 = vshrl.u32 2102212464, %v2904
      %v2914 = vor.u32 %v2912, %v2913
      %v2915 = vshll.u32 2102212464, %v2903
      %v2916 = vshrl.u32 920167782, %v2904
      %v2917 = vor.u32 %v2915, %v2916
      %v2918 = vshll.u32 920167782, %v2903
      %v2919 = vshrl.u32 1326507024, %v2904
      %v2920 = vor.u32 %v2918, %v2919
      %vm2921 = vcmp.lt.s32.totalorder %v2902, 1
      %vm2922 = vcmp.lt.s32.totalorder %v2902, 2
      %vm2923 = vcmp.lt.s32.totalorder %v2902, 3
      %vm2924 = vcmp.lt.s32.totalorder %v2902, 4
      %v2925 = vsel %vm2921, %v2905, %v2908
      %v2926 = vsel %vm2924, %v2914, 2102212464
      %v2927 = vsel %vm2923, %v2911, %v2926
      %v2928 = vsel %vm2922, %v2925, %v2927
      %v2929 = vsel %vm2921, %v2908, %v2911
      %v2930 = vsel %vm2924, %v2917, 920167782
      %v2931 = vsel %vm2923, %v2914, %v2930
      %v2932 = vsel %vm2922, %v2929, %v2931
      %v2933 = vsel %vm2921, %v2911, %v2914
      %v2934 = vsel %vm2924, %v2920, 1326507024
      %v2935 = vsel %vm2923, %v2917, %v2934
      %v2936 = vsel %vm2922, %v2933, %v2935
      %v2937 = vshll.u32 %v2897, 8
      %v2938 = vmul.u32.u64.compose %v2937, %v2936
      %v2939 = vextract.low.u32 %v2938
      %v2940 = vextract.high.u32 %v2938
      %v2941 = vmul.u32.u64.compose %v2937, %v2932
      %v2942 = vextract.low.u32 %v2941
      %v2943 = vextract.high.u32 %v2941
      %v2944 = vmul.u32 %v2937, %v2928
      %v2945 = vadd.s32 %v2940, %v2942
      %vm2946 = vc.u32 %v2940, %v2942
      %v2947 = vadd.s32 %v2943, 1
      %v2948 = vsel %vm2946, %v2947, %v2943
      %v2949 = vadd.s32 %v2944, %v2948
      %v2950 = vadd.s32 %v2949, 536870912
      %v2951 = vshrl.u32 %v2950, 30
      %v2952 = vshll.u32 %v2951, 30
      %v2953 = vsub.s32 %v2949, %v2952
      %vm2954 = vcmp.lt.s32.totalorder %v2953, 0
      %v2955 = vsub.s32 0, %v2953
      %v2956 = vsel %vm2954, %v2955, %v2953
      %v2957 = vclz %v2956
      %v2958 = vsub.s32 %v2957, 2
      %vm2959 = vcmp.gt.s32.totalorder 0, %v2958
      %v2960 = vsel %vm2959, 0, %v2958
      %v2961 = vsub.s32 32, %v2960
      %v2962 = vshll.u32 %v2953, %v2960
      %v2963 = vshrl.u32 %v2945, %v2961
      %v2964 = vor.u32 %v2962, %v2963
      %v2965 = vsub.s32 4294967266, %v2960
      %v2966 = vadd.s32 %v2965, 127
      %v2967 = vshll.u32 %v2966, 23
      %v2968 = vor.u32 4788187, %v2967
      %v2969 = vand.u32 2147483647, %v2968
      %v2971 = vcvt.s32.f32 %v2964
      %v2972 = vmul.f32 %v2971, %v2969
      %v2973 = vxor.u32 %v2972, 2147483648
      %v2974 = vsel %vm2891, %v2973, %v2972
      %v2975 = vsub.s32 4, %v2951
      %v2976 = vsel %vm2891, %v2975, %v2951
      %v2977 = vsel %vm2890, %v328, %v2974
      %v2978 = vsel %vm2890, 0, %v2976
      %v2979 = vcosq.f32.pop %v2977
      %v2980 = vsinq.f32.pop %v2977
      %vm2981 = vweird.f32 %v328
      %v2982 = vand.u32 %v2978, 3
      %vm2983 = vcmp.lt.s32.totalorder %v2982, 2
      %vm2984 = vcmp.eq.s32.totalorder %v2982, 0
      %v2985 = vxor.u32 %v2980, 2147483648
      %v2986 = vsel %vm2984, %v2979, %v2985
      %vm2987 = vcmp.eq.s32.totalorder %v2982, 2
      %v2988 = vxor.u32 %v2979, 2147483648
      %v2989 = vsel %vm2987, %v2988, %v2980
      %v2990 = vsel %vm2983, %v2986, %v2989
      %v2991 = vsel %vm2981, nan, %v2990
      %v2992 = vand.u32 2147483647, %v332
      %vm2993 = vcmp.le.f32.partialorder %v2992, 0.7853982
      %vm2994 = vcmp.lt.s32.totalorder %v332, 0
      %v2995 = vand.u32 %v332, 2139095040
      %v2996 = vshrl.u32 %v2995, 23
      %v2997 = vsub.s32 %v2996, 127
      %v2998 = vand.u32 2147483647, %v332
      %v2999 = vand.u32 %v2998, 8388607
      %v3000 = vor.u32 %v2999, 8388608
      %v3001 = vsub.s32 0, %v3000
      %v3002 = vadd.s32 %v2997, 1
      %vm3003 = vcmp.gt.s32.totalorder %v3002, 0
      %v3004 = vsel %vm3003, %v3002, 0
      %v3005 = vshrl.u32 %v3004, 5
      %v3006 = vand.u32 %v3004, 31
      %v3007 = vsub.s32 32, %v3006
      %v3008 = vshrl.u32 683565275, %v3007
      %v3009 = vshll.u32 683565275, %v3006
      %v3010 = vshrl.u32 2475754826, %v3007
      %v3011 = vor.u32 %v3009, %v3010
      %v3012 = vshll.u32 2475754826, %v3006
      %v3013 = vshrl.u32 2131351028, %v3007
      %v3014 = vor.u32 %v3012, %v3013
      %v3015 = vshll.u32 2131351028, %v3006
      %v3016 = vshrl.u32 2102212464, %v3007
      %v3017 = vor.u32 %v3015, %v3016
      %v3018 = vshll.u32 2102212464, %v3006
      %v3019 = vshrl.u32 920167782, %v3007
      %v3020 = vor.u32 %v3018, %v3019
      %v3021 = vshll.u32 920167782, %v3006
      %v3022 = vshrl.u32 1326507024, %v3007
      %v3023 = vor.u32 %v3021, %v3022
      %vm3024 = vcmp.lt.s32.totalorder %v3005, 1
      %vm3025 = vcmp.lt.s32.totalorder %v3005, 2
      %vm3026 = vcmp.lt.s32.totalorder %v3005, 3
      %vm3027 = vcmp.lt.s32.totalorder %v3005, 4
      %v3028 = vsel %vm3024, %v3008, %v3011
      %v3029 = vsel %vm3027, %v3017, 2102212464
      %v3030 = vsel %vm3026, %v3014, %v3029
      %v3031 = vsel %vm3025, %v3028, %v3030
      %v3032 = vsel %vm3024, %v3011, %v3014
      %v3033 = vsel %vm3027, %v3020, 920167782
      %v3034 = vsel %vm3026, %v3017, %v3033
      %v3035 = vsel %vm3025, %v3032, %v3034
      %v3036 = vsel %vm3024, %v3014, %v3017
      %v3037 = vsel %vm3027, %v3023, 1326507024
      %v3038 = vsel %vm3026, %v3020, %v3037
      %v3039 = vsel %vm3025, %v3036, %v3038
      %v3040 = vshll.u32 %v3000, 8
      %v3041 = vmul.u32.u64.compose %v3040, %v3039
      %v3042 = vextract.low.u32 %v3041
      %v3043 = vextract.high.u32 %v3041
      %v3044 = vmul.u32.u64.compose %v3040, %v3035
      %v3045 = vextract.low.u32 %v3044
      %v3046 = vextract.high.u32 %v3044
      %v3047 = vmul.u32 %v3040, %v3031
      %v3048 = vadd.s32 %v3043, %v3045
      %vm3049 = vc.u32 %v3043, %v3045
      %v3050 = vadd.s32 %v3046, 1
      %v3051 = vsel %vm3049, %v3050, %v3046
      %v3052 = vadd.s32 %v3047, %v3051
      %v3053 = vadd.s32 %v3052, 536870912
      %v3054 = vshrl.u32 %v3053, 30
      %v3055 = vshll.u32 %v3054, 30
      %v3056 = vsub.s32 %v3052, %v3055
      %vm3057 = vcmp.lt.s32.totalorder %v3056, 0
      %v3058 = vsub.s32 0, %v3056
      %v3059 = vsel %vm3057, %v3058, %v3056
      %v3060 = vclz %v3059
      %v3061 = vsub.s32 %v3060, 2
      %vm3062 = vcmp.gt.s32.totalorder 0, %v3061
      %v3063 = vsel %vm3062, 0, %v3061
      %v3064 = vsub.s32 32, %v3063
      %v3065 = vshll.u32 %v3056, %v3063
      %v3066 = vshrl.u32 %v3048, %v3064
      %v3067 = vor.u32 %v3065, %v3066
      %v3068 = vsub.s32 4294967266, %v3063
      %v3069 = vadd.s32 %v3068, 127
      %v3070 = vshll.u32 %v3069, 23
      %v3071 = vor.u32 4788187, %v3070
      %v3072 = vand.u32 2147483647, %v3071
      %v3074 = vcvt.s32.f32 %v3067
      %v3075 = vmul.f32 %v3074, %v3072
      %v3076 = vxor.u32 %v3075, 2147483648
      %v3077 = vsel %vm2994, %v3076, %v3075
      %v3078 = vsub.s32 4, %v3054
      %v3079 = vsel %vm2994, %v3078, %v3054
      %v3080 = vsel %vm2993, %v332, %v3077
      %v3081 = vsel %vm2993, 0, %v3079
      %v3082 = vcosq.f32.pop %v3080
      %v3083 = vsinq.f32.pop %v3080
      %vm3084 = vweird.f32 %v332
      %v3085 = vand.u32 %v3081, 3
      %vm3086 = vcmp.lt.s32.totalorder %v3085, 2
      %vm3087 = vcmp.eq.s32.totalorder %v3085, 0
      %v3088 = vxor.u32 %v3083, 2147483648
      %v3089 = vsel %vm3087, %v3082, %v3088
      %vm3090 = vcmp.eq.s32.totalorder %v3085, 2
      %v3091 = vxor.u32 %v3082, 2147483648
      %v3092 = vsel %vm3090, %v3091, %v3083
      %v3093 = vsel %vm3086, %v3089, %v3092
      %v3094 = vsel %vm3084, nan, %v3093
      %v3095 = vand.u32 2147483647, %v338
      %vm3096 = vcmp.le.f32.partialorder %v3095, 0.7853982
      %vm3097 = vcmp.lt.s32.totalorder %v338, 0
      %v3098 = vand.u32 %v338, 2139095040
      %v3099 = vshrl.u32 %v3098, 23
      %v3100 = vsub.s32 %v3099, 127
      %v3101 = vand.u32 2147483647, %v338
      %v3102 = vand.u32 %v3101, 8388607
      %v3103 = vor.u32 %v3102, 8388608
      %v3104 = vsub.s32 0, %v3103
      %v3105 = vadd.s32 %v3100, 1
      %vm3106 = vcmp.gt.s32.totalorder %v3105, 0
      %v3107 = vsel %vm3106, %v3105, 0
      %v3108 = vshrl.u32 %v3107, 5
      %v3109 = vand.u32 %v3107, 31
      %v3110 = vsub.s32 32, %v3109
      %v3111 = vshrl.u32 683565275, %v3110
      %v3112 = vshll.u32 683565275, %v3109
      %v3113 = vshrl.u32 2475754826, %v3110
      %v3114 = vor.u32 %v3112, %v3113
      %v3115 = vshll.u32 2475754826, %v3109
      %v3116 = vshrl.u32 2131351028, %v3110
      %v3117 = vor.u32 %v3115, %v3116
      %v3118 = vshll.u32 2131351028, %v3109
      %v3119 = vshrl.u32 2102212464, %v3110
      %v3120 = vor.u32 %v3118, %v3119
      %v3121 = vshll.u32 2102212464, %v3109
      %v3122 = vshrl.u32 920167782, %v3110
      %v3123 = vor.u32 %v3121, %v3122
      %v3124 = vshll.u32 920167782, %v3109
      %v3125 = vshrl.u32 1326507024, %v3110
      %v3126 = vor.u32 %v3124, %v3125
      %vm3127 = vcmp.lt.s32.totalorder %v3108, 1
      %vm3128 = vcmp.lt.s32.totalorder %v3108, 2
      %vm3129 = vcmp.lt.s32.totalorder %v3108, 3
      %vm3130 = vcmp.lt.s32.totalorder %v3108, 4
      %v3131 = vsel %vm3127, %v3111, %v3114
      %v3132 = vsel %vm3130, %v3120, 2102212464
      %v3133 = vsel %vm3129, %v3117, %v3132
      %v3134 = vsel %vm3128, %v3131, %v3133
      %v3135 = vsel %vm3127, %v3114, %v3117
      %v3136 = vsel %vm3130, %v3123, 920167782
      %v3137 = vsel %vm3129, %v3120, %v3136
      %v3138 = vsel %vm3128, %v3135, %v3137
      %v3139 = vsel %vm3127, %v3117, %v3120
      %v3140 = vsel %vm3130, %v3126, 1326507024
      %v3141 = vsel %vm3129, %v3123, %v3140
      %v3142 = vsel %vm3128, %v3139, %v3141
      %v3143 = vshll.u32 %v3103, 8
      %v3144 = vmul.u32.u64.compose %v3143, %v3142
      %v3145 = vextract.low.u32 %v3144
      %v3146 = vextract.high.u32 %v3144
      %v3147 = vmul.u32.u64.compose %v3143, %v3138
      %v3148 = vextract.low.u32 %v3147
      %v3149 = vextract.high.u32 %v3147
      %v3150 = vmul.u32 %v3143, %v3134
      %v3151 = vadd.s32 %v3146, %v3148
      %vm3152 = vc.u32 %v3146, %v3148
      %v3153 = vadd.s32 %v3149, 1
      %v3154 = vsel %vm3152, %v3153, %v3149
      %v3155 = vadd.s32 %v3150, %v3154
      %v3156 = vadd.s32 %v3155, 536870912
      %v3157 = vshrl.u32 %v3156, 30
      %v3158 = vshll.u32 %v3157, 30
      %v3159 = vsub.s32 %v3155, %v3158
      %vm3160 = vcmp.lt.s32.totalorder %v3159, 0
      %v3161 = vsub.s32 0, %v3159
      %v3162 = vsel %vm3160, %v3161, %v3159
      %v3163 = vclz %v3162
      %v3164 = vsub.s32 %v3163, 2
      %vm3165 = vcmp.gt.s32.totalorder 0, %v3164
      %v3166 = vsel %vm3165, 0, %v3164
      %v3167 = vsub.s32 32, %v3166
      %v3168 = vshll.u32 %v3159, %v3166
      %v3169 = vshrl.u32 %v3151, %v3167
      %v3170 = vor.u32 %v3168, %v3169
      %v3171 = vsub.s32 4294967266, %v3166
      %v3172 = vadd.s32 %v3171, 127
      %v3173 = vshll.u32 %v3172, 23
      %v3174 = vor.u32 4788187, %v3173
      %v3175 = vand.u32 2147483647, %v3174
      %v3177 = vcvt.s32.f32 %v3170
      %v3178 = vmul.f32 %v3177, %v3175
      %v3179 = vxor.u32 %v3178, 2147483648
      %v3180 = vsel %vm3097, %v3179, %v3178
      %v3181 = vsub.s32 4, %v3157
      %v3182 = vsel %vm3097, %v3181, %v3157
      %v3183 = vsel %vm3096, %v338, %v3180
      %v3184 = vsel %vm3096, 0, %v3182
      %v3185 = vcosq.f32.pop %v3183
      %v3186 = vsinq.f32.pop %v3183
      %vm3187 = vweird.f32 %v338
      %v3188 = vand.u32 %v3184, 3
      %vm3189 = vcmp.lt.s32.totalorder %v3188, 2
      %vm3190 = vcmp.eq.s32.totalorder %v3188, 0
      %v3191 = vxor.u32 %v3186, 2147483648
      %v3192 = vsel %vm3190, %v3185, %v3191
      %vm3193 = vcmp.eq.s32.totalorder %v3188, 2
      %v3194 = vxor.u32 %v3185, 2147483648
      %v3195 = vsel %vm3193, %v3194, %v3186
      %v3196 = vsel %vm3189, %v3192, %v3195
      %v3197 = vsel %vm3187, nan, %v3196
      %v3198 = vand.u32 2147483647, %v342
      %vm3199 = vcmp.le.f32.partialorder %v3198, 0.7853982
      %vm3200 = vcmp.lt.s32.totalorder %v342, 0
      %v3201 = vand.u32 %v342, 2139095040
      %v3202 = vshrl.u32 %v3201, 23
      %v3203 = vsub.s32 %v3202, 127
      %v3204 = vand.u32 2147483647, %v342
      %v3205 = vand.u32 %v3204, 8388607
      %v3206 = vor.u32 %v3205, 8388608
      %v3207 = vsub.s32 0, %v3206
      %v3208 = vadd.s32 %v3203, 1
      %vm3209 = vcmp.gt.s32.totalorder %v3208, 0
      %v3210 = vsel %vm3209, %v3208, 0
      %v3211 = vshrl.u32 %v3210, 5
      %v3212 = vand.u32 %v3210, 31
      %v3213 = vsub.s32 32, %v3212
      %v3214 = vshrl.u32 683565275, %v3213
      %v3215 = vshll.u32 683565275, %v3212
      %v3216 = vshrl.u32 2475754826, %v3213
      %v3217 = vor.u32 %v3215, %v3216
      %v3218 = vshll.u32 2475754826, %v3212
      %v3219 = vshrl.u32 2131351028, %v3213
      %v3220 = vor.u32 %v3218, %v3219
      %v3221 = vshll.u32 2131351028, %v3212
      %v3222 = vshrl.u32 2102212464, %v3213
      %v3223 = vor.u32 %v3221, %v3222
      %v3224 = vshll.u32 2102212464, %v3212
      %v3225 = vshrl.u32 920167782, %v3213
      %v3226 = vor.u32 %v3224, %v3225
      %v3227 = vshll.u32 920167782, %v3212
      %v3228 = vshrl.u32 1326507024, %v3213
      %v3229 = vor.u32 %v3227, %v3228
      %vm3230 = vcmp.lt.s32.totalorder %v3211, 1
      %vm3231 = vcmp.lt.s32.totalorder %v3211, 2
      %vm3232 = vcmp.lt.s32.totalorder %v3211, 3
      %vm3233 = vcmp.lt.s32.totalorder %v3211, 4
      %v3234 = vsel %vm3230, %v3214, %v3217
      %v3235 = vsel %vm3233, %v3223, 2102212464
      %v3236 = vsel %vm3232, %v3220, %v3235
      %v3237 = vsel %vm3231, %v3234, %v3236
      %v3238 = vsel %vm3230, %v3217, %v3220
      %v3239 = vsel %vm3233, %v3226, 920167782
      %v3240 = vsel %vm3232, %v3223, %v3239
      %v3241 = vsel %vm3231, %v3238, %v3240
      %v3242 = vsel %vm3230, %v3220, %v3223
      %v3243 = vsel %vm3233, %v3229, 1326507024
      %v3244 = vsel %vm3232, %v3226, %v3243
      %v3245 = vsel %vm3231, %v3242, %v3244
      %v3246 = vshll.u32 %v3206, 8
      %v3247 = vmul.u32.u64.compose %v3246, %v3245
      %v3248 = vextract.low.u32 %v3247
      %v3249 = vextract.high.u32 %v3247
      %v3250 = vmul.u32.u64.compose %v3246, %v3241
      %v3251 = vextract.low.u32 %v3250
      %v3252 = vextract.high.u32 %v3250
      %v3253 = vmul.u32 %v3246, %v3237
      %v3254 = vadd.s32 %v3249, %v3251
      %vm3255 = vc.u32 %v3249, %v3251
      %v3256 = vadd.s32 %v3252, 1
      %v3257 = vsel %vm3255, %v3256, %v3252
      %v3258 = vadd.s32 %v3253, %v3257
      %v3259 = vadd.s32 %v3258, 536870912
      %v3260 = vshrl.u32 %v3259, 30
      %v3261 = vshll.u32 %v3260, 30
      %v3262 = vsub.s32 %v3258, %v3261
      %vm3263 = vcmp.lt.s32.totalorder %v3262, 0
      %v3264 = vsub.s32 0, %v3262
      %v3265 = vsel %vm3263, %v3264, %v3262
      %v3266 = vclz %v3265
      %v3267 = vsub.s32 %v3266, 2
      %vm3268 = vcmp.gt.s32.totalorder 0, %v3267
      %v3269 = vsel %vm3268, 0, %v3267
      %v3270 = vsub.s32 32, %v3269
      %v3271 = vshll.u32 %v3262, %v3269
      %v3272 = vshrl.u32 %v3254, %v3270
      %v3273 = vor.u32 %v3271, %v3272
      %v3274 = vsub.s32 4294967266, %v3269
      %v3275 = vadd.s32 %v3274, 127
      %v3276 = vshll.u32 %v3275, 23
      %v3277 = vor.u32 4788187, %v3276
      %v3278 = vand.u32 2147483647, %v3277
      %v3280 = vcvt.s32.f32 %v3273
      %v3281 = vmul.f32 %v3280, %v3278
      %v3282 = vxor.u32 %v3281, 2147483648
      %v3283 = vsel %vm3200, %v3282, %v3281
      %v3284 = vsub.s32 4, %v3260
      %v3285 = vsel %vm3200, %v3284, %v3260
      %v3286 = vsel %vm3199, %v342, %v3283
      %v3287 = vsel %vm3199, 0, %v3285
      %v3288 = vcosq.f32.pop %v3286
      %v3289 = vsinq.f32.pop %v3286
      %vm3290 = vweird.f32 %v342
      %v3291 = vand.u32 %v3287, 3
      %vm3292 = vcmp.lt.s32.totalorder %v3291, 2
      %vm3293 = vcmp.eq.s32.totalorder %v3291, 0
      %v3294 = vxor.u32 %v3289, 2147483648
      %v3295 = vsel %vm3293, %v3288, %v3294
      %vm3296 = vcmp.eq.s32.totalorder %v3291, 2
      %v3297 = vxor.u32 %v3288, 2147483648
      %v3298 = vsel %vm3296, %v3297, %v3289
      %v3299 = vsel %vm3292, %v3295, %v3298
      %v3300 = vsel %vm3290, nan, %v3299
      %v3301 = vand.u32 2147483647, %v348
      %vm3302 = vcmp.le.f32.partialorder %v3301, 0.7853982
      %vm3303 = vcmp.lt.s32.totalorder %v348, 0
      %v3304 = vand.u32 %v348, 2139095040
      %v3305 = vshrl.u32 %v3304, 23
      %v3306 = vsub.s32 %v3305, 127
      %v3307 = vand.u32 2147483647, %v348
      %v3308 = vand.u32 %v3307, 8388607
      %v3309 = vor.u32 %v3308, 8388608
      %v3310 = vsub.s32 0, %v3309
      %v3311 = vadd.s32 %v3306, 1
      %vm3312 = vcmp.gt.s32.totalorder %v3311, 0
      %v3313 = vsel %vm3312, %v3311, 0
      %v3314 = vshrl.u32 %v3313, 5
      %v3315 = vand.u32 %v3313, 31
      %v3316 = vsub.s32 32, %v3315
      %v3317 = vshrl.u32 683565275, %v3316
      %v3318 = vshll.u32 683565275, %v3315
      %v3319 = vshrl.u32 2475754826, %v3316
      %v3320 = vor.u32 %v3318, %v3319
      %v3321 = vshll.u32 2475754826, %v3315
      %v3322 = vshrl.u32 2131351028, %v3316
      %v3323 = vor.u32 %v3321, %v3322
      %v3324 = vshll.u32 2131351028, %v3315
      %v3325 = vshrl.u32 2102212464, %v3316
      %v3326 = vor.u32 %v3324, %v3325
      %v3327 = vshll.u32 2102212464, %v3315
      %v3328 = vshrl.u32 920167782, %v3316
      %v3329 = vor.u32 %v3327, %v3328
      %v3330 = vshll.u32 920167782, %v3315
      %v3331 = vshrl.u32 1326507024, %v3316
      %v3332 = vor.u32 %v3330, %v3331
      %vm3333 = vcmp.lt.s32.totalorder %v3314, 1
      %vm3334 = vcmp.lt.s32.totalorder %v3314, 2
      %vm3335 = vcmp.lt.s32.totalorder %v3314, 3
      %vm3336 = vcmp.lt.s32.totalorder %v3314, 4
      %v3337 = vsel %vm3333, %v3317, %v3320
      %v3338 = vsel %vm3336, %v3326, 2102212464
      %v3339 = vsel %vm3335, %v3323, %v3338
      %v3340 = vsel %vm3334, %v3337, %v3339
      %v3341 = vsel %vm3333, %v3320, %v3323
      %v3342 = vsel %vm3336, %v3329, 920167782
      %v3343 = vsel %vm3335, %v3326, %v3342
      %v3344 = vsel %vm3334, %v3341, %v3343
      %v3345 = vsel %vm3333, %v3323, %v3326
      %v3346 = vsel %vm3336, %v3332, 1326507024
      %v3347 = vsel %vm3335, %v3329, %v3346
      %v3348 = vsel %vm3334, %v3345, %v3347
      %v3349 = vshll.u32 %v3309, 8
      %v3350 = vmul.u32.u64.compose %v3349, %v3348
      %v3351 = vextract.low.u32 %v3350
      %v3352 = vextract.high.u32 %v3350
      %v3353 = vmul.u32.u64.compose %v3349, %v3344
      %v3354 = vextract.low.u32 %v3353
      %v3355 = vextract.high.u32 %v3353
      %v3356 = vmul.u32 %v3349, %v3340
      %v3357 = vadd.s32 %v3352, %v3354
      %vm3358 = vc.u32 %v3352, %v3354
      %v3359 = vadd.s32 %v3355, 1
      %v3360 = vsel %vm3358, %v3359, %v3355
      %v3361 = vadd.s32 %v3356, %v3360
      %v3362 = vadd.s32 %v3361, 536870912
      %v3363 = vshrl.u32 %v3362, 30
      %v3364 = vshll.u32 %v3363, 30
      %v3365 = vsub.s32 %v3361, %v3364
      %vm3366 = vcmp.lt.s32.totalorder %v3365, 0
      %v3367 = vsub.s32 0, %v3365
      %v3368 = vsel %vm3366, %v3367, %v3365
      %v3369 = vclz %v3368
      %v3370 = vsub.s32 %v3369, 2
      %vm3371 = vcmp.gt.s32.totalorder 0, %v3370
      %v3372 = vsel %vm3371, 0, %v3370
      %v3373 = vsub.s32 32, %v3372
      %v3374 = vshll.u32 %v3365, %v3372
      %v3375 = vshrl.u32 %v3357, %v3373
      %v3376 = vor.u32 %v3374, %v3375
      %v3377 = vsub.s32 4294967266, %v3372
      %v3378 = vadd.s32 %v3377, 127
      %v3379 = vshll.u32 %v3378, 23
      %v3380 = vor.u32 4788187, %v3379
      %v3381 = vand.u32 2147483647, %v3380
      %v3383 = vcvt.s32.f32 %v3376
      %v3384 = vmul.f32 %v3383, %v3381
      %v3385 = vxor.u32 %v3384, 2147483648
      %v3386 = vsel %vm3303, %v3385, %v3384
      %v3387 = vsub.s32 4, %v3363
      %v3388 = vsel %vm3303, %v3387, %v3363
      %v3389 = vsel %vm3302, %v348, %v3386
      %v3390 = vsel %vm3302, 0, %v3388
      %v3391 = vcosq.f32.pop %v3389
      %v3392 = vsinq.f32.pop %v3389
      %vm3393 = vweird.f32 %v348
      %v3394 = vand.u32 %v3390, 3
      %vm3395 = vcmp.lt.s32.totalorder %v3394, 2
      %vm3396 = vcmp.eq.s32.totalorder %v3394, 0
      %v3397 = vxor.u32 %v3392, 2147483648
      %v3398 = vsel %vm3396, %v3391, %v3397
      %vm3399 = vcmp.eq.s32.totalorder %v3394, 2
      %v3400 = vxor.u32 %v3391, 2147483648
      %v3401 = vsel %vm3399, %v3400, %v3392
      %v3402 = vsel %vm3395, %v3398, %v3401
      %v3403 = vsel %vm3393, nan, %v3402
      %v3404 = vand.u32 2147483647, %v352
      %vm3405 = vcmp.le.f32.partialorder %v3404, 0.7853982
      %vm3406 = vcmp.lt.s32.totalorder %v352, 0
      %v3407 = vand.u32 %v352, 2139095040
      %v3408 = vshrl.u32 %v3407, 23
      %v3409 = vsub.s32 %v3408, 127
      %v3410 = vand.u32 2147483647, %v352
      %v3411 = vand.u32 %v3410, 8388607
      %v3412 = vor.u32 %v3411, 8388608
      %v3413 = vsub.s32 0, %v3412
      %v3414 = vadd.s32 %v3409, 1
      %vm3415 = vcmp.gt.s32.totalorder %v3414, 0
      %v3416 = vsel %vm3415, %v3414, 0
      %v3417 = vshrl.u32 %v3416, 5
      %v3418 = vand.u32 %v3416, 31
      %v3419 = vsub.s32 32, %v3418
      %v3420 = vshrl.u32 683565275, %v3419
      %v3421 = vshll.u32 683565275, %v3418
      %v3422 = vshrl.u32 2475754826, %v3419
      %v3423 = vor.u32 %v3421, %v3422
      %v3424 = vshll.u32 2475754826, %v3418
      %v3425 = vshrl.u32 2131351028, %v3419
      %v3426 = vor.u32 %v3424, %v3425
      %v3427 = vshll.u32 2131351028, %v3418
      %v3428 = vshrl.u32 2102212464, %v3419
      %v3429 = vor.u32 %v3427, %v3428
      %v3430 = vshll.u32 2102212464, %v3418
      %v3431 = vshrl.u32 920167782, %v3419
      %v3432 = vor.u32 %v3430, %v3431
      %v3433 = vshll.u32 920167782, %v3418
      %v3434 = vshrl.u32 1326507024, %v3419
      %v3435 = vor.u32 %v3433, %v3434
      %vm3436 = vcmp.lt.s32.totalorder %v3417, 1
      %vm3437 = vcmp.lt.s32.totalorder %v3417, 2
      %vm3438 = vcmp.lt.s32.totalorder %v3417, 3
      %vm3439 = vcmp.lt.s32.totalorder %v3417, 4
      %v3440 = vsel %vm3436, %v3420, %v3423
      %v3441 = vsel %vm3439, %v3429, 2102212464
      %v3442 = vsel %vm3438, %v3426, %v3441
      %v3443 = vsel %vm3437, %v3440, %v3442
      %v3444 = vsel %vm3436, %v3423, %v3426
      %v3445 = vsel %vm3439, %v3432, 920167782
      %v3446 = vsel %vm3438, %v3429, %v3445
      %v3447 = vsel %vm3437, %v3444, %v3446
      %v3448 = vsel %vm3436, %v3426, %v3429
      %v3449 = vsel %vm3439, %v3435, 1326507024
      %v3450 = vsel %vm3438, %v3432, %v3449
      %v3451 = vsel %vm3437, %v3448, %v3450
      %v3452 = vshll.u32 %v3412, 8
      %v3453 = vmul.u32.u64.compose %v3452, %v3451
      %v3454 = vextract.low.u32 %v3453
      %v3455 = vextract.high.u32 %v3453
      %v3456 = vmul.u32.u64.compose %v3452, %v3447
      %v3457 = vextract.low.u32 %v3456
      %v3458 = vextract.high.u32 %v3456
      %v3459 = vmul.u32 %v3452, %v3443
      %v3460 = vadd.s32 %v3455, %v3457
      %vm3461 = vc.u32 %v3455, %v3457
      %v3462 = vadd.s32 %v3458, 1
      %v3463 = vsel %vm3461, %v3462, %v3458
      %v3464 = vadd.s32 %v3459, %v3463
      %v3465 = vadd.s32 %v3464, 536870912
      %v3466 = vshrl.u32 %v3465, 30
      %v3467 = vshll.u32 %v3466, 30
      %v3468 = vsub.s32 %v3464, %v3467
      %vm3469 = vcmp.lt.s32.totalorder %v3468, 0
      %v3470 = vsub.s32 0, %v3468
      %v3471 = vsel %vm3469, %v3470, %v3468
      %v3472 = vclz %v3471
      %v3473 = vsub.s32 %v3472, 2
      %vm3474 = vcmp.gt.s32.totalorder 0, %v3473
      %v3475 = vsel %vm3474, 0, %v3473
      %v3476 = vsub.s32 32, %v3475
      %v3477 = vshll.u32 %v3468, %v3475
      %v3478 = vshrl.u32 %v3460, %v3476
      %v3479 = vor.u32 %v3477, %v3478
      %v3480 = vsub.s32 4294967266, %v3475
      %v3481 = vadd.s32 %v3480, 127
      %v3482 = vshll.u32 %v3481, 23
      %v3483 = vor.u32 4788187, %v3482
      %v3484 = vand.u32 2147483647, %v3483
      %v3486 = vcvt.s32.f32 %v3479
      %v3487 = vmul.f32 %v3486, %v3484
      %v3488 = vxor.u32 %v3487, 2147483648
      %v3489 = vsel %vm3406, %v3488, %v3487
      %v3490 = vsub.s32 4, %v3466
      %v3491 = vsel %vm3406, %v3490, %v3466
      %v3492 = vsel %vm3405, %v352, %v3489
      %v3493 = vsel %vm3405, 0, %v3491
      %v3494 = vcosq.f32.pop %v3492
      %v3495 = vsinq.f32.pop %v3492
      %vm3496 = vweird.f32 %v352
      %v3497 = vand.u32 %v3493, 3
      %vm3498 = vcmp.lt.s32.totalorder %v3497, 2
      %vm3499 = vcmp.eq.s32.totalorder %v3497, 0
      %v3500 = vxor.u32 %v3495, 2147483648
      %v3501 = vsel %vm3499, %v3494, %v3500
      %vm3502 = vcmp.eq.s32.totalorder %v3497, 2
      %v3503 = vxor.u32 %v3494, 2147483648
      %v3504 = vsel %vm3502, %v3503, %v3495
      %v3505 = vsel %vm3498, %v3501, %v3504
      %v3506 = vsel %vm3496, nan, %v3505
      %v3507 = vand.u32 2147483647, %v358
      %vm3508 = vcmp.le.f32.partialorder %v3507, 0.7853982
      %vm3509 = vcmp.lt.s32.totalorder %v358, 0
      %v3510 = vand.u32 %v358, 2139095040
      %v3511 = vshrl.u32 %v3510, 23
      %v3512 = vsub.s32 %v3511, 127
      %v3513 = vand.u32 2147483647, %v358
      %v3514 = vand.u32 %v3513, 8388607
      %v3515 = vor.u32 %v3514, 8388608
      %v3516 = vsub.s32 0, %v3515
      %v3517 = vadd.s32 %v3512, 1
      %vm3518 = vcmp.gt.s32.totalorder %v3517, 0
      %v3519 = vsel %vm3518, %v3517, 0
      %v3520 = vshrl.u32 %v3519, 5
      %v3521 = vand.u32 %v3519, 31
      %v3522 = vsub.s32 32, %v3521
      %v3523 = vshrl.u32 683565275, %v3522
      %v3524 = vshll.u32 683565275, %v3521
      %v3525 = vshrl.u32 2475754826, %v3522
      %v3526 = vor.u32 %v3524, %v3525
      %v3527 = vshll.u32 2475754826, %v3521
      %v3528 = vshrl.u32 2131351028, %v3522
      %v3529 = vor.u32 %v3527, %v3528
      %v3530 = vshll.u32 2131351028, %v3521
      %v3531 = vshrl.u32 2102212464, %v3522
      %v3532 = vor.u32 %v3530, %v3531
      %v3533 = vshll.u32 2102212464, %v3521
      %v3534 = vshrl.u32 920167782, %v3522
      %v3535 = vor.u32 %v3533, %v3534
      %v3536 = vshll.u32 920167782, %v3521
      %v3537 = vshrl.u32 1326507024, %v3522
      %v3538 = vor.u32 %v3536, %v3537
      %vm3539 = vcmp.lt.s32.totalorder %v3520, 1
      %vm3540 = vcmp.lt.s32.totalorder %v3520, 2
      %vm3541 = vcmp.lt.s32.totalorder %v3520, 3
      %vm3542 = vcmp.lt.s32.totalorder %v3520, 4
      %v3543 = vsel %vm3539, %v3523, %v3526
      %v3544 = vsel %vm3542, %v3532, 2102212464
      %v3545 = vsel %vm3541, %v3529, %v3544
      %v3546 = vsel %vm3540, %v3543, %v3545
      %v3547 = vsel %vm3539, %v3526, %v3529
      %v3548 = vsel %vm3542, %v3535, 920167782
      %v3549 = vsel %vm3541, %v3532, %v3548
      %v3550 = vsel %vm3540, %v3547, %v3549
      %v3551 = vsel %vm3539, %v3529, %v3532
      %v3552 = vsel %vm3542, %v3538, 1326507024
      %v3553 = vsel %vm3541, %v3535, %v3552
      %v3554 = vsel %vm3540, %v3551, %v3553
      %v3555 = vshll.u32 %v3515, 8
      %v3556 = vmul.u32.u64.compose %v3555, %v3554
      %v3557 = vextract.low.u32 %v3556
      %v3558 = vextract.high.u32 %v3556
      %v3559 = vmul.u32.u64.compose %v3555, %v3550
      %v3560 = vextract.low.u32 %v3559
      %v3561 = vextract.high.u32 %v3559
      %v3562 = vmul.u32 %v3555, %v3546
      %v3563 = vadd.s32 %v3558, %v3560
      %vm3564 = vc.u32 %v3558, %v3560
      %v3565 = vadd.s32 %v3561, 1
      %v3566 = vsel %vm3564, %v3565, %v3561
      %v3567 = vadd.s32 %v3562, %v3566
      %v3568 = vadd.s32 %v3567, 536870912
      %v3569 = vshrl.u32 %v3568, 30
      %v3570 = vshll.u32 %v3569, 30
      %v3571 = vsub.s32 %v3567, %v3570
      %vm3572 = vcmp.lt.s32.totalorder %v3571, 0
      %v3573 = vsub.s32 0, %v3571
      %v3574 = vsel %vm3572, %v3573, %v3571
      %v3575 = vclz %v3574
      %v3576 = vsub.s32 %v3575, 2
      %vm3577 = vcmp.gt.s32.totalorder 0, %v3576
      %v3578 = vsel %vm3577, 0, %v3576
      %v3579 = vsub.s32 32, %v3578
      %v3580 = vshll.u32 %v3571, %v3578
      %v3581 = vshrl.u32 %v3563, %v3579
      %v3582 = vor.u32 %v3580, %v3581
      %v3583 = vsub.s32 4294967266, %v3578
      %v3584 = vadd.s32 %v3583, 127
      %v3585 = vshll.u32 %v3584, 23
      %v3586 = vor.u32 4788187, %v3585
      %v3587 = vand.u32 2147483647, %v3586
      %v3589 = vcvt.s32.f32 %v3582
      %v3590 = vmul.f32 %v3589, %v3587
      %v3591 = vxor.u32 %v3590, 2147483648
      %v3592 = vsel %vm3509, %v3591, %v3590
      %v3593 = vsub.s32 4, %v3569
      %v3594 = vsel %vm3509, %v3593, %v3569
      %v3595 = vsel %vm3508, %v358, %v3592
      %v3596 = vsel %vm3508, 0, %v3594
      %v3597 = vcosq.f32.pop %v3595
      %v3598 = vsinq.f32.pop %v3595
      %vm3599 = vweird.f32 %v358
      %v3600 = vand.u32 %v3596, 3
      %vm3601 = vcmp.lt.s32.totalorder %v3600, 2
      %vm3602 = vcmp.eq.s32.totalorder %v3600, 0
      %v3603 = vxor.u32 %v3598, 2147483648
      %v3604 = vsel %vm3602, %v3597, %v3603
      %vm3605 = vcmp.eq.s32.totalorder %v3600, 2
      %v3606 = vxor.u32 %v3597, 2147483648
      %v3607 = vsel %vm3605, %v3606, %v3598
      %v3608 = vsel %vm3601, %v3604, %v3607
      %v3609 = vsel %vm3599, nan, %v3608
      %v3610 = vand.u32 2147483647, %v362
      %vm3611 = vcmp.le.f32.partialorder %v3610, 0.7853982
      %vm3612 = vcmp.lt.s32.totalorder %v362, 0
      %v3613 = vand.u32 %v362, 2139095040
      %v3614 = vshrl.u32 %v3613, 23
      %v3615 = vsub.s32 %v3614, 127
      %v3616 = vand.u32 2147483647, %v362
      %v3617 = vand.u32 %v3616, 8388607
      %v3618 = vor.u32 %v3617, 8388608
      %v3619 = vsub.s32 0, %v3618
      %v3620 = vadd.s32 %v3615, 1
      %vm3621 = vcmp.gt.s32.totalorder %v3620, 0
      %v3622 = vsel %vm3621, %v3620, 0
      %v3623 = vshrl.u32 %v3622, 5
      %v3624 = vand.u32 %v3622, 31
      %v3625 = vsub.s32 32, %v3624
      %v3626 = vshrl.u32 683565275, %v3625
      %v3627 = vshll.u32 683565275, %v3624
      %v3628 = vshrl.u32 2475754826, %v3625
      %v3629 = vor.u32 %v3627, %v3628
      %v3630 = vshll.u32 2475754826, %v3624
      %v3631 = vshrl.u32 2131351028, %v3625
      %v3632 = vor.u32 %v3630, %v3631
      %v3633 = vshll.u32 2131351028, %v3624
      %v3634 = vshrl.u32 2102212464, %v3625
      %v3635 = vor.u32 %v3633, %v3634
      %v3636 = vshll.u32 2102212464, %v3624
      %v3637 = vshrl.u32 920167782, %v3625
      %v3638 = vor.u32 %v3636, %v3637
      %v3639 = vshll.u32 920167782, %v3624
      %v3640 = vshrl.u32 1326507024, %v3625
      %v3641 = vor.u32 %v3639, %v3640
      %vm3642 = vcmp.lt.s32.totalorder %v3623, 1
      %vm3643 = vcmp.lt.s32.totalorder %v3623, 2
      %vm3644 = vcmp.lt.s32.totalorder %v3623, 3
      %vm3645 = vcmp.lt.s32.totalorder %v3623, 4
      %v3646 = vsel %vm3642, %v3626, %v3629
      %v3647 = vsel %vm3645, %v3635, 2102212464
      %v3648 = vsel %vm3644, %v3632, %v3647
      %v3649 = vsel %vm3643, %v3646, %v3648
      %v3650 = vsel %vm3642, %v3629, %v3632
      %v3651 = vsel %vm3645, %v3638, 920167782
      %v3652 = vsel %vm3644, %v3635, %v3651
      %v3653 = vsel %vm3643, %v3650, %v3652
      %v3654 = vsel %vm3642, %v3632, %v3635
      %v3655 = vsel %vm3645, %v3641, 1326507024
      %v3656 = vsel %vm3644, %v3638, %v3655
      %v3657 = vsel %vm3643, %v3654, %v3656
      %v3658 = vshll.u32 %v3618, 8
      %v3659 = vmul.u32.u64.compose %v3658, %v3657
      %v3660 = vextract.low.u32 %v3659
      %v3661 = vextract.high.u32 %v3659
      %v3662 = vmul.u32.u64.compose %v3658, %v3653
      %v3663 = vextract.low.u32 %v3662
      %v3664 = vextract.high.u32 %v3662
      %v3665 = vmul.u32 %v3658, %v3649
      %v3666 = vadd.s32 %v3661, %v3663
      %vm3667 = vc.u32 %v3661, %v3663
      %v3668 = vadd.s32 %v3664, 1
      %v3669 = vsel %vm3667, %v3668, %v3664
      %v3670 = vadd.s32 %v3665, %v3669
      %v3671 = vadd.s32 %v3670, 536870912
      %v3672 = vshrl.u32 %v3671, 30
      %v3673 = vshll.u32 %v3672, 30
      %v3674 = vsub.s32 %v3670, %v3673
      %vm3675 = vcmp.lt.s32.totalorder %v3674, 0
      %v3676 = vsub.s32 0, %v3674
      %v3677 = vsel %vm3675, %v3676, %v3674
      %v3678 = vclz %v3677
      %v3679 = vsub.s32 %v3678, 2
      %vm3680 = vcmp.gt.s32.totalorder 0, %v3679
      %v3681 = vsel %vm3680, 0, %v3679
      %v3682 = vsub.s32 32, %v3681
      %v3683 = vshll.u32 %v3674, %v3681
      %v3684 = vshrl.u32 %v3666, %v3682
      %v3685 = vor.u32 %v3683, %v3684
      %v3686 = vsub.s32 4294967266, %v3681
      %v3687 = vadd.s32 %v3686, 127
      %v3688 = vshll.u32 %v3687, 23
      %v3689 = vor.u32 4788187, %v3688
      %v3690 = vand.u32 2147483647, %v3689
      %v3692 = vcvt.s32.f32 %v3685
      %v3693 = vmul.f32 %v3692, %v3690
      %v3694 = vxor.u32 %v3693, 2147483648
      %v3695 = vsel %vm3612, %v3694, %v3693
      %v3696 = vsub.s32 4, %v3672
      %v3697 = vsel %vm3612, %v3696, %v3672
      %v3698 = vsel %vm3611, %v362, %v3695
      %v3699 = vsel %vm3611, 0, %v3697
      %v3700 = vcosq.f32.pop %v3698
      %v3701 = vsinq.f32.pop %v3698
      %vm3702 = vweird.f32 %v362
      %v3703 = vand.u32 %v3699, 3
      %vm3704 = vcmp.lt.s32.totalorder %v3703, 2
      %vm3705 = vcmp.eq.s32.totalorder %v3703, 0
      %v3706 = vxor.u32 %v3701, 2147483648
      %v3707 = vsel %vm3705, %v3700, %v3706
      %vm3708 = vcmp.eq.s32.totalorder %v3703, 2
      %v3709 = vxor.u32 %v3700, 2147483648
      %v3710 = vsel %vm3708, %v3709, %v3701
      %v3711 = vsel %vm3704, %v3707, %v3710
      %v3712 = vsel %vm3702, nan, %v3711
      %vm3713 = vcmp.eq.s32.totalorder %v383, 1
      %v3714 = vsel %vm3713, %v2167, %v2049
      %v3715 = vsel %vm3713, %v2270, %v2050
      %v3716 = vsel %vm3713, %v2373, %v2051
      %v3717 = vsel %vm3713, %v2476, %v2052
      %v3718 = vsel %vm3713, %v2579, %v2053
      %v3719 = vsel %vm3713, %v2682, %v2054
      %v3720 = vsel %vm3713, %v2785, %v2055
      %v3721 = vsel %vm3713, %v2888, %v2056
      %v3722 = vsel %vm3713, %v2991, %v2057
      %v3723 = vsel %vm3713, %v3094, %v2058
      %v3724 = vsel %vm3713, %v3197, %v2059
      %v3725 = vsel %vm3713, %v3300, %v2060
      %v3726 = vsel %vm3713, %v3403, %v2061
      %v3727 = vsel %vm3713, %v3506, %v2062
      %v3728 = vsel %vm3713, %v3609, %v2063
      %v3729 = vsel %vm3713, %v3712, %v2064
      %v3730 = vmul.f32 %v288, %v288
      %v3731 = vmul.f32 %v292, %v292
      %v3732 = vmul.f32 %v298, %v298
      %v3733 = vmul.f32 %v302, %v302
      %v3734 = vmul.f32 %v308, %v308
      %v3735 = vmul.f32 %v312, %v312
      %v3736 = vmul.f32 %v318, %v318
      %v3737 = vmul.f32 %v322, %v322
      %v3738 = vmul.f32 %v328, %v328
      %v3739 = vmul.f32 %v332, %v332
      %v3740 = vmul.f32 %v338, %v338
      %v3741 = vmul.f32 %v342, %v342
      %v3742 = vmul.f32 %v348, %v348
      %v3743 = vmul.f32 %v352, %v352
      %v3744 = vmul.f32 %v358, %v358
      %v3745 = vmul.f32 %v362, %v362
      %vm3746 = vcmp.eq.s32.totalorder %v383, 2
      %v3747 = vsel %vm3746, %v3730, %v3714
      %v3748 = vsel %vm3746, %v3731, %v3715
      %v3749 = vsel %vm3746, %v3732, %v3716
      %v3750 = vsel %vm3746, %v3733, %v3717
      %v3751 = vsel %vm3746, %v3734, %v3718
      %v3752 = vsel %vm3746, %v3735, %v3719
      %v3753 = vsel %vm3746, %v3736, %v3720
      %v3754 = vsel %vm3746, %v3737, %v3721
      %v3755 = vsel %vm3746, %v3738, %v3722
      %v3756 = vsel %vm3746, %v3739, %v3723
      %v3757 = vsel %vm3746, %v3740, %v3724
      %v3758 = vsel %vm3746, %v3741, %v3725
      %v3759 = vsel %vm3746, %v3742, %v3726
      %v3760 = vsel %vm3746, %v3743, %v3727
      %v3761 = vsel %vm3746, %v3744, %v3728
      %v3762 = vsel %vm3746, %v3745, %v3729
      %3763 = vst [vmem:[%s145] sm:$0xff] %v3747
      %3764 = vst [vmem:[%s145 + $0x8] sm:$0xff] %v3748
      %3765 = vst [vmem:[%s145 + $0x10] sm:$0xff] %v3749
      %3766 = vst [vmem:[%s145 + $0x18] sm:$0xff] %v3750
      %3767 = vst [vmem:[%s145 + $0x20] sm:$0xff] %v3751
      %3768 = vst [vmem:[%s145 + $0x28] sm:$0xff] %v3752
      %3769 = vst [vmem:[%s145 + $0x30] sm:$0xff] %v3753
      %3770 = vst [vmem:[%s145 + $0x38] sm:$0xff] %v3754
      %3771 = vst [vmem:[%s145 + $0x40] sm:$0xff] %v3755
      %3772 = vst [vmem:[%s145 + $0x48] sm:$0xff] %v3756
      %3773 = vst [vmem:[%s145 + $0x50] sm:$0xff] %v3757
      %3774 = vst [vmem:[%s145 + $0x58] sm:$0xff] %v3758
      %3775 = vst [vmem:[%s145 + $0x60] sm:$0xff] %v3759
      %3776 = vst [vmem:[%s145 + $0x68] sm:$0xff] %v3760
      %3777 = vst [vmem:[%s145 + $0x70] sm:$0xff] %v3761
      %3778 = vst [vmem:[%s145 + $0x78] sm:$0xff] %v3762
      %s3779 = smul.u32 16, %s13
      %p3780 = scmp.lt.s32.totalorder %s3779, 31
      %s3781 = scalar_select %p3780, %s3779, 31
      %s3782 = smul.addr %s3781, 8
      %s3783 = scalar_lea.vmem %s2, %s3782
      // Predicated region
      $region29: #{masked_srnet_forward.1} parent=27 // pred_check
        %p3784 = pneg %p78
      $region30: #{masked_srnet_forward.1} parent=27 // pred_check_branch
        %3786 = sbr.rel (%p3784) target = $region32
      $region31: #{masked_srnet_forward.1} parent=27 // pred_region
        %s3787 = smul.u32 16, %s13
      $region32: #{masked_srnet_forward.1} parent=27 // pred_fallthru
        _
    $region28: #{masked_srnet_forward.1} parent=5 // pred_fallthru
      _
    %p3788 = scmp.le.s32.totalorder 2, %s8
    // Predicated region
    $region33: #{masked_srnet_forward.1} parent=5 // pred_check
      %p3789 = pneg %p3788
    $region34: #{masked_srnet_forward.1} parent=5 // pred_check_branch
      %3791 = sbr.rel (%p3789) target = $region36
    $region35: #{masked_srnet_forward.1} parent=5 // pred_region
      %s3792 = ssub.s32 %s8, 2
      // Predicated region
      $region37: #{masked_srnet_forward.1} parent=35 // pred_check
        %p3793 = pneg %p84
      $region38: #{masked_srnet_forward.1} parent=35 // pred_check_branch
        %3795 = sbr.rel (%p3793) target = $region40
      $region39: #{masked_srnet_forward.1} parent=35 // pred_region
        %s3796 = smul.u32 16, %s14
        %p3797 = scmp.lt.s32.totalorder %s3796, 31
        %s3798 = scalar_select %p3797, %s3796, 31
        %s3799 = smul.addr %s3798, 8
        %s3800 = scalar_lea.vmem %s2, %s3799
      $region40: #{masked_srnet_forward.1} parent=35 // pred_fallthru
        _
    $region36: #{masked_srnet_forward.1} parent=5 // pred_fallthru
      _
  $region6: #{masked_srnet_forward.1} parent=0 // loop_footer
    %s12 = sadd.s32 1, %s8
  $region7: #{masked_srnet_forward.1} parent=0 // loop_footer_branch
    %7 = sbr.rel target = $region3
  $region8: #{masked_srnet_forward.1} parent=0 // loop_exit
    _

</llo_original>
